<compile_context>
chip_gen: v7x
topology: tpu7x:2x2x1
jax: 0.10.0
libtpu: 0.0.40
codegen_flags: <defaults>
</compile_context>

<pallas_src>
import math
import functools

import jax
import jax.numpy as jnp
from jax import lax
from jax.experimental import pallas as pl
from jax.experimental.pallas import tpu as pltpu

INF = 10000000000.0

# x:(M,K) . w:(N,K) -> (M,N) == x @ w.T, contraction on last dims (no transpose)
_CONTRACT_LAST = (((1,), (1,)), ((), ()))


# ------------------------------- small utils -------------------------------

def _round_up(x, m):
    return ((x + m - 1) // m) * m


def _vmem_cap_bytes():
    """Best-effort per-core VMEM capacity; conservative 64 MiB fallback."""
    try:
        info = pltpu.get_tpu_info()
        cap = getattr(info, "vmem_capacity_bytes", None)
        if cap:
            return int(cap)
    except Exception:
        pass
    return 64 << 20  # v7x per-TensorCore VMEM (safe lower bound everywhere)


def _vmem_limit(estimate_bytes):
    cap = int(_vmem_cap_bytes() * 0.9)
    return int(min(cap, max(2 * estimate_bytes + (8 << 20), 32 << 20)))


def _const_spec(shape, single_buffer):
    """BlockSpec for a grid-invariant block (index_map always zeros)."""
    index_map = lambda *_: (0,) * len(shape)
    if single_buffer:
        # Single-buffer constant weights: halves their VMEM residency.
        return pl.BlockSpec(shape, index_map, pipeline_mode=pl.Buffered(1))
    return pl.BlockSpec(shape, index_map)


def _pick_row_tile(M, D, Dh, cap_bytes):
    """Generation-aware FFN row tile: budget activations against VMEM."""
    tm = 64
    for cand in (512, 256, 128, 64):
        # y/out tiles double-buffered (f32) + f32 hidden + f32 accumulator.
        act = cand * (2 * D) * 4 * 2 + cand * Dh * 4 + cand * D * 4
        if act <= cap_bytes // 3:
            tm = cand
            break
    if M < tm:
        tm = _round_up(M, 8)
    return tm


def _pick_k_tile(Dh):
    """Hidden-dim (K) tile: multiple of 128 (lane dim of b1/W2) or full Dh."""
    if Dh <= 2048:
        return Dh
    for t in (2048, 1024, 512, 256, 128):
        if Dh % t == 0:
            return t
    return Dh


# ----------------------------- Pallas kernels ------------------------------

def _mha_block_kernel(x_ref, wq_ref, wk_ref, wv_ref, wo_ref, g_ref, b_ref,
                      o_ref, *, n_heads, scale, eps, causal, compute_dtype,
                      approx):
    """Fused: QKV proj -> per-head attention + O-proj accumulate -> residual -> LN."""
    x = x_ref[0].astype(jnp.float32)                        # (T, D), f32
    T, D = x.shape
    dh = D // n_heads
    inv_scale = 1.0 / scale

    xc = x.astype(compute_dtype)                            # MXU operand

    # Projections (PyTorch (out,in) weight layout, contraction on last dims).
    q = lax.dot_general(xc, wq_ref[...], _CONTRACT_LAST,
                        preferred_element_type=jnp.float32)
    k = lax.dot_general(xc, wk_ref[...], _CONTRACT_LAST,
                        preferred_element_type=jnp.float32)
    v = lax.dot_general(xc, wv_ref[...], _CONTRACT_LAST,
                        preferred_element_type=jnp.float32)

    # Fold 1/scale into q so the QK matmul already produces scaled scores.
    qc = (q * jnp.float32(inv_scale)).astype(compute_dtype)
    kc = k.astype(compute_dtype)
    vc = v.astype(compute_dtype)
    wo = wo_ref[...]                                        # (D, D), compute dtype

    # Causal additive mask built ONCE (hoisted out of the head loop).
    if causal:
        row = lax.broadcasted_iota(jnp.int32, (T, T), 0)
        col = lax.broadcasted_iota(jnp.int32, (T, T), 1)
        # PyTorch subtracts INF BEFORE dividing by scale; scale is folded into
        # q already, so the additive bias is -INF/scale.
        causal_bias = jnp.where(col > row, jnp.float32(-INF * inv_scale),
                                jnp.float32(0.0))

    # Per-head attention; O-projection accumulated per head (no ctx scratch,
    # no sub-128-lane masked stores).
    acc = jnp.zeros((T, D), jnp.float32)
    for h in range(n_heads):                                # static loop
        qh = qc[:, h * dh:(h + 1) * dh]
        kh = kc[:, h * dh:(h + 1) * dh]
        vh = vc[:, h * dh:(h + 1) * dh]
        # qh @ kh.T without an explicit transpose; f32 scores.
        s = lax.dot_general(qh, kh, _CONTRACT_LAST,
                            preferred_element_type=jnp.float32)     # (T, T)
        if causal:
            s = s + causal_bias
        s = s - jnp.max(s, axis=-1, keepdims=True)
        p = jnp.exp(s)
        p = p * pl.reciprocal(jnp.sum(p, axis=-1, keepdims=True), approx=approx)
        ctx_h = jnp.dot(p.astype(compute_dtype), vh,
                        preferred_element_type=jnp.float32)         # (T, dh)
        # acc += ctx_h @ Wo[:, h*dh:(h+1)*dh].T
        acc = acc + lax.dot_general(ctx_h.astype(compute_dtype),
                                    wo[:, h * dh:(h + 1) * dh], _CONTRACT_LAST,
                                    preferred_element_type=jnp.float32)

    # Residual + torch-style LayerNorm (unbiased std, eps added to std).
    y = x + acc
    mean = jnp.mean(y, axis=-1, keepdims=True)
    diff = y - mean
    var = jnp.sum(diff * diff, axis=-1, keepdims=True) * jnp.float32(1.0 / (D - 1))
    inv_std = pl.reciprocal(jnp.sqrt(var) + jnp.float32(eps), approx=approx)
    o_ref[0] = (g_ref[...] * (diff * inv_std) + b_ref[...]).astype(o_ref.dtype)


def _ffn_block_kernel(y_ref, w1_ref, b1_ref, w2_ref, b2_ref, g_ref, be_ref,
                      o_ref, acc_ref, *, eps, compute_dtype, approx):
    """Fused: K-tiled (over d_hidden) linear1-relu-linear2 -> residual -> LN."""
    kk = pl.program_id(1)
    nk = pl.num_programs(1)

    @pl.when(kk == 0)
    def _():
        acc_ref[...] = jnp.zeros_like(acc_ref)

    y = y_ref[...].astype(jnp.float32)                      # (tm, D), f32
    D = y.shape[-1]
    yc = y.astype(compute_dtype)

    h = lax.dot_general(yc, w1_ref[...], _CONTRACT_LAST,
                        preferred_element_type=jnp.float32) + b1_ref[...]
    h = jnp.maximum(h, 0.0)
    acc_ref[...] += lax.dot_general(h.astype(compute_dtype), w2_ref[...],
                                    _CONTRACT_LAST,
                                    preferred_element_type=jnp.float32)

    @pl.when(kk == nk - 1)
    def _():
        z = y + acc_ref[...] + b2_ref[...]
        mean = jnp.mean(z, axis=-1, keepdims=True)
        diff = z - mean
        var = jnp.sum(diff * diff, axis=-1, keepdims=True) * jnp.float32(1.0 / (D - 1))
        inv_std = pl.reciprocal(jnp.sqrt(var) + jnp.float32(eps), approx=approx)
        o_ref[...] = (g_ref[...] * (diff * inv_std) + be_ref[...]).astype(o_ref.dtype)


# ------------------------------ Pallas wrappers ----------------------------

def mha_residual_ln(x, Wq, Wk, Wv, Wo, gamma, beta, *, n_heads, eps=1e-6,
                    causal=False, compute_dtype=jnp.bfloat16):
    """Fused MultiHead self-attention + residual + LayerNorm. x: (B, T, D)."""
    B, T, D = x.shape
    assert D % n_heads == 0, "d_model must be divisible by n_heads"
    scale = math.sqrt(D)               # full d_key, as in Attention.__init__
    approx = compute_dtype != jnp.float32

    kernel = functools.partial(_mha_block_kernel, n_heads=n_heads, scale=scale,
                               eps=eps, causal=causal,
                               compute_dtype=compute_dtype, approx=approx)

    wq = Wq.astype(compute_dtype)
    wk = Wk.astype(compute_dtype)
    wv = Wv.astype(compute_dtype)
    wo = Wo.astype(compute_dtype)
    g = gamma.reshape(1, D).astype(jnp.float32)
    b = beta.reshape(1, D).astype(jnp.float32)

    itc = jnp.dtype(compute_dtype).itemsize
    est = (2 * 2 * T * D * x.dtype.itemsize          # x + out tiles, double-buffered
           + 2 * 4 * D * D * itc + 2 * 2 * D * 4     # weights + gamma/beta
           + (6 * T * D + T * T) * 4)                # f32 q,k,v,acc,x,diff + scores
    vmem_limit = _vmem_limit(est)

    def build(single_buffer_weights):
        return pl.pallas_call(
            kernel,
            out_shape=jax.ShapeDtypeStruct((B, T, D), x.dtype),
            grid=(B,),
            in_specs=[
                pl.BlockSpec((1, T, D), lambda bi: (bi, 0, 0)),
                _const_spec((D, D), single_buffer_weights),
                _const_spec((D, D), single_buffer_weights),
                _const_spec((D, D), single_buffer_weights),
                _const_spec((D, D), single_buffer_weights),
                _const_spec((1, D), single_buffer_weights),
                _const_spec((1, D), single_buffer_weights),
            ],
            out_specs=pl.BlockSpec((1, T, D), lambda bi: (bi, 0, 0)),
            compiler_params=pltpu.CompilerParams(
                dimension_semantics=("parallel",),
                vmem_limit_bytes=vmem_limit),
        )(x, wq, wk, wv, wo, g, b)

    try:
        return build(True)       # single-buffered constant weight blocks
    except Exception:
        return build(False)      # fallback if pipeline_mode is unsupported


def ffn_residual_ln(y, W1, b1, W2, b2, gamma, beta, *, eps=1e-6,
                    compute_dtype=jnp.bfloat16):
    """Fused FeedForward + residual + LayerNorm, row-tiled and K-tiled. y: (B,T,D)."""
    B, T, D = y.shape
    Dh = W1.shape[0]
    M = B * T
    approx = compute_dtype != jnp.float32

    cap = _vmem_cap_bytes()
    tm = _pick_row_tile(M, D, Dh, cap)
    tdh = _pick_k_tile(Dh)
    M_pad = _round_up(M, tm)

    kernel = functools.partial(_ffn_block_kernel, eps=eps,
                               compute_dtype=compute_dtype, approx=approx)

    y2 = y.reshape(M, D)
    if M_pad != M:
        # Zero-padded rows normalize to `beta` (no NaNs) and are sliced off.
        y2 = jnp.pad(y2, ((0, M_pad - M), (0, 0)))

    w1 = W1.astype(compute_dtype)
    w2 = W2.astype(compute_dtype)
    b1r = b1.reshape(1, Dh).astype(jnp.float32)
    b2r = b2.reshape(1, D).astype(jnp.float32)
    g = gamma.reshape(1, D).astype(jnp.float32)
    be = beta.reshape(1, D).astype(jnp.float32)

    itc = jnp.dtype(compute_dtype).itemsize
    est = (2 * 2 * tm * D * y.dtype.itemsize          # y + out tiles, double-buffered
           + 2 * 2 * tdh * D * itc                    # W1/W2 tiles, double-buffered
           + 2 * (tdh + 3 * D) * 4                    # biases, gamma, beta
           + tm * D * 4                               # f32 accumulator scratch
           + tm * (tdh + 2 * D) * 4)                  # f32 intermediates
    vmem_limit = _vmem_limit(est)

    def build(single_buffer_consts):
        return pl.pallas_call(
            kernel,
            out_shape=jax.ShapeDtypeStruct((M_pad, D), y.dtype),
            grid=(M_pad // tm, Dh // tdh),
            in_specs=[
                pl.BlockSpec((tm, D), lambda i, j: (i, 0)),
                pl.BlockSpec((tdh, D), lambda i, j: (j, 0)),
                pl.BlockSpec((1, tdh), lambda i, j: (0, j)),
                pl.BlockSpec((D, tdh), lambda i, j: (0, j)),
                _const_spec((1, D), single_buffer_consts),
                _const_spec((1, D), single_buffer_consts),
                _const_spec((1, D), single_buffer_consts),
            ],
            out_specs=pl.BlockSpec((tm, D), lambda i, j: (i, 0)),
            scratch_shapes=[pltpu.VMEM((tm, D), jnp.float32)],
            compiler_params=pltpu.CompilerParams(
                dimension_semantics=("parallel", "arbitrary"),
                vmem_limit_bytes=vmem_limit),
        )(y2, w1, b1r, w2, b2r, g, be)

    try:
        out = build(True)
    except Exception:
        out = build(False)
    return out[:M].reshape(B, T, D)


def encoder_layer_forward(x, p, *, n_heads, compute_dtype=jnp.bfloat16):
    """EncoderLayer.forward (eval mode) with fused Pallas kernels."""
    y = mha_residual_ln(x, p["Wq"], p["Wk"], p["Wv"], p["Wo"],
                        p["ln1_g"], p["ln1_b"], n_heads=n_heads, causal=False,
                        compute_dtype=compute_dtype)
    return ffn_residual_ln(y, p["W1"], p["b1"], p["W2"], p["b2"],
                           p["ln2_g"], p["ln2_b"], compute_dtype=compute_dtype)


# ----------------------------- pure-JAX reference ---------------------------

def _torch_layernorm(z, g, b, eps=1e-6):
    mean = z.mean(-1, keepdims=True)
    std = jnp.sqrt(((z - mean) ** 2).sum(-1, keepdims=True)
                   / (z.shape[-1] - 1))              # unbiased std (torch.std)
    return g * (z - mean) / (std + eps) + b


def encoder_layer_reference(x, p, *, n_heads):
    B, T, D = x.shape
    scale = math.sqrt(D)
    q, k, v = x @ p["Wq"].T, x @ p["Wk"].T, x @ p["Wv"].T

    def split(a):
        return a.reshape(B, T, n_heads, D // n_heads).transpose(0, 2, 1, 3)

    qh, kh, vh = split(q), split(k), split(v)
    s = jnp.einsum("bhqd,bhkd->bhqk", qh, kh) / scale
    prob = jax.nn.softmax(s, axis=-1)
    oh = jnp.einsum("bhqk,bhkd->bhqd", prob, vh)
    o = oh.transpose(0, 2, 1, 3).reshape(B, T, D)
    y = _torch_layernorm(x + o @ p["Wo"].T, p["ln1_g"], p["ln1_b"])
    h = jax.nn.relu(y @ p["W1"].T + p["b1"])
    f = h @ p["W2"].T + p["b2"]
    return _torch_layernorm(y + f, p["ln2_g"], p["ln2_b"])


# ----------------------------------- main -----------------------------------

if __name__ == "__main__":
    B, T, D_MODEL, D_HIDDEN, N_HEADS = 2, 8, 32, 64, 4

    keys = jax.random.split(jax.random.PRNGKey(0), 13)
    params = dict(
        Wq=jax.random.normal(keys[0], (D_MODEL, D_MODEL), jnp.float32) * 0.05,
        Wk=jax.random.normal(keys[1], (D_MODEL, D_MODEL), jnp.float32) * 0.05,
        Wv=jax.random.normal(keys[2], (D_MODEL, D_MODEL), jnp.float32) * 0.05,
        Wo=jax.random.normal(keys[3], (D_MODEL, D_MODEL), jnp.float32) * 0.05,
        ln1_g=1.0 + 0.01 * jax.random.normal(keys[4], (D_MODEL,), jnp.float32),
        ln1_b=0.01 * jax.random.normal(keys[5], (D_MODEL,), jnp.float32),
        W1=jax.random.normal(keys[6], (D_HIDDEN, D_MODEL), jnp.float32) * 0.05,
        b1=0.01 * jax.random.normal(keys[7], (D_HIDDEN,), jnp.float32),
        W2=jax.random.normal(keys[8], (D_MODEL, D_HIDDEN), jnp.float32) * 0.05,
        b2=0.01 * jax.random.normal(keys[9], (D_MODEL,), jnp.float32),
        ln2_g=1.0 + 0.01 * jax.random.normal(keys[10], (D_MODEL,), jnp.float32),
        ln2_b=0.01 * jax.random.normal(keys[11], (D_MODEL,), jnp.float32),
    )
    x = jax.random.normal(keys[12], (B, T, D_MODEL), jnp.float32)

    ref = encoder_layer_reference(x, params, n_heads=N_HEADS)

    # Fast path: bf16 MXU operands, f32 accumulation (loose tolerance).
    out_fast = encoder_layer_forward(x, params, n_heads=N_HEADS)
    out_fast = jax.block_until_ready(out_fast)
    assert out_fast.shape == (B, T, D_MODEL)
    assert jnp.allclose(out_fast, ref, atol=5e-2, rtol=5e-2), (
        "bf16-path mismatch vs reference; max abs err = %g"
        % float(jnp.max(jnp.abs(out_fast - ref))))

    # Exact-semantics check: f32 compute path at tight tolerance.
    out_f32 = encoder_layer_forward(x, params, n_heads=N_HEADS,
                                    compute_dtype=jnp.float32)
    out_f32 = jax.block_until_ready(out_f32)
    assert jnp.allclose(out_f32, ref, atol=1e-4, rtol=1e-4), (
        "f32-path mismatch vs reference; max abs err = %g"
        % float(jnp.max(jnp.abs(out_f32 - ref))))

    print("KERNEL_OK")
</pallas_src>

<mosaic_0001>
module attributes {stable_mosaic.version = 11 : i64} {
  func.func @_mha_block_kernel(%arg0: i32, %arg1: memref<1x8x32xf32, #tpu.memory_space<vmem>>, %arg2: memref<32x32xbf16, #tpu.memory_space<vmem>>, %arg3: memref<32x32xbf16, #tpu.memory_space<vmem>>, %arg4: memref<32x32xbf16, #tpu.memory_space<vmem>>, %arg5: memref<32x32xbf16, #tpu.memory_space<vmem>>, %arg6: memref<1x32xf32, #tpu.memory_space<vmem>>, %arg7: memref<1x32xf32, #tpu.memory_space<vmem>>, %arg8: memref<1x8x32xf32, #tpu.memory_space<vmem>>) attributes {dimension_semantics = [#tpu.dimension_semantics<parallel>], iteration_bounds = array<i64: 2>, scalar_prefetch = 0 : i64, scratch_operands = 0 : i64, tpu.core_type = #tpu.core_type<tc>, window_params = [{transform_indices = @transform_0, window_bounds = array<i64: 1, 8, 32>}, {pipeline_mode = #tpu.pipeline_mode<synchronous>, transform_indices = @transform_1, window_bounds = array<i64: 32, 32>}, {pipeline_mode = #tpu.pipeline_mode<synchronous>, transform_indices = @transform_2, window_bounds = array<i64: 32, 32>}, {pipeline_mode = #tpu.pipeline_mode<synchronous>, transform_indices = @transform_3, window_bounds = array<i64: 32, 32>}, {pipeline_mode = #tpu.pipeline_mode<synchronous>, transform_indices = @transform_4, window_bounds = array<i64: 32, 32>}, {pipeline_mode = #tpu.pipeline_mode<synchronous>, transform_indices = @transform_5, window_bounds = array<i64: 1, 32>}, {pipeline_mode = #tpu.pipeline_mode<synchronous>, transform_indices = @transform_6, window_bounds = array<i64: 1, 32>}, {transform_indices = @transform_7, window_bounds = array<i64: 1, 8, 32>}]} {
    %c0 = arith.constant 0 : index
    %c0_0 = arith.constant 0 : index
    %c0_1 = arith.constant 0 : index
    %0 = vector.load %arg1[%c0, %c0_0, %c0_1] : memref<1x8x32xf32, #tpu.memory_space<vmem>>, vector<1x8x32xf32>
    %1 = vector.shape_cast %0 : vector<1x8x32xf32> to vector<8x32xf32>
    %2 = arith.truncf %1 : vector<8x32xf32> to vector<8x32xbf16>
    %c0_2 = arith.constant 0 : index
    %c0_3 = arith.constant 0 : index
    %3 = vector.load %arg2[%c0_2, %c0_3] : memref<32x32xbf16, #tpu.memory_space<vmem>>, vector<32x32xbf16>
    %cst = arith.constant dense<0.000000e+00> : vector<8x32xf32>
    %4 = tpu.matmul %2, %3, %cst {dimension_numbers = #tpu.dot_dimension_numbers<[1], [1], [0], [0], [0, 0, 1, 0], [], []>} : vector<8x32xbf16>, vector<32x32xbf16>, vector<8x32xf32> -> vector<8x32xf32>
    %c0_4 = arith.constant 0 : index
    %c0_5 = arith.constant 0 : index
    %5 = vector.load %arg3[%c0_4, %c0_5] : memref<32x32xbf16, #tpu.memory_space<vmem>>, vector<32x32xbf16>
    %cst_6 = arith.constant dense<0.000000e+00> : vector<8x32xf32>
    %6 = tpu.matmul %2, %5, %cst_6 {dimension_numbers = #tpu.dot_dimension_numbers<[1], [1], [0], [0], [0, 0, 1, 0], [], []>} : vector<8x32xbf16>, vector<32x32xbf16>, vector<8x32xf32> -> vector<8x32xf32>
    %c0_7 = arith.constant 0 : index
    %c0_8 = arith.constant 0 : index
    %7 = vector.load %arg4[%c0_7, %c0_8] : memref<32x32xbf16, #tpu.memory_space<vmem>>, vector<32x32xbf16>
    %cst_9 = arith.constant dense<0.000000e+00> : vector<8x32xf32>
    %8 = tpu.matmul %2, %7, %cst_9 {dimension_numbers = #tpu.dot_dimension_numbers<[1], [1], [0], [0], [0, 0, 1, 0], [], []>} : vector<8x32xbf16>, vector<32x32xbf16>, vector<8x32xf32> -> vector<8x32xf32>
    %cst_10 = arith.constant 0.176776692 : f32
    %9 = vector.broadcast %cst_10 : f32 to vector<8x32xf32>
    %10 = arith.mulf %4, %9 : vector<8x32xf32>
    %11 = arith.truncf %10 : vector<8x32xf32> to vector<8x32xbf16>
    %12 = arith.truncf %6 : vector<8x32xf32> to vector<8x32xbf16>
    %13 = arith.truncf %8 : vector<8x32xf32> to vector<8x32xbf16>
    %c0_11 = arith.constant 0 : index
    %c0_12 = arith.constant 0 : index
    %14 = vector.load %arg5[%c0_11, %c0_12] : memref<32x32xbf16, #tpu.memory_space<vmem>>, vector<32x32xbf16>
    %cst_13 = arith.constant 0.000000e+00 : f32
    %15 = vector.broadcast %cst_13 : f32 to vector<8x32xf32>
    %16 = vector.extract_strided_slice %11 {offsets = [0, 0], sizes = [8, 8], strides = [1, 1]} : vector<8x32xbf16> to vector<8x8xbf16>
    %17 = vector.extract_strided_slice %12 {offsets = [0, 0], sizes = [8, 8], strides = [1, 1]} : vector<8x32xbf16> to vector<8x8xbf16>
    %18 = vector.extract_strided_slice %13 {offsets = [0, 0], sizes = [8, 8], strides = [1, 1]} : vector<8x32xbf16> to vector<8x8xbf16>
    %cst_14 = arith.constant dense<0.000000e+00> : vector<8x8xf32>
    %19 = tpu.matmul %16, %17, %cst_14 {dimension_numbers = #tpu.dot_dimension_numbers<[1], [1], [0], [0], [0, 0, 1, 0], [], []>} : vector<8x8xbf16>, vector<8x8xbf16>, vector<8x8xf32> -> vector<8x8xf32>
    %cst_15 = arith.constant dense<0xFF800000> : vector<8xf32>
    %20 = vector.multi_reduction <maximumf>, %19, %cst_15 [1] : vector<8x8xf32> to vector<8xf32>
    %21 = vector.shape_cast %20 : vector<8xf32> to vector<8x1xf32>
    %22 = vector.broadcast %21 : vector<8x1xf32> to vector<8x8xf32>
    %23 = arith.subf %19, %22 : vector<8x8xf32>
    %24 = math.exp %23 : vector<8x8xf32>
    %cst_16 = arith.constant dense<0.000000e+00> : vector<8xf32>
    %25 = vector.multi_reduction <add>, %24, %cst_16 [1] : vector<8x8xf32> to vector<8xf32>
    %26 = vector.shape_cast %25 : vector<8xf32> to vector<8x1xf32>
    %27 = tpu.reciprocal %26 {approx = true} : vector<8x1xf32> -> vector<8x1xf32>
    %28 = vector.broadcast %27 : vector<8x1xf32> to vector<8x8xf32>
    %29 = arith.mulf %24, %28 : vector<8x8xf32>
    %30 = arith.truncf %29 : vector<8x8xf32> to vector<8x8xbf16>
    %cst_17 = arith.constant dense<0.000000e+00> : vector<8x8xf32>
    %31 = tpu.matmul %30, %18, %cst_17 {dimension_numbers = #tpu.dot_dimension_numbers<[1], [0], [0], [1], [0, 0, 1, 1], [], []>} : vector<8x8xbf16>, vector<8x8xbf16>, vector<8x8xf32> -> vector<8x8xf32>
    %32 = arith.truncf %31 : vector<8x8xf32> to vector<8x8xbf16>
    %33 = vector.extract_strided_slice %14 {offsets = [0, 0], sizes = [32, 8], strides = [1, 1]} : vector<32x32xbf16> to vector<32x8xbf16>
    %cst_18 = arith.constant dense<0.000000e+00> : vector<8x32xf32>
    %34 = tpu.matmul %32, %33, %cst_18 {dimension_numbers = #tpu.dot_dimension_numbers<[1], [1], [0], [0], [0, 0, 1, 0], [], []>} : vector<8x8xbf16>, vector<32x8xbf16>, vector<8x32xf32> -> vector<8x32xf32>
    %35 = arith.addf %15, %34 : vector<8x32xf32>
    %36 = vector.extract_strided_slice %11 {offsets = [0, 8], sizes = [8, 8], strides = [1, 1]} : vector<8x32xbf16> to vector<8x8xbf16>
    %37 = vector.extract_strided_slice %12 {offsets = [0, 8], sizes = [8, 8], strides = [1, 1]} : vector<8x32xbf16> to vector<8x8xbf16>
    %38 = vector.extract_strided_slice %13 {offsets = [0, 8], sizes = [8, 8], strides = [1, 1]} : vector<8x32xbf16> to vector<8x8xbf16>
    %cst_19 = arith.constant dense<0.000000e+00> : vector<8x8xf32>
    %39 = tpu.matmul %36, %37, %cst_19 {dimension_numbers = #tpu.dot_dimension_numbers<[1], [1], [0], [0], [0, 0, 1, 0], [], []>} : vector<8x8xbf16>, vector<8x8xbf16>, vector<8x8xf32> -> vector<8x8xf32>
    %cst_20 = arith.constant dense<0xFF800000> : vector<8xf32>
    %40 = vector.multi_reduction <maximumf>, %39, %cst_20 [1] : vector<8x8xf32> to vector<8xf32>
    %41 = vector.shape_cast %40 : vector<8xf32> to vector<8x1xf32>
    %42 = vector.broadcast %41 : vector<8x1xf32> to vector<8x8xf32>
    %43 = arith.subf %39, %42 : vector<8x8xf32>
    %44 = math.exp %43 : vector<8x8xf32>
    %cst_21 = arith.constant dense<0.000000e+00> : vector<8xf32>
    %45 = vector.multi_reduction <add>, %44, %cst_21 [1] : vector<8x8xf32> to vector<8xf32>
    %46 = vector.shape_cast %45 : vector<8xf32> to vector<8x1xf32>
    %47 = tpu.reciprocal %46 {approx = true} : vector<8x1xf32> -> vector<8x1xf32>
    %48 = vector.broadcast %47 : vector<8x1xf32> to vector<8x8xf32>
    %49 = arith.mulf %44, %48 : vector<8x8xf32>
    %50 = arith.truncf %49 : vector<8x8xf32> to vector<8x8xbf16>
    %cst_22 = arith.constant dense<0.000000e+00> : vector<8x8xf32>
    %51 = tpu.matmul %50, %38, %cst_22 {dimension_numbers = #tpu.dot_dimension_numbers<[1], [0], [0], [1], [0, 0, 1, 1], [], []>} : vector<8x8xbf16>, vector<8x8xbf16>, vector<8x8xf32> -> vector<8x8xf32>
    %52 = arith.truncf %51 : vector<8x8xf32> to vector<8x8xbf16>
    %53 = vector.extract_strided_slice %14 {offsets = [0, 8], sizes = [32, 8], strides = [1, 1]} : vector<32x32xbf16> to vector<32x8xbf16>
    %cst_23 = arith.constant dense<0.000000e+00> : vector<8x32xf32>
    %54 = tpu.matmul %52, %53, %cst_23 {dimension_numbers = #tpu.dot_dimension_numbers<[1], [1], [0], [0], [0, 0, 1, 0], [], []>} : vector<8x8xbf16>, vector<32x8xbf16>, vector<8x32xf32> -> vector<8x32xf32>
    %55 = arith.addf %35, %54 : vector<8x32xf32>
    %56 = vector.extract_strided_slice %11 {offsets = [0, 16], sizes = [8, 8], strides = [1, 1]} : vector<8x32xbf16> to vector<8x8xbf16>
    %57 = vector.extract_strided_slice %12 {offsets = [0, 16], sizes = [8, 8], strides = [1, 1]} : vector<8x32xbf16> to vector<8x8xbf16>
    %58 = vector.extract_strided_slice %13 {offsets = [0, 16], sizes = [8, 8], strides = [1, 1]} : vector<8x32xbf16> to vector<8x8xbf16>
    %cst_24 = arith.constant dense<0.000000e+00> : vector<8x8xf32>
    %59 = tpu.matmul %56, %57, %cst_24 {dimension_numbers = #tpu.dot_dimension_numbers<[1], [1], [0], [0], [0, 0, 1, 0], [], []>} : vector<8x8xbf16>, vector<8x8xbf16>, vector<8x8xf32> -> vector<8x8xf32>
    %cst_25 = arith.constant dense<0xFF800000> : vector<8xf32>
    %60 = vector.multi_reduction <maximumf>, %59, %cst_25 [1] : vector<8x8xf32> to vector<8xf32>
    %61 = vector.shape_cast %60 : vector<8xf32> to vector<8x1xf32>
    %62 = vector.broadcast %61 : vector<8x1xf32> to vector<8x8xf32>
    %63 = arith.subf %59, %62 : vector<8x8xf32>
    %64 = math.exp %63 : vector<8x8xf32>
    %cst_26 = arith.constant dense<0.000000e+00> : vector<8xf32>
    %65 = vector.multi_reduction <add>, %64, %cst_26 [1] : vector<8x8xf32> to vector<8xf32>
    %66 = vector.shape_cast %65 : vector<8xf32> to vector<8x1xf32>
    %67 = tpu.reciprocal %66 {approx = true} : vector<8x1xf32> -> vector<8x1xf32>
    %68 = vector.broadcast %67 : vector<8x1xf32> to vector<8x8xf32>
    %69 = arith.mulf %64, %68 : vector<8x8xf32>
    %70 = arith.truncf %69 : vector<8x8xf32> to vector<8x8xbf16>
    %cst_27 = arith.constant dense<0.000000e+00> : vector<8x8xf32>
    %71 = tpu.matmul %70, %58, %cst_27 {dimension_numbers = #tpu.dot_dimension_numbers<[1], [0], [0], [1], [0, 0, 1, 1], [], []>} : vector<8x8xbf16>, vector<8x8xbf16>, vector<8x8xf32> -> vector<8x8xf32>
    %72 = arith.truncf %71 : vector<8x8xf32> to vector<8x8xbf16>
    %73 = vector.extract_strided_slice %14 {offsets = [0, 16], sizes = [32, 8], strides = [1, 1]} : vector<32x32xbf16> to vector<32x8xbf16>
    %cst_28 = arith.constant dense<0.000000e+00> : vector<8x32xf32>
    %74 = tpu.matmul %72, %73, %cst_28 {dimension_numbers = #tpu.dot_dimension_numbers<[1], [1], [0], [0], [0, 0, 1, 0], [], []>} : vector<8x8xbf16>, vector<32x8xbf16>, vector<8x32xf32> -> vector<8x32xf32>
    %75 = arith.addf %55, %74 : vector<8x32xf32>
    %76 = vector.extract_strided_slice %11 {offsets = [0, 24], sizes = [8, 8], strides = [1, 1]} : vector<8x32xbf16> to vector<8x8xbf16>
    %77 = vector.extract_strided_slice %12 {offsets = [0, 24], sizes = [8, 8], strides = [1, 1]} : vector<8x32xbf16> to vector<8x8xbf16>
    %78 = vector.extract_strided_slice %13 {offsets = [0, 24], sizes = [8, 8], strides = [1, 1]} : vector<8x32xbf16> to vector<8x8xbf16>
    %cst_29 = arith.constant dense<0.000000e+00> : vector<8x8xf32>
    %79 = tpu.matmul %76, %77, %cst_29 {dimension_numbers = #tpu.dot_dimension_numbers<[1], [1], [0], [0], [0, 0, 1, 0], [], []>} : vector<8x8xbf16>, vector<8x8xbf16>, vector<8x8xf32> -> vector<8x8xf32>
    %cst_30 = arith.constant dense<0xFF800000> : vector<8xf32>
    %80 = vector.multi_reduction <maximumf>, %79, %cst_30 [1] : vector<8x8xf32> to vector<8xf32>
    %81 = vector.shape_cast %80 : vector<8xf32> to vector<8x1xf32>
    %82 = vector.broadcast %81 : vector<8x1xf32> to vector<8x8xf32>
    %83 = arith.subf %79, %82 : vector<8x8xf32>
    %84 = math.exp %83 : vector<8x8xf32>
    %cst_31 = arith.constant dense<0.000000e+00> : vector<8xf32>
    %85 = vector.multi_reduction <add>, %84, %cst_31 [1] : vector<8x8xf32> to vector<8xf32>
    %86 = vector.shape_cast %85 : vector<8xf32> to vector<8x1xf32>
    %87 = tpu.reciprocal %86 {approx = true} : vector<8x1xf32> -> vector<8x1xf32>
    %88 = vector.broadcast %87 : vector<8x1xf32> to vector<8x8xf32>
    %89 = arith.mulf %84, %88 : vector<8x8xf32>
    %90 = arith.truncf %89 : vector<8x8xf32> to vector<8x8xbf16>
    %cst_32 = arith.constant dense<0.000000e+00> : vector<8x8xf32>
    %91 = tpu.matmul %90, %78, %cst_32 {dimension_numbers = #tpu.dot_dimension_numbers<[1], [0], [0], [1], [0, 0, 1, 1], [], []>} : vector<8x8xbf16>, vector<8x8xbf16>, vector<8x8xf32> -> vector<8x8xf32>
    %92 = arith.truncf %91 : vector<8x8xf32> to vector<8x8xbf16>
    %93 = vector.extract_strided_slice %14 {offsets = [0, 24], sizes = [32, 8], strides = [1, 1]} : vector<32x32xbf16> to vector<32x8xbf16>
    %cst_33 = arith.constant dense<0.000000e+00> : vector<8x32xf32>
    %94 = tpu.matmul %92, %93, %cst_33 {dimension_numbers = #tpu.dot_dimension_numbers<[1], [1], [0], [0], [0, 0, 1, 0], [], []>} : vector<8x8xbf16>, vector<32x8xbf16>, vector<8x32xf32> -> vector<8x32xf32>
    %95 = arith.addf %75, %94 : vector<8x32xf32>
    %96 = arith.addf %1, %95 : vector<8x32xf32>
    %cst_34 = arith.constant dense<0.000000e+00> : vector<8xf32>
    %97 = vector.multi_reduction <add>, %96, %cst_34 [1] : vector<8x32xf32> to vector<8xf32>
    %98 = vector.shape_cast %97 : vector<8xf32> to vector<8x1xf32>
    %cst_35 = arith.constant 3.200000e+01 : f32
    %99 = vector.broadcast %cst_35 : f32 to vector<8x1xf32>
    %100 = arith.divf %98, %99 : vector<8x1xf32>
    %101 = vector.broadcast %100 : vector<8x1xf32> to vector<8x32xf32>
    %102 = arith.subf %96, %101 : vector<8x32xf32>
    %103 = arith.mulf %102, %102 : vector<8x32xf32>
    %cst_36 = arith.constant dense<0.000000e+00> : vector<8xf32>
    %104 = vector.multi_reduction <add>, %103, %cst_36 [1] : vector<8x32xf32> to vector<8xf32>
    %105 = vector.shape_cast %104 : vector<8xf32> to vector<8x1xf32>
    %cst_37 = arith.constant 0.0322580636 : f32
    %106 = vector.broadcast %cst_37 : f32 to vector<8x1xf32>
    %107 = arith.mulf %105, %106 : vector<8x1xf32>
    %108 = math.sqrt %107 : vector<8x1xf32>
    %cst_38 = arith.constant 9.99999997E-7 : f32
    %109 = vector.broadcast %cst_38 : f32 to vector<8x1xf32>
    %110 = arith.addf %108, %109 : vector<8x1xf32>
    %111 = tpu.reciprocal %110 {approx = true} : vector<8x1xf32> -> vector<8x1xf32>
    %c0_39 = arith.constant 0 : index
    %c0_40 = arith.constant 0 : index
    %112 = vector.load %arg6[%c0_39, %c0_40] : memref<1x32xf32, #tpu.memory_space<vmem>>, vector<1x32xf32>
    %113 = vector.broadcast %111 : vector<8x1xf32> to vector<8x32xf32>
    %114 = arith.mulf %102, %113 : vector<8x32xf32>
    %115 = vector.broadcast %112 : vector<1x32xf32> to vector<8x32xf32>
    %116 = arith.mulf %115, %114 : vector<8x32xf32>
    %c0_41 = arith.constant 0 : index
    %c0_42 = arith.constant 0 : index
    %117 = vector.load %arg7[%c0_41, %c0_42] : memref<1x32xf32, #tpu.memory_space<vmem>>, vector<1x32xf32>
    %118 = vector.broadcast %117 : vector<1x32xf32> to vector<8x32xf32>
    %119 = arith.addf %116, %118 : vector<8x32xf32>
    %c0_43 = arith.constant 0 : index
    %c0_44 = arith.constant 0 : index
    %c0_45 = arith.constant 0 : index
    %120 = vector.load %arg8[%c0_43, %c0_44, %c0_45] : memref<1x8x32xf32, #tpu.memory_space<vmem>>, vector<1x8x32xf32>
    %121 = vector.shape_cast %120 : vector<1x8x32xf32> to vector<8x32xf32>
    %122 = vector.shape_cast %119 : vector<8x32xf32> to vector<1x8x32xf32>
    tpu.vector_store %arg8[%c0_43, %c0_44, %c0_45], %122 {strides = array<i32>} : memref<1x8x32xf32, #tpu.memory_space<vmem>>, vector<1x8x32xf32>,
    return
  }
  func.func @transform_0(%arg0: i32) -> (i32, i32, i32) {
    %c0_i32 = arith.constant 0 : i32
    %c0_i32_0 = arith.constant 0 : i32
    %c0_i32_1 = arith.constant 0 : i32
    return %arg0, %c0_i32, %c0_i32_0 : i32, i32, i32
  }
  func.func @transform_1(%arg0: i32) -> (i32, i32) {
    %c0_i32 = arith.constant 0 : i32
    %c0_i32_0 = arith.constant 0 : i32
    %c0_i32_1 = arith.constant 0 : i32
    return %c0_i32, %c0_i32_0 : i32, i32
  }
  func.func @transform_2(%arg0: i32) -> (i32, i32) {
    %c0_i32 = arith.constant 0 : i32
    %c0_i32_0 = arith.constant 0 : i32
    %c0_i32_1 = arith.constant 0 : i32
    return %c0_i32, %c0_i32_0 : i32, i32
  }
  func.func @transform_3(%arg0: i32) -> (i32, i32) {
    %c0_i32 = arith.constant 0 : i32
    %c0_i32_0 = arith.constant 0 : i32
    %c0_i32_1 = arith.constant 0 : i32
    return %c0_i32, %c0_i32_0 : i32, i32
  }
  func.func @transform_4(%arg0: i32) -> (i32, i32) {
    %c0_i32 = arith.constant 0 : i32
    %c0_i32_0 = arith.constant 0 : i32
    %c0_i32_1 = arith.constant 0 : i32
    return %c0_i32, %c0_i32_0 : i32, i32
  }
  func.func @transform_5(%arg0: i32) -> (i32, i32) {
    %c0_i32 = arith.constant 0 : i32
    %c0_i32_0 = arith.constant 0 : i32
    %c0_i32_1 = arith.constant 0 : i32
    return %c0_i32, %c0_i32_0 : i32, i32
  }
  func.func @transform_6(%arg0: i32) -> (i32, i32) {
    %c0_i32 = arith.constant 0 : i32
    %c0_i32_0 = arith.constant 0 : i32
    %c0_i32_1 = arith.constant 0 : i32
    return %c0_i32, %c0_i32_0 : i32, i32
  }
  func.func @transform_7(%arg0: i32) -> (i32, i32, i32) {
    %c0_i32 = arith.constant 0 : i32
    %c0_i32_0 = arith.constant 0 : i32
    %c0_i32_1 = arith.constant 0 : i32
    return %arg0, %c0_i32, %c0_i32_0 : i32, i32, i32
  }
}

module attributes {stable_mosaic.version = 11 : i64} {
  func.func @_mha_block_kernel(%arg0: i32, %arg1: memref<1x8x32xf32, #tpu.memory_space<vmem>>, %arg2: memref<32x32xbf16, #tpu.memory_space<vmem>>, %arg3: memref<32x32xbf16, #tpu.memory_space<vmem>>, %arg4: memref<32x32xbf16, #tpu.memory_space<vmem>>, %arg5: memref<32x32xbf16, #tpu.memory_space<vmem>>, %arg6: memref<1x32xf32, #tpu.memory_space<vmem>>, %arg7: memref<1x32xf32, #tpu.memory_space<vmem>>, %arg8: memref<1x8x32xf32, #tpu.memory_space<vmem>>) attributes {dimension_semantics = [#tpu.dimension_semantics<parallel>], iteration_bounds = array<i64: 2>, scalar_prefetch = 0 : i64, scratch_operands = 0 : i64, tpu.core_type = #tpu.core_type<tc>, window_params = [{transform_indices = @transform_0, window_bounds = array<i64: 1, 8, 32>}, {pipeline_mode = #tpu.pipeline_mode<synchronous>, transform_indices = @transform_1, window_bounds = array<i64: 32, 32>}, {pipeline_mode = #tpu.pipeline_mode<synchronous>, transform_indices = @transform_2, window_bounds = array<i64: 32, 32>}, {pipeline_mode = #tpu.pipeline_mode<synchronous>, transform_indices = @transform_3, window_bounds = array<i64: 32, 32>}, {pipeline_mode = #tpu.pipeline_mode<synchronous>, transform_indices = @transform_4, window_bounds = array<i64: 32, 32>}, {pipeline_mode = #tpu.pipeline_mode<synchronous>, transform_indices = @transform_5, window_bounds = array<i64: 1, 32>}, {pipeline_mode = #tpu.pipeline_mode<synchronous>, transform_indices = @transform_6, window_bounds = array<i64: 1, 32>}, {transform_indices = @transform_7, window_bounds = array<i64: 1, 8, 32>}]} {
    %c0 = arith.constant 0 : index
    %c0_0 = arith.constant 0 : index
    %c0_1 = arith.constant 0 : index
    %0 = vector.load %arg1[%c0, %c0_0, %c0_1] : memref<1x8x32xf32, #tpu.memory_space<vmem>>, vector<1x8x32xf32>
    %1 = vector.shape_cast %0 : vector<1x8x32xf32> to vector<8x32xf32>
    %2 = arith.truncf %1 : vector<8x32xf32> to vector<8x32xbf16>
    %c0_2 = arith.constant 0 : index
    %c0_3 = arith.constant 0 : index
    %3 = vector.load %arg2[%c0_2, %c0_3] : memref<32x32xbf16, #tpu.memory_space<vmem>>, vector<32x32xbf16>
    %cst = arith.constant dense<0.000000e+00> : vector<8x32xf32>
    %4 = tpu.matmul %2, %3, %cst {dimension_numbers = #tpu.dot_dimension_numbers<[1], [1], [0], [0], [0, 0, 1, 0], [], []>} : vector<8x32xbf16>, vector<32x32xbf16>, vector<8x32xf32> -> vector<8x32xf32>
    %c0_4 = arith.constant 0 : index
    %c0_5 = arith.constant 0 : index
    %5 = vector.load %arg3[%c0_4, %c0_5] : memref<32x32xbf16, #tpu.memory_space<vmem>>, vector<32x32xbf16>
    %cst_6 = arith.constant dense<0.000000e+00> : vector<8x32xf32>
    %6 = tpu.matmul %2, %5, %cst_6 {dimension_numbers = #tpu.dot_dimension_numbers<[1], [1], [0], [0], [0, 0, 1, 0], [], []>} : vector<8x32xbf16>, vector<32x32xbf16>, vector<8x32xf32> -> vector<8x32xf32>
    %c0_7 = arith.constant 0 : index
    %c0_8 = arith.constant 0 : index
    %7 = vector.load %arg4[%c0_7, %c0_8] : memref<32x32xbf16, #tpu.memory_space<vmem>>, vector<32x32xbf16>
    %cst_9 = arith.constant dense<0.000000e+00> : vector<8x32xf32>
    %8 = tpu.matmul %2, %7, %cst_9 {dimension_numbers = #tpu.dot_dimension_numbers<[1], [1], [0], [0], [0, 0, 1, 0], [], []>} : vector<8x32xbf16>, vector<32x32xbf16>, vector<8x32xf32> -> vector<8x32xf32>
    %cst_10 = arith.constant 0.176776692 : f32
    %9 = vector.broadcast %cst_10 : f32 to vector<8x32xf32>
    %10 = arith.mulf %4, %9 : vector<8x32xf32>
    %11 = arith.truncf %10 : vector<8x32xf32> to vector<8x32xbf16>
    %12 = arith.truncf %6 : vector<8x32xf32> to vector<8x32xbf16>
    %13 = arith.truncf %8 : vector<8x32xf32> to vector<8x32xbf16>
    %c0_11 = arith.constant 0 : index
    %c0_12 = arith.constant 0 : index
    %14 = vector.load %arg5[%c0_11, %c0_12] : memref<32x32xbf16, #tpu.memory_space<vmem>>, vector<32x32xbf16>
    %cst_13 = arith.constant 0.000000e+00 : f32
    %15 = vector.broadcast %cst_13 : f32 to vector<8x32xf32>
    %16 = vector.extract_strided_slice %11 {offsets = [0, 0], sizes = [8, 8], strides = [1, 1]} : vector<8x32xbf16> to vector<8x8xbf16>
    %17 = vector.extract_strided_slice %12 {offsets = [0, 0], sizes = [8, 8], strides = [1, 1]} : vector<8x32xbf16> to vector<8x8xbf16>
    %18 = vector.extract_strided_slice %13 {offsets = [0, 0], sizes = [8, 8], strides = [1, 1]} : vector<8x32xbf16> to vector<8x8xbf16>
    %cst_14 = arith.constant dense<0.000000e+00> : vector<8x8xf32>
    %19 = tpu.matmul %16, %17, %cst_14 {dimension_numbers = #tpu.dot_dimension_numbers<[1], [1], [0], [0], [0, 0, 1, 0], [], []>} : vector<8x8xbf16>, vector<8x8xbf16>, vector<8x8xf32> -> vector<8x8xf32>
    %cst_15 = arith.constant dense<0xFF800000> : vector<8xf32>
    %20 = vector.multi_reduction <maximumf>, %19, %cst_15 [1] : vector<8x8xf32> to vector<8xf32>
    %21 = vector.shape_cast %20 : vector<8xf32> to vector<8x1xf32>
    %22 = vector.broadcast %21 : vector<8x1xf32> to vector<8x8xf32>
    %23 = arith.subf %19, %22 : vector<8x8xf32>
    %24 = math.exp %23 : vector<8x8xf32>
    %cst_16 = arith.constant dense<0.000000e+00> : vector<8xf32>
    %25 = vector.multi_reduction <add>, %24, %cst_16 [1] : vector<8x8xf32> to vector<8xf32>
    %26 = vector.shape_cast %25 : vector<8xf32> to vector<8x1xf32>
    %27 = tpu.reciprocal %26 {approx = true} : vector<8x1xf32> -> vector<8x1xf32>
    %28 = vector.broadcast %27 : vector<8x1xf32> to vector<8x8xf32>
    %29 = arith.mulf %24, %28 : vector<8x8xf32>
    %30 = arith.truncf %29 : vector<8x8xf32> to vector<8x8xbf16>
    %cst_17 = arith.constant dense<0.000000e+00> : vector<8x8xf32>
    %31 = tpu.matmul %30, %18, %cst_17 {dimension_numbers = #tpu.dot_dimension_numbers<[1], [0], [0], [1], [0, 0, 1, 1], [], []>} : vector<8x8xbf16>, vector<8x8xbf16>, vector<8x8xf32> -> vector<8x8xf32>
    %32 = arith.truncf %31 : vector<8x8xf32> to vector<8x8xbf16>
    %33 = vector.extract_strided_slice %14 {offsets = [0, 0], sizes = [32, 8], strides = [1, 1]} : vector<32x32xbf16> to vector<32x8xbf16>
    %cst_18 = arith.constant dense<0.000000e+00> : vector<8x32xf32>
    %34 = tpu.matmul %32, %33, %cst_18 {dimension_numbers = #tpu.dot_dimension_numbers<[1], [1], [0], [0], [0, 0, 1, 0], [], []>} : vector<8x8xbf16>, vector<32x8xbf16>, vector<8x32xf32> -> vector<8x32xf32>
    %35 = arith.addf %15, %34 : vector<8x32xf32>
    %36 = vector.extract_strided_slice %11 {offsets = [0, 8], sizes = [8, 8], strides = [1, 1]} : vector<8x32xbf16> to vector<8x8xbf16>
    %37 = vector.extract_strided_slice %12 {offsets = [0, 8], sizes = [8, 8], strides = [1, 1]} : vector<8x32xbf16> to vector<8x8xbf16>
    %38 = vector.extract_strided_slice %13 {offsets = [0, 8], sizes = [8, 8], strides = [1, 1]} : vector<8x32xbf16> to vector<8x8xbf16>
    %cst_19 = arith.constant dense<0.000000e+00> : vector<8x8xf32>
    %39 = tpu.matmul %36, %37, %cst_19 {dimension_numbers = #tpu.dot_dimension_numbers<[1], [1], [0], [0], [0, 0, 1, 0], [], []>} : vector<8x8xbf16>, vector<8x8xbf16>, vector<8x8xf32> -> vector<8x8xf32>
    %cst_20 = arith.constant dense<0xFF800000> : vector<8xf32>
    %40 = vector.multi_reduction <maximumf>, %39, %cst_20 [1] : vector<8x8xf32> to vector<8xf32>
    %41 = vector.shape_cast %40 : vector<8xf32> to vector<8x1xf32>
    %42 = vector.broadcast %41 : vector<8x1xf32> to vector<8x8xf32>
    %43 = arith.subf %39, %42 : vector<8x8xf32>
    %44 = math.exp %43 : vector<8x8xf32>
    %cst_21 = arith.constant dense<0.000000e+00> : vector<8xf32>
    %45 = vector.multi_reduction <add>, %44, %cst_21 [1] : vector<8x8xf32> to vector<8xf32>
    %46 = vector.shape_cast %45 : vector<8xf32> to vector<8x1xf32>
    %47 = tpu.reciprocal %46 {approx = true} : vector<8x1xf32> -> vector<8x1xf32>
    %48 = vector.broadcast %47 : vector<8x1xf32> to vector<8x8xf32>
    %49 = arith.mulf %44, %48 : vector<8x8xf32>
    %50 = arith.truncf %49 : vector<8x8xf32> to vector<8x8xbf16>
    %cst_22 = arith.constant dense<0.000000e+00> : vector<8x8xf32>
    %51 = tpu.matmul %50, %38, %cst_22 {dimension_numbers = #tpu.dot_dimension_numbers<[1], [0], [0], [1], [0, 0, 1, 1], [], []>} : vector<8x8xbf16>, vector<8x8xbf16>, vector<8x8xf32> -> vector<8x8xf32>
    %52 = arith.truncf %51 : vector<8x8xf32> to vector<8x8xbf16>
    %53 = vector.extract_strided_slice %14 {offsets = [0, 8], sizes = [32, 8], strides = [1, 1]} : vector<32x32xbf16> to vector<32x8xbf16>
    %cst_23 = arith.constant dense<0.000000e+00> : vector<8x32xf32>
    %54 = tpu.matmul %52, %53, %cst_23 {dimension_numbers = #tpu.dot_dimension_numbers<[1], [1], [0], [0], [0, 0, 1, 0], [], []>} : vector<8x8xbf16>, vector<32x8xbf16>, vector<8x32xf32> -> vector<8x32xf32>
    %55 = arith.addf %35, %54 : vector<8x32xf32>
    %56 = vector.extract_strided_slice %11 {offsets = [0, 16], sizes = [8, 8], strides = [1, 1]} : vector<8x32xbf16> to vector<8x8xbf16>
    %57 = vector.extract_strided_slice %12 {offsets = [0, 16], sizes = [8, 8], strides = [1, 1]} : vector<8x32xbf16> to vector<8x8xbf16>
    %58 = vector.extract_strided_slice %13 {offsets = [0, 16], sizes = [8, 8], strides = [1, 1]} : vector<8x32xbf16> to vector<8x8xbf16>
    %cst_24 = arith.constant dense<0.000000e+00> : vector<8x8xf32>
    %59 = tpu.matmul %56, %57, %cst_24 {dimension_numbers = #tpu.dot_dimension_numbers<[1], [1], [0], [0], [0, 0, 1, 0], [], []>} : vector<8x8xbf16>, vector<8x8xbf16>, vector<8x8xf32> -> vector<8x8xf32>
    %cst_25 = arith.constant dense<0xFF800000> : vector<8xf32>
    %60 = vector.multi_reduction <maximumf>, %59, %cst_25 [1] : vector<8x8xf32> to vector<8xf32>
    %61 = vector.shape_cast %60 : vector<8xf32> to vector<8x1xf32>
    %62 = vector.broadcast %61 : vector<8x1xf32> to vector<8x8xf32>
    %63 = arith.subf %59, %62 : vector<8x8xf32>
    %64 = math.exp %63 : vector<8x8xf32>
    %cst_26 = arith.constant dense<0.000000e+00> : vector<8xf32>
    %65 = vector.multi_reduction <add>, %64, %cst_26 [1] : vector<8x8xf32> to vector<8xf32>
    %66 = vector.shape_cast %65 : vector<8xf32> to vector<8x1xf32>
    %67 = tpu.reciprocal %66 {approx = true} : vector<8x1xf32> -> vector<8x1xf32>
    %68 = vector.broadcast %67 : vector<8x1xf32> to vector<8x8xf32>
    %69 = arith.mulf %64, %68 : vector<8x8xf32>
    %70 = arith.truncf %69 : vector<8x8xf32> to vector<8x8xbf16>
    %cst_27 = arith.constant dense<0.000000e+00> : vector<8x8xf32>
    %71 = tpu.matmul %70, %58, %cst_27 {dimension_numbers = #tpu.dot_dimension_numbers<[1], [0], [0], [1], [0, 0, 1, 1], [], []>} : vector<8x8xbf16>, vector<8x8xbf16>, vector<8x8xf32> -> vector<8x8xf32>
    %72 = arith.truncf %71 : vector<8x8xf32> to vector<8x8xbf16>
    %73 = vector.extract_strided_slice %14 {offsets = [0, 16], sizes = [32, 8], strides = [1, 1]} : vector<32x32xbf16> to vector<32x8xbf16>
    %cst_28 = arith.constant dense<0.000000e+00> : vector<8x32xf32>
    %74 = tpu.matmul %72, %73, %cst_28 {dimension_numbers = #tpu.dot_dimension_numbers<[1], [1], [0], [0], [0, 0, 1, 0], [], []>} : vector<8x8xbf16>, vector<32x8xbf16>, vector<8x32xf32> -> vector<8x32xf32>
    %75 = arith.addf %55, %74 : vector<8x32xf32>
    %76 = vector.extract_strided_slice %11 {offsets = [0, 24], sizes = [8, 8], strides = [1, 1]} : vector<8x32xbf16> to vector<8x8xbf16>
    %77 = vector.extract_strided_slice %12 {offsets = [0, 24], sizes = [8, 8], strides = [1, 1]} : vector<8x32xbf16> to vector<8x8xbf16>
    %78 = vector.extract_strided_slice %13 {offsets = [0, 24], sizes = [8, 8], strides = [1, 1]} : vector<8x32xbf16> to vector<8x8xbf16>
    %cst_29 = arith.constant dense<0.000000e+00> : vector<8x8xf32>
    %79 = tpu.matmul %76, %77, %cst_29 {dimension_numbers = #tpu.dot_dimension_numbers<[1], [1], [0], [0], [0, 0, 1, 0], [], []>} : vector<8x8xbf16>, vector<8x8xbf16>, vector<8x8xf32> -> vector<8x8xf32>
    %cst_30 = arith.constant dense<0xFF800000> : vector<8xf32>
    %80 = vector.multi_reduction <maximumf>, %79, %cst_30 [1] : vector<8x8xf32> to vector<8xf32>
    %81 = vector.shape_cast %80 : vector<8xf32> to vector<8x1xf32>
    %82 = vector.broadcast %81 : vector<8x1xf32> to vector<8x8xf32>
    %83 = arith.subf %79, %82 : vector<8x8xf32>
    %84 = math.exp %83 : vector<8x8xf32>
    %cst_31 = arith.constant dense<0.000000e+00> : vector<8xf32>
    %85 = vector.multi_reduction <add>, %84, %cst_31 [1] : vector<8x8xf32> to vector<8xf32>
    %86 = vector.shape_cast %85 : vector<8xf32> to vector<8x1xf32>
    %87 = tpu.reciprocal %86 {approx = true} : vector<8x1xf32> -> vector<8x1xf32>
    %88 = vector.broadcast %87 : vector<8x1xf32> to vector<8x8xf32>
    %89 = arith.mulf %84, %88 : vector<8x8xf32>
    %90 = arith.truncf %89 : vector<8x8xf32> to vector<8x8xbf16>
    %cst_32 = arith.constant dense<0.000000e+00> : vector<8x8xf32>
    %91 = tpu.matmul %90, %78, %cst_32 {dimension_numbers = #tpu.dot_dimension_numbers<[1], [0], [0], [1], [0, 0, 1, 1], [], []>} : vector<8x8xbf16>, vector<8x8xbf16>, vector<8x8xf32> -> vector<8x8xf32>
    %92 = arith.truncf %91 : vector<8x8xf32> to vector<8x8xbf16>
    %93 = vector.extract_strided_slice %14 {offsets = [0, 24], sizes = [32, 8], strides = [1, 1]} : vector<32x32xbf16> to vector<32x8xbf16>
    %cst_33 = arith.constant dense<0.000000e+00> : vector<8x32xf32>
    %94 = tpu.matmul %92, %93, %cst_33 {dimension_numbers = #tpu.dot_dimension_numbers<[1], [1], [0], [0], [0, 0, 1, 0], [], []>} : vector<8x8xbf16>, vector<32x8xbf16>, vector<8x32xf32> -> vector<8x32xf32>
    %95 = arith.addf %75, %94 : vector<8x32xf32>
    %96 = arith.addf %1, %95 : vector<8x32xf32>
    %cst_34 = arith.constant dense<0.000000e+00> : vector<8xf32>
    %97 = vector.multi_reduction <add>, %96, %cst_34 [1] : vector<8x32xf32> to vector<8xf32>
    %98 = vector.shape_cast %97 : vector<8xf32> to vector<8x1xf32>
    %cst_35 = arith.constant 3.200000e+01 : f32
    %99 = vector.broadcast %cst_35 : f32 to vector<8x1xf32>
    %100 = arith.divf %98, %99 : vector<8x1xf32>
    %101 = vector.broadcast %100 : vector<8x1xf32> to vector<8x32xf32>
    %102 = arith.subf %96, %101 : vector<8x32xf32>
    %103 = arith.mulf %102, %102 : vector<8x32xf32>
    %cst_36 = arith.constant dense<0.000000e+00> : vector<8xf32>
    %104 = vector.multi_reduction <add>, %103, %cst_36 [1] : vector<8x32xf32> to vector<8xf32>
    %105 = vector.shape_cast %104 : vector<8xf32> to vector<8x1xf32>
    %cst_37 = arith.constant 0.0322580636 : f32
    %106 = vector.broadcast %cst_37 : f32 to vector<8x1xf32>
    %107 = arith.mulf %105, %106 : vector<8x1xf32>
    %108 = math.sqrt %107 : vector<8x1xf32>
    %cst_38 = arith.constant 9.99999997E-7 : f32
    %109 = vector.broadcast %cst_38 : f32 to vector<8x1xf32>
    %110 = arith.addf %108, %109 : vector<8x1xf32>
    %111 = tpu.reciprocal %110 {approx = true} : vector<8x1xf32> -> vector<8x1xf32>
    %c0_39 = arith.constant 0 : index
    %c0_40 = arith.constant 0 : index
    %112 = vector.load %arg6[%c0_39, %c0_40] : memref<1x32xf32, #tpu.memory_space<vmem>>, vector<1x32xf32>
    %113 = vector.broadcast %111 : vector<8x1xf32> to vector<8x32xf32>
    %114 = arith.mulf %102, %113 : vector<8x32xf32>
    %115 = vector.broadcast %112 : vector<1x32xf32> to vector<8x32xf32>
    %116 = arith.mulf %115, %114 : vector<8x32xf32>
    %c0_41 = arith.constant 0 : index
    %c0_42 = arith.constant 0 : index
    %117 = vector.load %arg7[%c0_41, %c0_42] : memref<1x32xf32, #tpu.memory_space<vmem>>, vector<1x32xf32>
    %118 = vector.broadcast %117 : vector<1x32xf32> to vector<8x32xf32>
    %119 = arith.addf %116, %118 : vector<8x32xf32>
    %c0_43 = arith.constant 0 : index
    %c0_44 = arith.constant 0 : index
    %c0_45 = arith.constant 0 : index
    %120 = vector.load %arg8[%c0_43, %c0_44, %c0_45] : memref<1x8x32xf32, #tpu.memory_space<vmem>>, vector<1x8x32xf32>
    %121 = vector.shape_cast %120 : vector<1x8x32xf32> to vector<8x32xf32>
    %122 = vector.shape_cast %119 : vector<8x32xf32> to vector<1x8x32xf32>
    tpu.vector_store %arg8[%c0_43, %c0_44, %c0_45], %122 {strides = array<i32>} : memref<1x8x32xf32, #tpu.memory_space<vmem>>, vector<1x8x32xf32>,
    return
  }
  func.func @transform_0(%arg0: i32) -> (i32, i32, i32) {
    %c0_i32 = arith.constant 0 : i32
    %c0_i32_0 = arith.constant 0 : i32
    %c0_i32_1 = arith.constant 0 : i32
    return %arg0, %c0_i32, %c0_i32_0 : i32, i32, i32
  }
  func.func @transform_1(%arg0: i32) -> (i32, i32) {
    %c0_i32 = arith.constant 0 : i32
    %c0_i32_0 = arith.constant 0 : i32
    %c0_i32_1 = arith.constant 0 : i32
    return %c0_i32, %c0_i32_0 : i32, i32
  }
  func.func @transform_2(%arg0: i32) -> (i32, i32) {
    %c0_i32 = arith.constant 0 : i32
    %c0_i32_0 = arith.constant 0 : i32
    %c0_i32_1 = arith.constant 0 : i32
    return %c0_i32, %c0_i32_0 : i32, i32
  }
  func.func @transform_3(%arg0: i32) -> (i32, i32) {
    %c0_i32 = arith.constant 0 : i32
    %c0_i32_0 = arith.constant 0 : i32
    %c0_i32_1 = arith.constant 0 : i32
    return %c0_i32, %c0_i32_0 : i32, i32
  }
  func.func @transform_4(%arg0: i32) -> (i32, i32) {
    %c0_i32 = arith.constant 0 : i32
    %c0_i32_0 = arith.constant 0 : i32
    %c0_i32_1 = arith.constant 0 : i32
    return %c0_i32, %c0_i32_0 : i32, i32
  }
  func.func @transform_5(%arg0: i32) -> (i32, i32) {
    %c0_i32 = arith.constant 0 : i32
    %c0_i32_0 = arith.constant 0 : i32
    %c0_i32_1 = arith.constant 0 : i32
    return %c0_i32, %c0_i32_0 : i32, i32
  }
  func.func @transform_6(%arg0: i32) -> (i32, i32) {
    %c0_i32 = arith.constant 0 : i32
    %c0_i32_0 = arith.constant 0 : i32
    %c0_i32_1 = arith.constant 0 : i32
    return %c0_i32, %c0_i32_0 : i32, i32
  }
  func.func @transform_7(%arg0: i32) -> (i32, i32, i32) {
    %c0_i32 = arith.constant 0 : i32
    %c0_i32_0 = arith.constant 0 : i32
    %c0_i32_1 = arith.constant 0 : i32
    return %arg0, %c0_i32, %c0_i32_0 : i32, i32, i32
  }
}

</mosaic_0001>

<llo_original>
// kernel: tpu_custom_call.1
$region0: #{tpu_custom_call.1}
  #allocation0 [shape = 'u32[]', space=smem, size = 0x4, offset = 0x4, fixed_abs, tag = 'smem constant byte address 0x4 - core index']
  #allocation1 [shape = 'u32[144,128]{1,0:T(1,128)}', space=vmem, size = 0x12000, scoped, tag = 'internal scratch']
  %s0 = inlined_call_operand.hbm [shape: f32[2,8,32], index: 0, kind: input, shape index: {}]
  %s1 = inlined_call_operand.hbm [shape: bf16[32,32], index: 1, kind: input, shape index: {}]
  %s2 = inlined_call_operand.hbm [shape: bf16[32,32], index: 2, kind: input, shape index: {}]
  %s3 = inlined_call_operand.hbm [shape: bf16[32,32], index: 3, kind: input, shape index: {}]
  %s4 = inlined_call_operand.hbm [shape: bf16[32,32], index: 4, kind: input, shape index: {}]
  %s5 = inlined_call_operand.vmem [shape: f32[1,32], index: 5, kind: input, shape index: {}]
  %s6 = inlined_call_operand.vmem [shape: f32[1,32], index: 6, kind: input, shape index: {}]
  %s7 = inlined_call_operand.hbm [shape: f32[2,8,32], index: 7, kind: output, shape index: {}]
  %s8 = sld [smem:[#allocation0]]
  $region81: #{tpu_custom_call.1} parent=0
    _
  %s10 = ssub.s32 1, %s8
  %s11 = scalar_select 0, %s10, %s8
  $region1: #{tpu_custom_call.1} parent=0
    #allocation2 [shape = 'u8[8192]{0}', space=vmem, size = 0x2000, scoped, tag = 'input window, operand 0']
    #allocation3 [shape = 's32[2]{0}', space=sflag, size = 0x8, scoped, tag = 'scoped memory for tpu_custom_call.1']
    #allocation4 [shape = 's32[2]{0}', space=sflag, size = 0x8, scoped, tag = 'scoped memory for tpu_custom_call.1']
    #allocation5 [shape = 'u8[8192]{0}', space=vmem, size = 0x2000, scoped, tag = 'input window, operand 1, single buffered']
    #allocation6 [shape = 's32[1]{0}', space=sflag, size = 0x4, scoped, tag = 'scoped memory for tpu_custom_call.1']
    #allocation7 [shape = 'u8[8192]{0}', space=vmem, size = 0x2000, scoped, tag = 'input window, operand 2, single buffered']
    #allocation8 [shape = 'u8[8192]{0}', space=vmem, size = 0x2000, scoped, tag = 'input window, operand 3, single buffered']
    #allocation9 [shape = 's32[1]{0}', space=sflag, size = 0x4, scoped, tag = 'scoped memory for tpu_custom_call.1']
    #allocation10 [shape = 'u8[8192]{0}', space=vmem, size = 0x2000, scoped, tag = 'input window, operand 4, single buffered']
    #allocation11 [shape = 'u8[8192]{0}', space=vmem, size = 0x2000, scoped, tag = 'output window, operand 0']
    %12 = vsyncpa [#allocation3], 0
    %s13 = scalar_lea.sflag [#allocation3], 1
    %14 = vsyncpa %s13, 0
    %15 = vsyncpa [#allocation6], 0
    %16 = vsyncpa [#allocation9], 0
    %17 = vsyncpa [#allocation4], 0
    %s18 = scalar_lea.sflag [#allocation4], 1
    %19 = vsyncpa %s18, 0
    loop: start=0, step=1, limit=4
    $region2: #{tpu_custom_call.1} parent=1 // loop_pre_header
      _
    $region3: #{tpu_custom_call.1} parent=1 // loop_header
      %s21 = sphi 0, %s25
      %p22 = scmp.ge.s32.totalorder %s21, 4
      %s31 = sphi 0, %s33
      %s34 = sphi 0, %s31
      %s35 = sphi 0, %s34
      %s51 = sphi 0, %s35
      %s55 = sphi 0, %s55
      %s57 = sphi 0, %s55
      %s58 = sphi 0, %s57
      %s72 = sphi 0, %s58
      %s76 = sphi 0, %s76
      %s78 = sphi 0, %s76
      %s79 = sphi 0, %s78
      %s93 = sphi 0, %s79
      %s97 = sphi 0, %s97
      %s99 = sphi 0, %s97
      %s100 = sphi 0, %s99
      %s114 = sphi 0, %s100
      %s118 = sphi 0, %s118
      %s120 = sphi 0, %s118
      %s121 = sphi 0, %s120
      %s135 = sphi 0, %s121
      %s139 = sphi 0, %s139
      %s141 = sphi 0, %s139
      %s142 = sphi 0, %s141
      %s156 = sphi 0, %s142
      %s160 = sphi 0, %s160
      %s162 = sphi 0, %s160
      %s163 = sphi 0, %s162
      %s177 = sphi 0, %s163
      %s183 = sphi 0, %s185
      %s186 = sphi 0, %s183
      %s187 = sphi 0, %s186
      %s203 = sphi 0, %s187
    $region4: #{tpu_custom_call.1} parent=1 // loop_header_branch
      %24 = sbr.rel (%p22) target = $region8
    $region5: #{tpu_custom_call.1} parent=1 // loop_body
      %s26 = ssub.s32 %s21, 1
      %s27 = ssub.s32 %s21, 2
      %s28 = sadd.s32 %s21, 1
      %s29 = ssub.s32 %s21, %s28
      %p30 = scmp.eq.s32.totalorder %s29, 0
      %s32 = sadd.s32 %s31, 1
      %s33 = scalar_select %p30, %s31, %s32
      %p36 = pneg %p30
      %p37 = scmp.eq.s32.totalorder %s21, 1
      %p38 = por %p36, %p37
      %p39 = scmp.ne.s32.totalorder %s31, %s34
      %p40 = scmp.eq.s32.totalorder %s21, 0
      %p41 = por %p39, %p40
      %p42 = scmp.ne.s32.totalorder %s31, %s34
      %p43 = scmp.eq.s32.totalorder %s26, 1
      %p44 = por %p42, %p43
      %p45 = scmp.ne.s32.totalorder %s34, %s35
      %p46 = scmp.eq.s32.totalorder %s26, 0
      %p47 = por %p45, %p46
      %p48 = scmp.ne.s32.totalorder %s34, %s35
      %p49 = scmp.eq.s32.totalorder %s27, 1
      %p50 = por %p48, %p49
      %p52 = scmp.ne.s32.totalorder %s35, %s51
      %p53 = scmp.eq.s32.totalorder %s27, 0
      %p54 = por %p52, %p53
      %s56 = sadd.s32 %s55, 1
      %p59 = scmp.eq.s32.totalorder %s21, 1
      %p60 = scmp.ne.s32.totalorder %s55, %s57
      %p61 = scmp.eq.s32.totalorder %s21, 0
      %p62 = por %p60, %p61
      %p63 = scmp.ne.s32.totalorder %s55, %s57
      %p64 = scmp.eq.s32.totalorder %s26, 1
      %p65 = por %p63, %p64
      %p66 = scmp.ne.s32.totalorder %s57, %s58
      %p67 = scmp.eq.s32.totalorder %s26, 0
      %p68 = por %p66, %p67
      %p69 = scmp.ne.s32.totalorder %s57, %s58
      %p70 = scmp.eq.s32.totalorder %s27, 1
      %p71 = por %p69, %p70
      %p73 = scmp.ne.s32.totalorder %s58, %s72
      %p74 = scmp.eq.s32.totalorder %s27, 0
      %p75 = por %p73, %p74
      %s77 = sadd.s32 %s76, 1
      %p80 = scmp.eq.s32.totalorder %s21, 1
      %p81 = scmp.ne.s32.totalorder %s76, %s78
      %p82 = scmp.eq.s32.totalorder %s21, 0
      %p83 = por %p81, %p82
      %p84 = scmp.ne.s32.totalorder %s76, %s78
      %p85 = scmp.eq.s32.totalorder %s26, 1
      %p86 = por %p84, %p85
      %p87 = scmp.ne.s32.totalorder %s78, %s79
      %p88 = scmp.eq.s32.totalorder %s26, 0
      %p89 = por %p87, %p88
      %p90 = scmp.ne.s32.totalorder %s78, %s79
      %p91 = scmp.eq.s32.totalorder %s27, 1
      %p92 = por %p90, %p91
      %p94 = scmp.ne.s32.totalorder %s79, %s93
      %p95 = scmp.eq.s32.totalorder %s27, 0
      %p96 = por %p94, %p95
      %s98 = sadd.s32 %s97, 1
      %p101 = scmp.eq.s32.totalorder %s21, 1
      %p102 = scmp.ne.s32.totalorder %s97, %s99
      %p103 = scmp.eq.s32.totalorder %s21, 0
      %p104 = por %p102, %p103
      %p105 = scmp.ne.s32.totalorder %s97, %s99
      %p106 = scmp.eq.s32.totalorder %s26, 1
      %p107 = por %p105, %p106
      %p108 = scmp.ne.s32.totalorder %s99, %s100
      %p109 = scmp.eq.s32.totalorder %s26, 0
      %p110 = por %p108, %p109
      %p111 = scmp.ne.s32.totalorder %s99, %s100
      %p112 = scmp.eq.s32.totalorder %s27, 1
      %p113 = por %p111, %p112
      %p115 = scmp.ne.s32.totalorder %s100, %s114
      %p116 = scmp.eq.s32.totalorder %s27, 0
      %p117 = por %p115, %p116
      %s119 = sadd.s32 %s118, 1
      %p122 = scmp.eq.s32.totalorder %s21, 1
      %p123 = scmp.ne.s32.totalorder %s118, %s120
      %p124 = scmp.eq.s32.totalorder %s21, 0
      %p125 = por %p123, %p124
      %p126 = scmp.ne.s32.totalorder %s118, %s120
      %p127 = scmp.eq.s32.totalorder %s26, 1
      %p128 = por %p126, %p127
      %p129 = scmp.ne.s32.totalorder %s120, %s121
      %p130 = scmp.eq.s32.totalorder %s26, 0
      %p131 = por %p129, %p130
      %p132 = scmp.ne.s32.totalorder %s120, %s121
      %p133 = scmp.eq.s32.totalorder %s27, 1
      %p134 = por %p132, %p133
      %p136 = scmp.ne.s32.totalorder %s121, %s135
      %p137 = scmp.eq.s32.totalorder %s27, 0
      %p138 = por %p136, %p137
      %s140 = sadd.s32 %s139, 1
      %p143 = scmp.eq.s32.totalorder %s21, 1
      %p144 = scmp.ne.s32.totalorder %s139, %s141
      %p145 = scmp.eq.s32.totalorder %s21, 0
      %p146 = por %p144, %p145
      %p147 = scmp.ne.s32.totalorder %s139, %s141
      %p148 = scmp.eq.s32.totalorder %s26, 1
      %p149 = por %p147, %p148
      %p150 = scmp.ne.s32.totalorder %s141, %s142
      %p151 = scmp.eq.s32.totalorder %s26, 0
      %p152 = por %p150, %p151
      %p153 = scmp.ne.s32.totalorder %s141, %s142
      %p154 = scmp.eq.s32.totalorder %s27, 1
      %p155 = por %p153, %p154
      %p157 = scmp.ne.s32.totalorder %s142, %s156
      %p158 = scmp.eq.s32.totalorder %s27, 0
      %p159 = por %p157, %p158
      %s161 = sadd.s32 %s160, 1
      %p164 = scmp.eq.s32.totalorder %s21, 1
      %p165 = scmp.ne.s32.totalorder %s160, %s162
      %p166 = scmp.eq.s32.totalorder %s21, 0
      %p167 = por %p165, %p166
      %p168 = scmp.ne.s32.totalorder %s160, %s162
      %p169 = scmp.eq.s32.totalorder %s26, 1
      %p170 = por %p168, %p169
      %p171 = scmp.ne.s32.totalorder %s162, %s163
      %p172 = scmp.eq.s32.totalorder %s26, 0
      %p173 = por %p171, %p172
      %p174 = scmp.ne.s32.totalorder %s162, %s163
      %p175 = scmp.eq.s32.totalorder %s27, 1
      %p176 = por %p174, %p175
      %p178 = scmp.ne.s32.totalorder %s163, %s177
      %p179 = scmp.eq.s32.totalorder %s27, 0
      %p180 = por %p178, %p179
      %s181 = ssub.s32 %s21, %s28
      %p182 = scmp.eq.s32.totalorder %s181, 0
      %s184 = sadd.s32 %s183, 1
      %s185 = scalar_select %p182, %s183, %s184
      %p188 = pneg %p182
      %p189 = scmp.eq.s32.totalorder %s21, 1
      %p190 = por %p188, %p189
      %p191 = scmp.ne.s32.totalorder %s183, %s186
      %p192 = scmp.eq.s32.totalorder %s21, 0
      %p193 = por %p191, %p192
      %p194 = scmp.ne.s32.totalorder %s183, %s186
      %p195 = scmp.eq.s32.totalorder %s26, 1
      %p196 = por %p194, %p195
      %p197 = scmp.ne.s32.totalorder %s186, %s187
      %p198 = scmp.eq.s32.totalorder %s26, 0
      %p199 = por %p197, %p198
      %p200 = scmp.ne.s32.totalorder %s186, %s187
      %p201 = scmp.eq.s32.totalorder %s27, 1
      %p202 = por %p200, %p201
      %p204 = scmp.ne.s32.totalorder %s187, %s203
      %p205 = scmp.eq.s32.totalorder %s27, 0
      %p206 = por %p204, %p205
      %p207 = scmp.le.s32.totalorder 1, %s21
      %p208 = scmp.lt.s32.totalorder %s21, 3
      %p209 = pnand %p207, %p208
      %p210 = pneg %p209
      // Predicated region
      $region9: #{tpu_custom_call.1} parent=5 // pred_check
        _
      $region10: #{tpu_custom_call.1} parent=5 // pred_check_branch
        %212 = sbr.rel (%p209) target = $region12
      $region11: #{tpu_custom_call.1} parent=5 // pred_region
        %s213 = ssub.s32 %s21, 1
        // Predicated region
        $region13: #{tpu_custom_call.1} parent=11 // pred_check
          %p214 = pneg %p68
        $region14: #{tpu_custom_call.1} parent=11 // pred_check_branch
          %216 = sbr.rel (%p214) target = $region16
        $region15: #{tpu_custom_call.1} parent=11 // pred_region
          %s218 = ssub.s32 256, 256
          %219 = vsyncadd [#allocation6], %s218
          %s220 = sshll.u32 [#allocation5], 4
          %s221 = int_to_ptr.vmem [resolvable:$true] %s220
          %226 = dma.hbm_to_vmem [thread:$0]  %s1, 256, %s221, [#allocation6], 64, 64, 4
        $region16: #{tpu_custom_call.1} parent=11 // pred_fallthru
          _
        // Predicated region
        $region17: #{tpu_custom_call.1} parent=11 // pred_check
          %p227 = pneg %p89
        $region18: #{tpu_custom_call.1} parent=11 // pred_check_branch
          %229 = sbr.rel (%p227) target = $region20
        $region19: #{tpu_custom_call.1} parent=11 // pred_region
          %s231 = ssub.s32 256, 256
          %232 = vsyncadd [#allocation6], %s231
          %s233 = sshll.u32 [#allocation7], 4
          %s234 = int_to_ptr.vmem [resolvable:$true] %s233
          %239 = dma.hbm_to_vmem [thread:$0]  %s2, 256, %s234, [#allocation6], 64, 64, 4
        $region20: #{tpu_custom_call.1} parent=11 // pred_fallthru
          _
        // Predicated region
        $region21: #{tpu_custom_call.1} parent=11 // pred_check
          %p240 = pneg %p110
        $region22: #{tpu_custom_call.1} parent=11 // pred_check_branch
          %242 = sbr.rel (%p240) target = $region24
        $region23: #{tpu_custom_call.1} parent=11 // pred_region
          %s244 = ssub.s32 256, 256
          %245 = vsyncadd [#allocation9], %s244
          %s246 = sshll.u32 [#allocation8], 4
          %s247 = int_to_ptr.vmem [resolvable:$true] %s246
          %252 = dma.hbm_to_vmem [thread:$0]  %s3, 256, %s247, [#allocation9], 64, 64, 4
        $region24: #{tpu_custom_call.1} parent=11 // pred_fallthru
          _
        // Predicated region
        $region25: #{tpu_custom_call.1} parent=11 // pred_check
          %p253 = pneg %p131
        $region26: #{tpu_custom_call.1} parent=11 // pred_check_branch
          %255 = sbr.rel (%p253) target = $region28
        $region27: #{tpu_custom_call.1} parent=11 // pred_region
          %s257 = ssub.s32 256, 256
          %258 = vsyncadd [#allocation9], %s257
          %s259 = sshll.u32 [#allocation10], 4
          %s260 = int_to_ptr.vmem [resolvable:$true] %s259
          %265 = dma.hbm_to_vmem [thread:$0]  %s4, 256, %s260, [#allocation9], 64, 64, 4
        $region28: #{tpu_custom_call.1} parent=11 // pred_fallthru
          _
        // Predicated region
        $region29: #{tpu_custom_call.1} parent=11 // pred_check
          %p266 = pneg %p152
        $region30: #{tpu_custom_call.1} parent=11 // pred_check_branch
          %268 = sbr.rel (%p266) target = $region32
        $region31: #{tpu_custom_call.1} parent=11 // pred_region
          _
        $region32: #{tpu_custom_call.1} parent=11 // pred_fallthru
          _
        // Predicated region
        $region33: #{tpu_custom_call.1} parent=11 // pred_check
          %p269 = pneg %p173
        $region34: #{tpu_custom_call.1} parent=11 // pred_check_branch
          %271 = sbr.rel (%p269) target = $region36
        $region35: #{tpu_custom_call.1} parent=11 // pred_region
          _
        $region36: #{tpu_custom_call.1} parent=11 // pred_fallthru
          _
      $region12: #{tpu_custom_call.1} parent=5 // pred_fallthru
        _
      %p272 = scmp.lt.s32.totalorder %s21, 2
      // Predicated region
      $region37: #{tpu_custom_call.1} parent=5 // pred_check
        %p273 = pneg %p272
      $region38: #{tpu_custom_call.1} parent=5 // pred_check_branch
        %275 = sbr.rel (%p273) target = $region40
      $region39: #{tpu_custom_call.1} parent=5 // pred_region
        // Predicated region
        $region41: #{tpu_custom_call.1} parent=39 // pred_check
          %p276 = pneg %p41
        $region42: #{tpu_custom_call.1} parent=39 // pred_check_branch
          %278 = sbr.rel (%p276) target = $region44
        $region43: #{tpu_custom_call.1} parent=39 // pred_region
          %s279 = sand.u32 %s31, 1
          %s280 = scalar_lea.sflag [#allocation3], %s279
          %s281 = sand.u32 %s31, 1
          %s282 = smul.addr %s281, 8
          %s283 = scalar_lea.vmem [#allocation2], %s282
          %s285 = ssub.s32 128, 128
          %286 = vsyncadd %s280, %s285
          %s287 = smul.addr %s21, 128
          %s288 = scalar_lea.hbm %s0, %s287
          %s290 = sshll.u32 %s283, 4
          %s291 = int_to_ptr.vmem [resolvable:$true] %s290
          %293 = dma.hbm_to_vmem [thread:$0]  %s288, 128, %s291, %s280
        $region44: #{tpu_custom_call.1} parent=39 // pred_fallthru
          _
      $region40: #{tpu_custom_call.1} parent=5 // pred_fallthru
        _
      %p294 = scmp.le.s32.totalorder 1, %s21
      %p295 = scmp.lt.s32.totalorder %s21, 3
      %p296 = pnand %p294, %p295
      %p297 = pneg %p296
      // Predicated region
      $region45: #{tpu_custom_call.1} parent=5 // pred_check
        _
      $region46: #{tpu_custom_call.1} parent=5 // pred_check_branch
        %299 = sbr.rel (%p296) target = $region48
      $region47: #{tpu_custom_call.1} parent=5 // pred_region
        %s300 = ssub.s32 %s21, 1
        %s301 = sand.u32 %s34, 1
        %s302 = scalar_lea.sflag [#allocation3], %s301
        %s303 = sand.u32 %s34, 1
        %s304 = smul.addr %s303, 8
        %s305 = scalar_lea.vmem [#allocation2], %s304
        // Predicated region
        $region49: #{tpu_custom_call.1} parent=47 // pred_check
          %p306 = pneg %p47
        $region50: #{tpu_custom_call.1} parent=47 // pred_check_branch
          %308 = sbr.rel (%p306) target = $region52
        $region51: #{tpu_custom_call.1} parent=47 // pred_region
          %309 = dma.done %s302, 128
        $region52: #{tpu_custom_call.1} parent=47 // pred_fallthru
          _
        // Predicated region
        $region53: #{tpu_custom_call.1} parent=47 // pred_check
          %p310 = pneg %p68
        $region54: #{tpu_custom_call.1} parent=47 // pred_check_branch
          %312 = sbr.rel (%p310) target = $region56
        $region55: #{tpu_custom_call.1} parent=47 // pred_region
          %313 = dma.done [#allocation6], 256
        $region56: #{tpu_custom_call.1} parent=47 // pred_fallthru
          _
        // Predicated region
        $region57: #{tpu_custom_call.1} parent=47 // pred_check
          %p314 = pneg %p89
        $region58: #{tpu_custom_call.1} parent=47 // pred_check_branch
          %316 = sbr.rel (%p314) target = $region60
        $region59: #{tpu_custom_call.1} parent=47 // pred_region
          %317 = dma.done [#allocation6], 256
        $region60: #{tpu_custom_call.1} parent=47 // pred_fallthru
          _
        // Predicated region
        $region61: #{tpu_custom_call.1} parent=47 // pred_check
          %p318 = pneg %p110
        $region62: #{tpu_custom_call.1} parent=47 // pred_check_branch
          %320 = sbr.rel (%p318) target = $region64
        $region63: #{tpu_custom_call.1} parent=47 // pred_region
          %321 = dma.done [#allocation9], 256
        $region64: #{tpu_custom_call.1} parent=47 // pred_fallthru
          _
        // Predicated region
        $region65: #{tpu_custom_call.1} parent=47 // pred_check
          %p322 = pneg %p131
        $region66: #{tpu_custom_call.1} parent=47 // pred_check_branch
          %324 = sbr.rel (%p322) target = $region68
        $region67: #{tpu_custom_call.1} parent=47 // pred_region
          %325 = dma.done [#allocation9], 256
        $region68: #{tpu_custom_call.1} parent=47 // pred_fallthru
          _
        %s326 = sand.u32 %s34, 1
        %s327 = scalar_lea.sflag [#allocation3], %s326
        %s328 = sand.u32 %s34, 1
        %s329 = smul.addr %s328, 8
        %s330 = scalar_lea.vmem [#allocation2], %s329
        %p331 = pneg %p47
        %p332 = pneg %p44
        %p333 = pneg %p68
        %p334 = pneg %p65
        %p335 = pneg %p89
        %p336 = pneg %p86
        %p337 = pneg %p110
        %p338 = pneg %p107
        %p339 = pneg %p131
        %p340 = pneg %p128
        %p341 = pneg %p152
        %p342 = pneg %p149
        %p343 = pneg %p173
        %p344 = pneg %p170
        %p345 = pneg %p199
        %p346 = pneg %p196
        %s347 = sand.u32 %s186, 1
        %s348 = scalar_lea.sflag [#allocation4], %s347
        %s349 = sand.u32 %s186, 1
        %s350 = smul.addr %s349, 8
        %s351 = scalar_lea.vmem [#allocation11], %s350
        %v353 = vld [vmem:[%s305] sm:$0xff]
        %v354 = vpack.c.bf16 %v353, %v353
        %v355 = vld [vmem:[#allocation5] sm:$0xf]
        %v356 = vld [vmem:[#allocation5 + $0x4] sm:$0xf]
        %v357 = vld [vmem:[#allocation5 + $0x8] sm:$0xf]
        %v358 = vld [vmem:[#allocation5 + $0xc] sm:$0xf]
        %v363 = vunpack.c.l.b16 %v355
        %v364 = vunpack.c.l.b16 %v356
        %v365 = vunpack.c.l.b16 %v357
        %v366 = vunpack.c.l.b16 %v358
        %v367 = vpack.c.b16 %v364, %v363
        %v368 = vpack.c.b16 %v366, %v365
        %vm369 = vcmask 261120
        %v371 = vsel %vm369, %v354, 0
        %v374 = vsel %vm369, %v367, 0
        %v377 = vsel %vm369, %v368, 0
        %379 = vmatprep.subr.bf16.mxu0 0
        %380 = vmatpush1.bf16.xpose.msra.mxu0 %v374
        %381 = vmatprep.subr.bf16.mxu0 0
        %382 = vmatpush1.bf16.xpose.msra.mxu0 %v377
        %383 = vmatprep.subr.bf16.mxu0 0
        %384 = vmatpush1.bf16.xpose.msra.mxu0 0
        %385 = vmatprep.subr.bf16.mxu0 0
        %386 = vmatpush1.bf16.xpose.msra.mxu0 0
        %387 = vmatprep.subr.bf16.mxu0 0
        %388 = vmatpush1.bf16.xpose.msra.mxu0 0
        %389 = vmatprep.subr.bf16.mxu0 0
        %390 = vmatpush1.bf16.xpose.msra.mxu0 0
        %391 = vmatprep.subr.bf16.mxu0 0
        %392 = vmatpush1.bf16.xpose.msra.mxu0 0
        %393 = vmatprep.subr.bf16.mxu0 0
        %394 = vmatpush1.bf16.xpose.msra.mxu0 0
        %395 = vmatprep.subr.bf16.mxu0 0
        %396 = vmatpush1.bf16.xpose.msra.mxu0 0
        %397 = vmatprep.subr.bf16.mxu0 0
        %398 = vmatpush1.bf16.xpose.msra.mxu0 0
        %399 = vmatprep.subr.bf16.mxu0 0
        %400 = vmatpush1.bf16.xpose.msra.mxu0 0
        %401 = vmatprep.subr.bf16.mxu0 0
        %402 = vmatpush1.bf16.xpose.msra.mxu0 0
        %403 = vmatprep.subr.bf16.mxu0 0
        %404 = vmatpush1.bf16.xpose.msra.mxu0 0
        %405 = vmatprep.subr.bf16.mxu0 0
        %406 = vmatpush1.bf16.xpose.msra.mxu0 0
        %407 = vmatprep.subr.bf16.mxu0 0
        %408 = vmatpush1.bf16.xpose.msra.mxu0 0
        %409 = vmatprep.subr.bf16.mxu0 0
        %410 = vmatpush1.bf16.xpose.msra.mxu0 0
        %411 = vmatprep.mubr.bf16.mxu0 0
        %412 = vmatmul.mubr.bf16.gmra.mrb[0].mxu0 %v371
        %v413 = vpop.f32.mrb[0].mxu0
        %v414 = vadd.f32 0.0, %v413
        %v415 = vpop.f32.mrb[0].mxu0
        %v416 = vpop.f32.mrb[0].mxu0
        %v417 = vpop.f32.mrb[0].mxu0
        %418 = vdwg.mxu0
        %v419 = vld [vmem:[#allocation7] sm:$0xf]
        %v420 = vld [vmem:[#allocation7 + $0x4] sm:$0xf]
        %v421 = vld [vmem:[#allocation7 + $0x8] sm:$0xf]
        %v422 = vld [vmem:[#allocation7 + $0xc] sm:$0xf]
        %v427 = vunpack.c.l.b16 %v419
        %v428 = vunpack.c.l.b16 %v420
        %v429 = vunpack.c.l.b16 %v421
        %v430 = vunpack.c.l.b16 %v422
        %v431 = vpack.c.b16 %v428, %v427
        %v432 = vpack.c.b16 %v430, %v429
        %v434 = vsel %vm369, %v431, 0
        %v437 = vsel %vm369, %v432, 0
        %439 = vmatprep.subr.bf16.mxu0 0
        %440 = vmatpush1.bf16.xpose.msra.mxu0 %v434
        %441 = vmatprep.subr.bf16.mxu0 0
        %442 = vmatpush1.bf16.xpose.msra.mxu0 %v437
        %443 = vmatprep.subr.bf16.mxu0 0
        %444 = vmatpush1.bf16.xpose.msra.mxu0 0
        %445 = vmatprep.subr.bf16.mxu0 0
        %446 = vmatpush1.bf16.xpose.msra.mxu0 0
        %447 = vmatprep.subr.bf16.mxu0 0
        %448 = vmatpush1.bf16.xpose.msra.mxu0 0
        %449 = vmatprep.subr.bf16.mxu0 0
        %450 = vmatpush1.bf16.xpose.msra.mxu0 0
        %451 = vmatprep.subr.bf16.mxu0 0
        %452 = vmatpush1.bf16.xpose.msra.mxu0 0
        %453 = vmatprep.subr.bf16.mxu0 0
        %454 = vmatpush1.bf16.xpose.msra.mxu0 0
        %455 = vmatprep.subr.bf16.mxu0 0
        %456 = vmatpush1.bf16.xpose.msra.mxu0 0
        %457 = vmatprep.subr.bf16.mxu0 0
        %458 = vmatpush1.bf16.xpose.msra.mxu0 0
        %459 = vmatprep.subr.bf16.mxu0 0
        %460 = vmatpush1.bf16.xpose.msra.mxu0 0
        %461 = vmatprep.subr.bf16.mxu0 0
        %462 = vmatpush1.bf16.xpose.msra.mxu0 0
        %463 = vmatprep.subr.bf16.mxu0 0
        %464 = vmatpush1.bf16.xpose.msra.mxu0 0
        %465 = vmatprep.subr.bf16.mxu0 0
        %466 = vmatpush1.bf16.xpose.msra.mxu0 0
        %467 = vmatprep.subr.bf16.mxu0 0
        %468 = vmatpush1.bf16.xpose.msra.mxu0 0
        %469 = vmatprep.subr.bf16.mxu0 0
        %470 = vmatpush1.bf16.xpose.msra.mxu0 0
        %471 = vmatprep.mubr.bf16.mxu0 0
        %472 = vmatmul.mubr.bf16.gmra.mrb[0].mxu0 %v371
        %v473 = vpop.f32.mrb[0].mxu0
        %v474 = vadd.f32 0.0, %v473
        %v475 = vpop.f32.mrb[0].mxu0
        %v476 = vpop.f32.mrb[0].mxu0
        %v477 = vpop.f32.mrb[0].mxu0
        %478 = vdwg.mxu0
        %v479 = vld [vmem:[#allocation8] sm:$0xf]
        %v480 = vld [vmem:[#allocation8 + $0x4] sm:$0xf]
        %v481 = vld [vmem:[#allocation8 + $0x8] sm:$0xf]
        %v482 = vld [vmem:[#allocation8 + $0xc] sm:$0xf]
        %v487 = vunpack.c.l.b16 %v479
        %v488 = vunpack.c.l.b16 %v480
        %v489 = vunpack.c.l.b16 %v481
        %v490 = vunpack.c.l.b16 %v482
        %v491 = vpack.c.b16 %v488, %v487
        %v492 = vpack.c.b16 %v490, %v489
        %v494 = vsel %vm369, %v491, 0
        %v497 = vsel %vm369, %v492, 0
        %499 = vmatprep.subr.bf16.mxu0 0
        %500 = vmatpush1.bf16.xpose.msra.mxu0 %v494
        %501 = vmatprep.subr.bf16.mxu0 0
        %502 = vmatpush1.bf16.xpose.msra.mxu0 %v497
        %503 = vmatprep.subr.bf16.mxu0 0
        %504 = vmatpush1.bf16.xpose.msra.mxu0 0
        %505 = vmatprep.subr.bf16.mxu0 0
        %506 = vmatpush1.bf16.xpose.msra.mxu0 0
        %507 = vmatprep.subr.bf16.mxu0 0
        %508 = vmatpush1.bf16.xpose.msra.mxu0 0
        %509 = vmatprep.subr.bf16.mxu0 0
        %510 = vmatpush1.bf16.xpose.msra.mxu0 0
        %511 = vmatprep.subr.bf16.mxu0 0
        %512 = vmatpush1.bf16.xpose.msra.mxu0 0
        %513 = vmatprep.subr.bf16.mxu0 0
        %514 = vmatpush1.bf16.xpose.msra.mxu0 0
        %515 = vmatprep.subr.bf16.mxu0 0
        %516 = vmatpush1.bf16.xpose.msra.mxu0 0
        %517 = vmatprep.subr.bf16.mxu0 0
        %518 = vmatpush1.bf16.xpose.msra.mxu0 0
        %519 = vmatprep.subr.bf16.mxu0 0
        %520 = vmatpush1.bf16.xpose.msra.mxu0 0
        %521 = vmatprep.subr.bf16.mxu0 0
        %522 = vmatpush1.bf16.xpose.msra.mxu0 0
        %523 = vmatprep.subr.bf16.mxu0 0
        %524 = vmatpush1.bf16.xpose.msra.mxu0 0
        %525 = vmatprep.subr.bf16.mxu0 0
        %526 = vmatpush1.bf16.xpose.msra.mxu0 0
        %527 = vmatprep.subr.bf16.mxu0 0
        %528 = vmatpush1.bf16.xpose.msra.mxu0 0
        %529 = vmatprep.subr.bf16.mxu0 0
        %530 = vmatpush1.bf16.xpose.msra.mxu0 0
        %531 = vmatprep.mubr.bf16.mxu0 0
        %532 = vmatmul.mubr.bf16.gmra.mrb[0].mxu0 %v371
        %v533 = vpop.f32.mrb[0].mxu0
        %v534 = vadd.f32 0.0, %v533
        %v535 = vpop.f32.mrb[0].mxu0
        %v536 = vpop.f32.mrb[0].mxu0
        %v537 = vpop.f32.mrb[0].mxu0
        %538 = vdwg.mxu0
        %v539 = vmul.f32 %v414, 0.17677669
        %v540 = vpack.c.bf16 %v539, %v539
        %v541 = vpack.c.bf16 %v474, %v474
        %v542 = vpack.c.bf16 %v534, %v534
        %v543 = vld [vmem:[#allocation10] sm:$0xf]
        %v544 = vld [vmem:[#allocation10 + $0x4] sm:$0xf]
        %v545 = vld [vmem:[#allocation10 + $0x8] sm:$0xf]
        %v546 = vld [vmem:[#allocation10 + $0xc] sm:$0xf]
        %vm547 = vcmask 64512
        %v549 = vsel %vm547, %v540, 0
        %v552 = vsel %vm547, %v541, 0
        %554 = vmatprep.subr.bf16.mxu0 0
        %555 = vmatpush1.bf16.xpose.msra.mxu0 %v552
        %556 = vmatprep.subr.bf16.mxu0 0
        %557 = vmatpush1.bf16.xpose.msra.mxu0 0
        %558 = vmatprep.subr.bf16.mxu0 0
        %559 = vmatpush1.bf16.xpose.msra.mxu0 0
        %560 = vmatprep.subr.bf16.mxu0 0
        %561 = vmatpush1.bf16.xpose.msra.mxu0 0
        %562 = vmatprep.subr.bf16.mxu0 0
        %563 = vmatpush1.bf16.xpose.msra.mxu0 0
        %564 = vmatprep.subr.bf16.mxu0 0
        %565 = vmatpush1.bf16.xpose.msra.mxu0 0
        %566 = vmatprep.subr.bf16.mxu0 0
        %567 = vmatpush1.bf16.xpose.msra.mxu0 0
        %568 = vmatprep.subr.bf16.mxu0 0
        %569 = vmatpush1.bf16.xpose.msra.mxu0 0
        %570 = vmatprep.subr.bf16.mxu0 0
        %571 = vmatpush1.bf16.xpose.msra.mxu0 0
        %572 = vmatprep.subr.bf16.mxu0 0
        %573 = vmatpush1.bf16.xpose.msra.mxu0 0
        %574 = vmatprep.subr.bf16.mxu0 0
        %575 = vmatpush1.bf16.xpose.msra.mxu0 0
        %576 = vmatprep.subr.bf16.mxu0 0
        %577 = vmatpush1.bf16.xpose.msra.mxu0 0
        %578 = vmatprep.subr.bf16.mxu0 0
        %579 = vmatpush1.bf16.xpose.msra.mxu0 0
        %580 = vmatprep.subr.bf16.mxu0 0
        %581 = vmatpush1.bf16.xpose.msra.mxu0 0
        %582 = vmatprep.subr.bf16.mxu0 0
        %583 = vmatpush1.bf16.xpose.msra.mxu0 0
        %584 = vmatprep.subr.bf16.mxu0 0
        %585 = vmatpush1.bf16.xpose.msra.mxu0 0
        %586 = vmatprep.mubr.bf16.mxu0 0
        %587 = vmatmul.mubr.bf16.gmra.mrb[0].mxu0 %v549
        %v588 = vpop.f32.mrb[0].mxu0
        %v589 = vadd.f32 0.0, %v588
        %v590 = vpop.f32.mrb[0].mxu0
        %v591 = vpop.f32.mrb[0].mxu0
        %v592 = vpop.f32.mrb[0].mxu0
        %593 = vdwg.mxu0
        %v594 = vsel %vm547, %v589, -inf
        %595 = vmax.xlane.f32.xlu0 %v594
        %v596 = vpop.xlane.xlu0 %595
        %v597 = vsub.f32 %v589, %v596
        %v598 = vmul.f32 %v597, 1.442695
        %v599 = vpow.pop %v598
        %v600 = vsel %vm547, %v599, 0.0
        %601 = vadd.xlane.f32.xlu0 %v600
        %v602 = vpop.xlane.xlu0 %601
        %v603 = vrcp.pop %v602
        %v604 = vmul.f32 %v599, %v603
        %v605 = vpack.c.bf16 %v604, %v604
        %v607 = vsel %vm547, %v605, 0
        %vm609 = vcmask 1043456
        %v611 = vsel %vm609, %v542, 0
        %613 = vmatprep.subr.bf16.mxu0 0
        %614 = vmatpush1.bf16.msra.mxu0 %v611
        %615 = vmatprep.subr.bf16.mxu0 0
        %616 = vmatpush1.bf16.msra.mxu0 0
        %617 = vmatprep.subr.bf16.mxu0 0
        %618 = vmatpush1.bf16.msra.mxu0 0
        %619 = vmatprep.subr.bf16.mxu0 0
        %620 = vmatpush1.bf16.msra.mxu0 0
        %621 = vmatprep.subr.bf16.mxu0 0
        %622 = vmatpush1.bf16.msra.mxu0 0
        %623 = vmatprep.subr.bf16.mxu0 0
        %624 = vmatpush1.bf16.msra.mxu0 0
        %625 = vmatprep.subr.bf16.mxu0 0
        %626 = vmatpush1.bf16.msra.mxu0 0
        %627 = vmatprep.subr.bf16.mxu0 0
        %628 = vmatpush1.bf16.msra.mxu0 0
        %629 = vmatprep.subr.bf16.mxu0 0
        %630 = vmatpush1.bf16.msra.mxu0 0
        %631 = vmatprep.subr.bf16.mxu0 0
        %632 = vmatpush1.bf16.msra.mxu0 0
        %633 = vmatprep.subr.bf16.mxu0 0
        %634 = vmatpush1.bf16.msra.mxu0 0
        %635 = vmatprep.subr.bf16.mxu0 0
        %636 = vmatpush1.bf16.msra.mxu0 0
        %637 = vmatprep.subr.bf16.mxu0 0
        %638 = vmatpush1.bf16.msra.mxu0 0
        %639 = vmatprep.subr.bf16.mxu0 0
        %640 = vmatpush1.bf16.msra.mxu0 0
        %641 = vmatprep.subr.bf16.mxu0 0
        %642 = vmatpush1.bf16.msra.mxu0 0
        %643 = vmatprep.subr.bf16.mxu0 0
        %644 = vmatpush1.bf16.msra.mxu0 0
        %645 = vmatprep.mubr.bf16.mxu0 0
        %646 = vmatmul.mubr.bf16.gmra.mrb[0].mxu0 %v607
        %v647 = vpop.f32.mrb[0].mxu0
        %v648 = vadd.f32 0.0, %v647
        %v649 = vpop.f32.mrb[0].mxu0
        %v650 = vpop.f32.mrb[0].mxu0
        %v651 = vpop.f32.mrb[0].mxu0
        %652 = vdwg.mxu0
        %v653 = vpack.c.bf16 %v648, %v648
        %655 = vrot.lane.b32.xlu0 %v540, 120
        %v656 = vpop.permute.xlu0 %655
        %658 = vrot.lane.b32.xlu0 %v541, 120
        %v659 = vpop.permute.xlu0 %658
        %v661 = vsel %vm547, %v656, 0
        %v664 = vsel %vm547, %v659, 0
        %666 = vmatprep.subr.bf16.mxu0 0
        %667 = vmatpush1.bf16.xpose.msra.mxu0 %v664
        %668 = vmatprep.subr.bf16.mxu0 0
        %669 = vmatpush1.bf16.xpose.msra.mxu0 0
        %670 = vmatprep.subr.bf16.mxu0 0
        %671 = vmatpush1.bf16.xpose.msra.mxu0 0
        %672 = vmatprep.subr.bf16.mxu0 0
        %673 = vmatpush1.bf16.xpose.msra.mxu0 0
        %674 = vmatprep.subr.bf16.mxu0 0
        %675 = vmatpush1.bf16.xpose.msra.mxu0 0
        %676 = vmatprep.subr.bf16.mxu0 0
        %677 = vmatpush1.bf16.xpose.msra.mxu0 0
        %678 = vmatprep.subr.bf16.mxu0 0
        %679 = vmatpush1.bf16.xpose.msra.mxu0 0
        %680 = vmatprep.subr.bf16.mxu0 0
        %681 = vmatpush1.bf16.xpose.msra.mxu0 0
        %682 = vmatprep.subr.bf16.mxu0 0
        %683 = vmatpush1.bf16.xpose.msra.mxu0 0
        %684 = vmatprep.subr.bf16.mxu0 0
        %685 = vmatpush1.bf16.xpose.msra.mxu0 0
        %686 = vmatprep.subr.bf16.mxu0 0
        %687 = vmatpush1.bf16.xpose.msra.mxu0 0
        %688 = vmatprep.subr.bf16.mxu0 0
        %689 = vmatpush1.bf16.xpose.msra.mxu0 0
        %690 = vmatprep.subr.bf16.mxu0 0
        %691 = vmatpush1.bf16.xpose.msra.mxu0 0
        %692 = vmatprep.subr.bf16.mxu0 0
        %693 = vmatpush1.bf16.xpose.msra.mxu0 0
        %694 = vmatprep.subr.bf16.mxu0 0
        %695 = vmatpush1.bf16.xpose.msra.mxu0 0
        %696 = vmatprep.subr.bf16.mxu0 0
        %697 = vmatpush1.bf16.xpose.msra.mxu0 0
        %698 = vmatprep.mubr.bf16.mxu0 0
        %699 = vmatmul.mubr.bf16.gmra.mrb[0].mxu0 %v661
        %v700 = vpop.f32.mrb[0].mxu0
        %v701 = vadd.f32 0.0, %v700
        %v702 = vpop.f32.mrb[0].mxu0
        %v703 = vpop.f32.mrb[0].mxu0
        %v704 = vpop.f32.mrb[0].mxu0
        %705 = vdwg.mxu0
        %v706 = vsel %vm547, %v701, -inf
        %707 = vmax.xlane.f32.xlu0 %v706
        %v708 = vpop.xlane.xlu0 %707
        %v709 = vsub.f32 %v701, %v708
        %v710 = vmul.f32 %v709, 1.442695
        %v711 = vpow.pop %v710
        %v712 = vsel %vm547, %v711, 0.0
        %713 = vadd.xlane.f32.xlu0 %v712
        %v714 = vpop.xlane.xlu0 %713
        %v715 = vrcp.pop %v714
        %v716 = vmul.f32 %v711, %v715
        %v717 = vpack.c.bf16 %v716, %v716
        %719 = vrot.lane.b32.xlu0 %v542, 120
        %v720 = vpop.permute.xlu0 %719
        %v722 = vsel %vm547, %v717, 0
        %v725 = vsel %vm609, %v720, 0
        %727 = vmatprep.subr.bf16.mxu0 0
        %728 = vmatpush1.bf16.msra.mxu0 %v725
        %729 = vmatprep.subr.bf16.mxu0 0
        %730 = vmatpush1.bf16.msra.mxu0 0
        %731 = vmatprep.subr.bf16.mxu0 0
        %732 = vmatpush1.bf16.msra.mxu0 0
        %733 = vmatprep.subr.bf16.mxu0 0
        %734 = vmatpush1.bf16.msra.mxu0 0
        %735 = vmatprep.subr.bf16.mxu0 0
        %736 = vmatpush1.bf16.msra.mxu0 0
        %737 = vmatprep.subr.bf16.mxu0 0
        %738 = vmatpush1.bf16.msra.mxu0 0
        %739 = vmatprep.subr.bf16.mxu0 0
        %740 = vmatpush1.bf16.msra.mxu0 0
        %741 = vmatprep.subr.bf16.mxu0 0
        %742 = vmatpush1.bf16.msra.mxu0 0
        %743 = vmatprep.subr.bf16.mxu0 0
        %744 = vmatpush1.bf16.msra.mxu0 0
        %745 = vmatprep.subr.bf16.mxu0 0
        %746 = vmatpush1.bf16.msra.mxu0 0
        %747 = vmatprep.subr.bf16.mxu0 0
        %748 = vmatpush1.bf16.msra.mxu0 0
        %749 = vmatprep.subr.bf16.mxu0 0
        %750 = vmatpush1.bf16.msra.mxu0 0
        %751 = vmatprep.subr.bf16.mxu0 0
        %752 = vmatpush1.bf16.msra.mxu0 0
        %753 = vmatprep.subr.bf16.mxu0 0
        %754 = vmatpush1.bf16.msra.mxu0 0
        %755 = vmatprep.subr.bf16.mxu0 0
        %756 = vmatpush1.bf16.msra.mxu0 0
        %757 = vmatprep.subr.bf16.mxu0 0
        %758 = vmatpush1.bf16.msra.mxu0 0
        %759 = vmatprep.mubr.bf16.mxu0 0
        %760 = vmatmul.mubr.bf16.gmra.mrb[0].mxu0 %v722
        %v761 = vpop.f32.mrb[0].mxu0
        %v762 = vadd.f32 0.0, %v761
        %v763 = vpop.f32.mrb[0].mxu0
        %v764 = vpop.f32.mrb[0].mxu0
        %v765 = vpop.f32.mrb[0].mxu0
        %766 = vdwg.mxu0
        %v767 = vpack.c.bf16 %v762, %v762
        %v772 = vunpack.c.l.b16 %v543
        %v773 = vunpack.c.l.b16 %v544
        %v774 = vunpack.c.l.b16 %v545
        %v775 = vunpack.c.l.b16 %v546
        %v776 = vpack.c.b16 %v773, %v772
        %v777 = vpack.c.b16 %v775, %v774
        %778 = vrot.lane.b32.xlu0 %v776, 120
        %v779 = vpop.permute.xlu0 %778
        %780 = vrot.lane.b32.xlu0 %v777, 120
        %v781 = vpop.permute.xlu0 %780
        %v783 = vsel %vm547, %v767, 0
        %v786 = vsel %vm547, %v779, 0
        %v789 = vsel %vm547, %v781, 0
        %791 = vmatprep.subr.bf16.mxu0 0
        %792 = vmatpush1.bf16.xpose.msra.mxu0 %v786
        %793 = vmatprep.subr.bf16.mxu0 0
        %794 = vmatpush1.bf16.xpose.msra.mxu0 %v789
        %795 = vmatprep.subr.bf16.mxu0 0
        %796 = vmatpush1.bf16.xpose.msra.mxu0 0
        %797 = vmatprep.subr.bf16.mxu0 0
        %798 = vmatpush1.bf16.xpose.msra.mxu0 0
        %799 = vmatprep.subr.bf16.mxu0 0
        %800 = vmatpush1.bf16.xpose.msra.mxu0 0
        %801 = vmatprep.subr.bf16.mxu0 0
        %802 = vmatpush1.bf16.xpose.msra.mxu0 0
        %803 = vmatprep.subr.bf16.mxu0 0
        %804 = vmatpush1.bf16.xpose.msra.mxu0 0
        %805 = vmatprep.subr.bf16.mxu0 0
        %806 = vmatpush1.bf16.xpose.msra.mxu0 0
        %807 = vmatprep.subr.bf16.mxu0 0
        %808 = vmatpush1.bf16.xpose.msra.mxu0 0
        %809 = vmatprep.subr.bf16.mxu0 0
        %810 = vmatpush1.bf16.xpose.msra.mxu0 0
        %811 = vmatprep.subr.bf16.mxu0 0
        %812 = vmatpush1.bf16.xpose.msra.mxu0 0
        %813 = vmatprep.subr.bf16.mxu0 0
        %814 = vmatpush1.bf16.xpose.msra.mxu0 0
        %815 = vmatprep.subr.bf16.mxu0 0
        %816 = vmatpush1.bf16.xpose.msra.mxu0 0
        %817 = vmatprep.subr.bf16.mxu0 0
        %818 = vmatpush1.bf16.xpose.msra.mxu0 0
        %819 = vmatprep.subr.bf16.mxu0 0
        %820 = vmatpush1.bf16.xpose.msra.mxu0 0
        %821 = vmatprep.subr.bf16.mxu0 0
        %822 = vmatpush1.bf16.xpose.msra.mxu0 0
        %823 = vmatprep.mubr.bf16.mxu0 0
        %824 = vmatmul.mubr.bf16.gmra.mrb[0].mxu0 %v783
        %v825 = vpop.f32.mrb[0].mxu0
        %v826 = vadd.f32 0.0, %v825
        %v827 = vpop.f32.mrb[0].mxu0
        %v828 = vpop.f32.mrb[0].mxu0
        %v829 = vpop.f32.mrb[0].mxu0
        %830 = vdwg.mxu0
        %v832 = vsel %vm547, %v653, 0
        %v835 = vsel %vm547, %v776, 0
        %v838 = vsel %vm547, %v777, 0
        %840 = vmatprep.subr.bf16.mxu0 0
        %841 = vmatpush1.bf16.xpose.msra.mxu0 %v835
        %842 = vmatprep.subr.bf16.mxu0 0
        %843 = vmatpush1.bf16.xpose.msra.mxu0 %v838
        %844 = vmatprep.subr.bf16.mxu0 0
        %845 = vmatpush1.bf16.xpose.msra.mxu0 0
        %846 = vmatprep.subr.bf16.mxu0 0
        %847 = vmatpush1.bf16.xpose.msra.mxu0 0
        %848 = vmatprep.subr.bf16.mxu0 0
        %849 = vmatpush1.bf16.xpose.msra.mxu0 0
        %850 = vmatprep.subr.bf16.mxu0 0
        %851 = vmatpush1.bf16.xpose.msra.mxu0 0
        %852 = vmatprep.subr.bf16.mxu0 0
        %853 = vmatpush1.bf16.xpose.msra.mxu0 0
        %854 = vmatprep.subr.bf16.mxu0 0
        %855 = vmatpush1.bf16.xpose.msra.mxu0 0
        %856 = vmatprep.subr.bf16.mxu0 0
        %857 = vmatpush1.bf16.xpose.msra.mxu0 0
        %858 = vmatprep.subr.bf16.mxu0 0
        %859 = vmatpush1.bf16.xpose.msra.mxu0 0
        %860 = vmatprep.subr.bf16.mxu0 0
        %861 = vmatpush1.bf16.xpose.msra.mxu0 0
        %862 = vmatprep.subr.bf16.mxu0 0
        %863 = vmatpush1.bf16.xpose.msra.mxu0 0
        %864 = vmatprep.subr.bf16.mxu0 0
        %865 = vmatpush1.bf16.xpose.msra.mxu0 0
        %866 = vmatprep.subr.bf16.mxu0 0
        %867 = vmatpush1.bf16.xpose.msra.mxu0 0
        %868 = vmatprep.subr.bf16.mxu0 0
        %869 = vmatpush1.bf16.xpose.msra.mxu0 0
        %870 = vmatprep.subr.bf16.mxu0 0
        %871 = vmatpush1.bf16.xpose.msra.mxu0 0
        %872 = vmatprep.mubr.bf16.mxu0 0
        %873 = vmatmul.mubr.bf16.gmra.mrb[0].mxu0 %v832
        %v874 = vpop.f32.mrb[0].mxu0
        %v875 = vadd.f32 %v826, %v874
        %v876 = vpop.f32.mrb[0].mxu0
        %v877 = vpop.f32.mrb[0].mxu0
        %v878 = vpop.f32.mrb[0].mxu0
        %879 = vdwg.mxu0
        %880 = vrot.lane.b32.xlu0 %v540, 112
        %v881 = vpop.permute.xlu0 %880
        %882 = vrot.lane.b32.xlu0 %v541, 112
        %v883 = vpop.permute.xlu0 %882
        %v885 = vsel %vm547, %v881, 0
        %v888 = vsel %vm547, %v883, 0
        %890 = vmatprep.subr.bf16.mxu0 0
        %891 = vmatpush1.bf16.xpose.msra.mxu0 %v888
        %892 = vmatprep.subr.bf16.mxu0 0
        %893 = vmatpush1.bf16.xpose.msra.mxu0 0
        %894 = vmatprep.subr.bf16.mxu0 0
        %895 = vmatpush1.bf16.xpose.msra.mxu0 0
        %896 = vmatprep.subr.bf16.mxu0 0
        %897 = vmatpush1.bf16.xpose.msra.mxu0 0
        %898 = vmatprep.subr.bf16.mxu0 0
        %899 = vmatpush1.bf16.xpose.msra.mxu0 0
        %900 = vmatprep.subr.bf16.mxu0 0
        %901 = vmatpush1.bf16.xpose.msra.mxu0 0
        %902 = vmatprep.subr.bf16.mxu0 0
        %903 = vmatpush1.bf16.xpose.msra.mxu0 0
        %904 = vmatprep.subr.bf16.mxu0 0
        %905 = vmatpush1.bf16.xpose.msra.mxu0 0
        %906 = vmatprep.subr.bf16.mxu0 0
        %907 = vmatpush1.bf16.xpose.msra.mxu0 0
        %908 = vmatprep.subr.bf16.mxu0 0
        %909 = vmatpush1.bf16.xpose.msra.mxu0 0
        %910 = vmatprep.subr.bf16.mxu0 0
        %911 = vmatpush1.bf16.xpose.msra.mxu0 0
        %912 = vmatprep.subr.bf16.mxu0 0
        %913 = vmatpush1.bf16.xpose.msra.mxu0 0
        %914 = vmatprep.subr.bf16.mxu0 0
        %915 = vmatpush1.bf16.xpose.msra.mxu0 0
        %916 = vmatprep.subr.bf16.mxu0 0
        %917 = vmatpush1.bf16.xpose.msra.mxu0 0
        %918 = vmatprep.subr.bf16.mxu0 0
        %919 = vmatpush1.bf16.xpose.msra.mxu0 0
        %920 = vmatprep.subr.bf16.mxu0 0
        %921 = vmatpush1.bf16.xpose.msra.mxu0 0
        %922 = vmatprep.mubr.bf16.mxu0 0
        %923 = vmatmul.mubr.bf16.gmra.mrb[0].mxu0 %v885
        %v924 = vpop.f32.mrb[0].mxu0
        %v925 = vadd.f32 0.0, %v924
        %v926 = vpop.f32.mrb[0].mxu0
        %v927 = vpop.f32.mrb[0].mxu0
        %v928 = vpop.f32.mrb[0].mxu0
        %929 = vdwg.mxu0
        %v930 = vsel %vm547, %v925, -inf
        %931 = vmax.xlane.f32.xlu0 %v930
        %v932 = vpop.xlane.xlu0 %931
        %v933 = vsub.f32 %v925, %v932
        %v934 = vmul.f32 %v933, 1.442695
        %v935 = vpow.pop %v934
        %v936 = vsel %vm547, %v935, 0.0
        %937 = vadd.xlane.f32.xlu0 %v936
        %v938 = vpop.xlane.xlu0 %937
        %v939 = vrcp.pop %v938
        %v940 = vmul.f32 %v935, %v939
        %v941 = vpack.c.bf16 %v940, %v940
        %942 = vrot.lane.b32.xlu0 %v542, 112
        %v943 = vpop.permute.xlu0 %942
        %v945 = vsel %vm547, %v941, 0
        %v948 = vsel %vm609, %v943, 0
        %950 = vmatprep.subr.bf16.mxu0 0
        %951 = vmatpush1.bf16.msra.mxu0 %v948
        %952 = vmatprep.subr.bf16.mxu0 0
        %953 = vmatpush1.bf16.msra.mxu0 0
        %954 = vmatprep.subr.bf16.mxu0 0
        %955 = vmatpush1.bf16.msra.mxu0 0
        %956 = vmatprep.subr.bf16.mxu0 0
        %957 = vmatpush1.bf16.msra.mxu0 0
        %958 = vmatprep.subr.bf16.mxu0 0
        %959 = vmatpush1.bf16.msra.mxu0 0
        %960 = vmatprep.subr.bf16.mxu0 0
        %961 = vmatpush1.bf16.msra.mxu0 0
        %962 = vmatprep.subr.bf16.mxu0 0
        %963 = vmatpush1.bf16.msra.mxu0 0
        %964 = vmatprep.subr.bf16.mxu0 0
        %965 = vmatpush1.bf16.msra.mxu0 0
        %966 = vmatprep.subr.bf16.mxu0 0
        %967 = vmatpush1.bf16.msra.mxu0 0
        %968 = vmatprep.subr.bf16.mxu0 0
        %969 = vmatpush1.bf16.msra.mxu0 0
        %970 = vmatprep.subr.bf16.mxu0 0
        %971 = vmatpush1.bf16.msra.mxu0 0
        %972 = vmatprep.subr.bf16.mxu0 0
        %973 = vmatpush1.bf16.msra.mxu0 0
        %974 = vmatprep.subr.bf16.mxu0 0
        %975 = vmatpush1.bf16.msra.mxu0 0
        %976 = vmatprep.subr.bf16.mxu0 0
        %977 = vmatpush1.bf16.msra.mxu0 0
        %978 = vmatprep.subr.bf16.mxu0 0
        %979 = vmatpush1.bf16.msra.mxu0 0
        %980 = vmatprep.subr.bf16.mxu0 0
        %981 = vmatpush1.bf16.msra.mxu0 0
        %982 = vmatprep.mubr.bf16.mxu0 0
        %983 = vmatmul.mubr.bf16.gmra.mrb[0].mxu0 %v945
        %v984 = vpop.f32.mrb[0].mxu0
        %v985 = vadd.f32 0.0, %v984
        %v986 = vpop.f32.mrb[0].mxu0
        %v987 = vpop.f32.mrb[0].mxu0
        %v988 = vpop.f32.mrb[0].mxu0
        %989 = vdwg.mxu0
        %v990 = vpack.c.bf16 %v985, %v985
        %991 = vrot.lane.b32.xlu0 %v776, 112
        %v992 = vpop.permute.xlu0 %991
        %993 = vrot.lane.b32.xlu0 %v777, 112
        %v994 = vpop.permute.xlu0 %993
        %v996 = vsel %vm547, %v990, 0
        %v999 = vsel %vm547, %v992, 0
        %v1002 = vsel %vm547, %v994, 0
        %1004 = vmatprep.subr.bf16.mxu0 0
        %1005 = vmatpush1.bf16.xpose.msra.mxu0 %v999
        %1006 = vmatprep.subr.bf16.mxu0 0
        %1007 = vmatpush1.bf16.xpose.msra.mxu0 %v1002
        %1008 = vmatprep.subr.bf16.mxu0 0
        %1009 = vmatpush1.bf16.xpose.msra.mxu0 0
        %1010 = vmatprep.subr.bf16.mxu0 0
        %1011 = vmatpush1.bf16.xpose.msra.mxu0 0
        %1012 = vmatprep.subr.bf16.mxu0 0
        %1013 = vmatpush1.bf16.xpose.msra.mxu0 0
        %1014 = vmatprep.subr.bf16.mxu0 0
        %1015 = vmatpush1.bf16.xpose.msra.mxu0 0
        %1016 = vmatprep.subr.bf16.mxu0 0
        %1017 = vmatpush1.bf16.xpose.msra.mxu0 0
        %1018 = vmatprep.subr.bf16.mxu0 0
        %1019 = vmatpush1.bf16.xpose.msra.mxu0 0
        %1020 = vmatprep.subr.bf16.mxu0 0
        %1021 = vmatpush1.bf16.xpose.msra.mxu0 0
        %1022 = vmatprep.subr.bf16.mxu0 0
        %1023 = vmatpush1.bf16.xpose.msra.mxu0 0
        %1024 = vmatprep.subr.bf16.mxu0 0
        %1025 = vmatpush1.bf16.xpose.msra.mxu0 0
        %1026 = vmatprep.subr.bf16.mxu0 0
        %1027 = vmatpush1.bf16.xpose.msra.mxu0 0
        %1028 = vmatprep.subr.bf16.mxu0 0
        %1029 = vmatpush1.bf16.xpose.msra.mxu0 0
        %1030 = vmatprep.subr.bf16.mxu0 0
        %1031 = vmatpush1.bf16.xpose.msra.mxu0 0
        %1032 = vmatprep.subr.bf16.mxu0 0
        %1033 = vmatpush1.bf16.xpose.msra.mxu0 0
        %1034 = vmatprep.subr.bf16.mxu0 0
        %1035 = vmatpush1.bf16.xpose.msra.mxu0 0
        %1036 = vmatprep.mubr.bf16.mxu0 0
        %1037 = vmatmul.mubr.bf16.gmra.mrb[0].mxu0 %v996
        %v1038 = vpop.f32.mrb[0].mxu0
        %v1039 = vadd.f32 0.0, %v1038
        %v1040 = vpop.f32.mrb[0].mxu0
        %v1041 = vpop.f32.mrb[0].mxu0
        %v1042 = vpop.f32.mrb[0].mxu0
        %1043 = vdwg.mxu0
        %v1044 = vadd.f32 %v875, %v1039
        %1045 = vrot.lane.b32.xlu0 %v540, 104
        %v1046 = vpop.permute.xlu0 %1045
        %1047 = vrot.lane.b32.xlu0 %v541, 104
        %v1048 = vpop.permute.xlu0 %1047
        %v1050 = vsel %vm547, %v1046, 0
        %v1053 = vsel %vm547, %v1048, 0
        %1055 = vmatprep.subr.bf16.mxu0 0
        %1056 = vmatpush1.bf16.xpose.msra.mxu0 %v1053
        %1057 = vmatprep.subr.bf16.mxu0 0
        %1058 = vmatpush1.bf16.xpose.msra.mxu0 0
        %1059 = vmatprep.subr.bf16.mxu0 0
        %1060 = vmatpush1.bf16.xpose.msra.mxu0 0
        %1061 = vmatprep.subr.bf16.mxu0 0
        %1062 = vmatpush1.bf16.xpose.msra.mxu0 0
        %1063 = vmatprep.subr.bf16.mxu0 0
        %1064 = vmatpush1.bf16.xpose.msra.mxu0 0
        %1065 = vmatprep.subr.bf16.mxu0 0
        %1066 = vmatpush1.bf16.xpose.msra.mxu0 0
        %1067 = vmatprep.subr.bf16.mxu0 0
        %1068 = vmatpush1.bf16.xpose.msra.mxu0 0
        %1069 = vmatprep.subr.bf16.mxu0 0
        %1070 = vmatpush1.bf16.xpose.msra.mxu0 0
        %1071 = vmatprep.subr.bf16.mxu0 0
        %1072 = vmatpush1.bf16.xpose.msra.mxu0 0
        %1073 = vmatprep.subr.bf16.mxu0 0
        %1074 = vmatpush1.bf16.xpose.msra.mxu0 0
        %1075 = vmatprep.subr.bf16.mxu0 0
        %1076 = vmatpush1.bf16.xpose.msra.mxu0 0
        %1077 = vmatprep.subr.bf16.mxu0 0
        %1078 = vmatpush1.bf16.xpose.msra.mxu0 0
        %1079 = vmatprep.subr.bf16.mxu0 0
        %1080 = vmatpush1.bf16.xpose.msra.mxu0 0
        %1081 = vmatprep.subr.bf16.mxu0 0
        %1082 = vmatpush1.bf16.xpose.msra.mxu0 0
        %1083 = vmatprep.subr.bf16.mxu0 0
        %1084 = vmatpush1.bf16.xpose.msra.mxu0 0
        %1085 = vmatprep.subr.bf16.mxu0 0
        %1086 = vmatpush1.bf16.xpose.msra.mxu0 0
        %1087 = vmatprep.mubr.bf16.mxu0 0
        %1088 = vmatmul.mubr.bf16.gmra.mrb[0].mxu0 %v1050
        %v1089 = vpop.f32.mrb[0].mxu0
        %v1090 = vadd.f32 0.0, %v1089
        %v1091 = vpop.f32.mrb[0].mxu0
        %v1092 = vpop.f32.mrb[0].mxu0
        %v1093 = vpop.f32.mrb[0].mxu0
        %1094 = vdwg.mxu0
        %v1095 = vsel %vm547, %v1090, -inf
        %1096 = vmax.xlane.f32.xlu0 %v1095
        %v1097 = vpop.xlane.xlu0 %1096
        %v1098 = vsub.f32 %v1090, %v1097
        %v1099 = vmul.f32 %v1098, 1.442695
        %v1100 = vpow.pop %v1099
        %v1101 = vsel %vm547, %v1100, 0.0
        %1102 = vadd.xlane.f32.xlu0 %v1101
        %v1103 = vpop.xlane.xlu0 %1102
        %v1104 = vrcp.pop %v1103
        %v1105 = vmul.f32 %v1100, %v1104
        %v1106 = vpack.c.bf16 %v1105, %v1105
        %1107 = vrot.lane.b32.xlu0 %v542, 104
        %v1108 = vpop.permute.xlu0 %1107
        %v1110 = vsel %vm547, %v1106, 0
        %v1113 = vsel %vm609, %v1108, 0
        %1115 = vmatprep.subr.bf16.mxu0 0
        %1116 = vmatpush1.bf16.msra.mxu0 %v1113
        %1117 = vmatprep.subr.bf16.mxu0 0
        %1118 = vmatpush1.bf16.msra.mxu0 0
        %1119 = vmatprep.subr.bf16.mxu0 0
        %1120 = vmatpush1.bf16.msra.mxu0 0
        %1121 = vmatprep.subr.bf16.mxu0 0
        %1122 = vmatpush1.bf16.msra.mxu0 0
        %1123 = vmatprep.subr.bf16.mxu0 0
        %1124 = vmatpush1.bf16.msra.mxu0 0
        %1125 = vmatprep.subr.bf16.mxu0 0
        %1126 = vmatpush1.bf16.msra.mxu0 0
        %1127 = vmatprep.subr.bf16.mxu0 0
        %1128 = vmatpush1.bf16.msra.mxu0 0
        %1129 = vmatprep.subr.bf16.mxu0 0
        %1130 = vmatpush1.bf16.msra.mxu0 0
        %1131 = vmatprep.subr.bf16.mxu0 0
        %1132 = vmatpush1.bf16.msra.mxu0 0
        %1133 = vmatprep.subr.bf16.mxu0 0
        %1134 = vmatpush1.bf16.msra.mxu0 0
        %1135 = vmatprep.subr.bf16.mxu0 0
        %1136 = vmatpush1.bf16.msra.mxu0 0
        %1137 = vmatprep.subr.bf16.mxu0 0
        %1138 = vmatpush1.bf16.msra.mxu0 0
        %1139 = vmatprep.subr.bf16.mxu0 0
        %1140 = vmatpush1.bf16.msra.mxu0 0
        %1141 = vmatprep.subr.bf16.mxu0 0
        %1142 = vmatpush1.bf16.msra.mxu0 0
        %1143 = vmatprep.subr.bf16.mxu0 0
        %1144 = vmatpush1.bf16.msra.mxu0 0
        %1145 = vmatprep.subr.bf16.mxu0 0
        %1146 = vmatpush1.bf16.msra.mxu0 0
        %1147 = vmatprep.mubr.bf16.mxu0 0
        %1148 = vmatmul.mubr.bf16.gmra.mrb[0].mxu0 %v1110
        %v1149 = vpop.f32.mrb[0].mxu0
        %v1150 = vadd.f32 0.0, %v1149
        %v1151 = vpop.f32.mrb[0].mxu0
        %v1152 = vpop.f32.mrb[0].mxu0
        %v1153 = vpop.f32.mrb[0].mxu0
        %1154 = vdwg.mxu0
        %v1155 = vpack.c.bf16 %v1150, %v1150
        %1156 = vrot.lane.b32.xlu0 %v776, 104
        %v1157 = vpop.permute.xlu0 %1156
        %1158 = vrot.lane.b32.xlu0 %v777, 104
        %v1159 = vpop.permute.xlu0 %1158
        %v1161 = vsel %vm547, %v1155, 0
        %v1164 = vsel %vm547, %v1157, 0
        %v1167 = vsel %vm547, %v1159, 0
        %1169 = vmatprep.subr.bf16.mxu0 0
        %1170 = vmatpush1.bf16.xpose.msra.mxu0 %v1164
        %1171 = vmatprep.subr.bf16.mxu0 0
        %1172 = vmatpush1.bf16.xpose.msra.mxu0 %v1167
        %1173 = vmatprep.subr.bf16.mxu0 0
        %1174 = vmatpush1.bf16.xpose.msra.mxu0 0
        %1175 = vmatprep.subr.bf16.mxu0 0
        %1176 = vmatpush1.bf16.xpose.msra.mxu0 0
        %1177 = vmatprep.subr.bf16.mxu0 0
        %1178 = vmatpush1.bf16.xpose.msra.mxu0 0
        %1179 = vmatprep.subr.bf16.mxu0 0
        %1180 = vmatpush1.bf16.xpose.msra.mxu0 0
        %1181 = vmatprep.subr.bf16.mxu0 0
        %1182 = vmatpush1.bf16.xpose.msra.mxu0 0
        %1183 = vmatprep.subr.bf16.mxu0 0
        %1184 = vmatpush1.bf16.xpose.msra.mxu0 0
        %1185 = vmatprep.subr.bf16.mxu0 0
        %1186 = vmatpush1.bf16.xpose.msra.mxu0 0
        %1187 = vmatprep.subr.bf16.mxu0 0
        %1188 = vmatpush1.bf16.xpose.msra.mxu0 0
        %1189 = vmatprep.subr.bf16.mxu0 0
        %1190 = vmatpush1.bf16.xpose.msra.mxu0 0
        %1191 = vmatprep.subr.bf16.mxu0 0
        %1192 = vmatpush1.bf16.xpose.msra.mxu0 0
        %1193 = vmatprep.subr.bf16.mxu0 0
        %1194 = vmatpush1.bf16.xpose.msra.mxu0 0
        %1195 = vmatprep.subr.bf16.mxu0 0
        %1196 = vmatpush1.bf16.xpose.msra.mxu0 0
        %1197 = vmatprep.subr.bf16.mxu0 0
        %1198 = vmatpush1.bf16.xpose.msra.mxu0 0
        %1199 = vmatprep.subr.bf16.mxu0 0
        %1200 = vmatpush1.bf16.xpose.msra.mxu0 0
        %1201 = vmatprep.mubr.bf16.mxu0 0
        %1202 = vmatmul.mubr.bf16.gmra.mrb[0].mxu0 %v1161
        %v1203 = vpop.f32.mrb[0].mxu0
        %v1204 = vadd.f32 0.0, %v1203
        %v1205 = vpop.f32.mrb[0].mxu0
        %v1206 = vpop.f32.mrb[0].mxu0
        %v1207 = vpop.f32.mrb[0].mxu0
        %1208 = vdwg.mxu0
        %v1209 = vadd.f32 %v1044, %v1204
        %v1210 = vadd.f32 %v353, %v1209
        %v1211 = vsel %vm369, %v1210, 0.0
        %1212 = vadd.xlane.f32.xlu0 %v1211
        %v1213 = vpop.xlane.xlu0 %1212
        %v1214 = vrcp.pop 32.0
        %v1215 = vmul.f32 %v1213, %v1214
        %v1216 = vsub.f32 %v1210, %v1215
        %v1217 = vmul.f32 %v1216, %v1216
        %v1218 = vsel %vm369, %v1217, 0.0
        %1219 = vadd.xlane.f32.xlu0 %v1218
        %v1220 = vpop.xlane.xlu0 %1219
        %v1221 = vmul.f32 %v1220, 0.032258064
        %v1222 = vrsqrt.pop %v1221
        %v1223 = vmul.f32 %v1221, %v1222
        %vm1224 = vcmp.eq.f32.partialorder %v1221, inf
        %v1225 = vsel %vm1224, %v1221, %v1223
        %vm1226 = vcmp.eq.f32.partialorder %v1221, 0.0
        %v1227 = vand.u32 %v1221, 2147483648
        %v1228 = vsel %vm1226, %v1227, %v1225
        %v1229 = vadd.f32 %v1228, 1e-06
        %v1230 = vrcp.pop %v1229
        %v1231 = vld [vmem:[%s5] sm:$0x1]
        %v1232 = vmul.f32 %v1216, %v1230
        %v1234 = vlaneseq
        %v1235 = vshrl.u32 %v1234, 7
        %v1236 = vsub.s32 0, %v1235
        %v1237 = vrot.slane %v1231, %v1236
        %v1239 = vmul.f32 %v1237, %v1232
        %v1240 = vld [vmem:[%s6] sm:$0x1]
        %v1242 = vlaneseq
        %v1243 = vshrl.u32 %v1242, 7
        %v1244 = vsub.s32 0, %v1243
        %v1245 = vrot.slane %v1240, %v1244
        %v1247 = vadd.f32 %v1239, %v1245
        %1248 = vst.msk [vmem:[%s351] sm:$0xff] %vm369, %v1247
        %s1249 = sand.u32 %s186, 1
        %s1250 = scalar_lea.sflag [#allocation4], %s1249
        %s1251 = sand.u32 %s186, 1
        %s1252 = smul.addr %s1251, 8
        %s1253 = scalar_lea.vmem [#allocation11], %s1252
        // Predicated region
        $region69: #{tpu_custom_call.1} parent=47 // pred_check
          %p1254 = pneg %p196
        $region70: #{tpu_custom_call.1} parent=47 // pred_check_branch
          %1256 = sbr.rel (%p1254) target = $region72
        $region71: #{tpu_custom_call.1} parent=47 // pred_region
          %s1258 = ssub.s32 128, 128
          %1259 = vsyncadd %s1250, %s1258
          %s1260 = smul.addr %s26, 128
          %s1261 = scalar_lea.hbm %s7, %s1260
          %s1263 = sshll.u32 %s1253, 4
          %s1264 = int_to_ptr.vmem [resolvable:$true] %s1263
          %1266 = dma.vmem_to_hbm [thread:$0]  %s1264, 128, %s1261, %s1250
        $region72: #{tpu_custom_call.1} parent=47 // pred_fallthru
          _
      $region48: #{tpu_custom_call.1} parent=5 // pred_fallthru
        _
      %p1267 = scmp.le.s32.totalorder 2, %s21
      // Predicated region
      $region73: #{tpu_custom_call.1} parent=5 // pred_check
        %p1268 = pneg %p1267
      $region74: #{tpu_custom_call.1} parent=5 // pred_check_branch
        %1270 = sbr.rel (%p1268) target = $region76
      $region75: #{tpu_custom_call.1} parent=5 // pred_region
        %s1271 = ssub.s32 %s21, 2
        // Predicated region
        $region77: #{tpu_custom_call.1} parent=75 // pred_check
          %p1272 = pneg %p202
        $region78: #{tpu_custom_call.1} parent=75 // pred_check_branch
          %1274 = sbr.rel (%p1272) target = $region80
        $region79: #{tpu_custom_call.1} parent=75 // pred_region
          %s1275 = sand.u32 %s187, 1
          %s1276 = scalar_lea.sflag [#allocation4], %s1275
          %s1277 = sand.u32 %s187, 1
          %s1278 = smul.addr %s1277, 8
          %s1279 = scalar_lea.vmem [#allocation11], %s1278
          %1280 = dma.done %s1276, 128
        $region80: #{tpu_custom_call.1} parent=75 // pred_fallthru
          _
      $region76: #{tpu_custom_call.1} parent=5 // pred_fallthru
        _
    $region6: #{tpu_custom_call.1} parent=1 // loop_footer
      %s25 = sadd.s32 1, %s21
    $region7: #{tpu_custom_call.1} parent=1 // loop_footer_branch
      %20 = sbr.rel target = $region3
    $region8: #{tpu_custom_call.1} parent=1 // loop_exit
      _
    %1281 = vsyncpa [#allocation3], 1
    %s1282 = scalar_lea.sflag [#allocation3], 1
    %1283 = vsyncpa %s1282, 1
    %1284 = vsyncpa [#allocation6], 1
    %1285 = vsyncpa [#allocation9], 1
    %1286 = vsyncpa [#allocation4], 1
    %s1287 = scalar_lea.sflag [#allocation4], 1
    %1288 = vsyncpa %s1287, 1

// kernel: tpu_custom_call.1
$region0: #{tpu_custom_call.1}
  #allocation0 [shape = 'u32[]', space=smem, size = 0x4, offset = 0x4, fixed_abs, tag = 'smem constant byte address 0x4 - core index']
  #allocation1 [shape = 'u32[144,128]{1,0:T(1,128)}', space=vmem, size = 0x12000, scoped, tag = 'internal scratch']
  %s0 = inlined_call_operand.hbm [shape: f32[2,8,32], index: 0, kind: input, shape index: {}]
  %s1 = inlined_call_operand.hbm [shape: bf16[32,32], index: 1, kind: input, shape index: {}]
  %s2 = inlined_call_operand.hbm [shape: bf16[32,32], index: 2, kind: input, shape index: {}]
  %s3 = inlined_call_operand.hbm [shape: bf16[32,32], index: 3, kind: input, shape index: {}]
  %s4 = inlined_call_operand.hbm [shape: bf16[32,32], index: 4, kind: input, shape index: {}]
  %s5 = inlined_call_operand.vmem [shape: f32[1,32], index: 5, kind: input, shape index: {}]
  %s6 = inlined_call_operand.vmem [shape: f32[1,32], index: 6, kind: input, shape index: {}]
  %s7 = inlined_call_operand.hbm [shape: f32[2,8,32], index: 7, kind: output, shape index: {}]
  %s8 = sld [smem:[#allocation0]]
  $region81: #{tpu_custom_call.1} parent=0
    _
  %s10 = ssub.s32 1, %s8
  %s11 = scalar_select 0, %s10, %s8
  $region1: #{tpu_custom_call.1} parent=0
    #allocation2 [shape = 'u8[8192]{0}', space=vmem, size = 0x2000, scoped, tag = 'input window, operand 0']
    #allocation3 [shape = 's32[2]{0}', space=sflag, size = 0x8, scoped, tag = 'scoped memory for tpu_custom_call.1']
    #allocation4 [shape = 's32[2]{0}', space=sflag, size = 0x8, scoped, tag = 'scoped memory for tpu_custom_call.1']
    #allocation5 [shape = 'u8[8192]{0}', space=vmem, size = 0x2000, scoped, tag = 'input window, operand 1, single buffered']
    #allocation6 [shape = 's32[1]{0}', space=sflag, size = 0x4, scoped, tag = 'scoped memory for tpu_custom_call.1']
    #allocation7 [shape = 'u8[8192]{0}', space=vmem, size = 0x2000, scoped, tag = 'input window, operand 2, single buffered']
    #allocation8 [shape = 'u8[8192]{0}', space=vmem, size = 0x2000, scoped, tag = 'input window, operand 3, single buffered']
    #allocation9 [shape = 's32[1]{0}', space=sflag, size = 0x4, scoped, tag = 'scoped memory for tpu_custom_call.1']
    #allocation10 [shape = 'u8[8192]{0}', space=vmem, size = 0x2000, scoped, tag = 'input window, operand 4, single buffered']
    #allocation11 [shape = 'u8[8192]{0}', space=vmem, size = 0x2000, scoped, tag = 'output window, operand 0']
    %12 = vsyncpa [#allocation3], 0
    %s13 = scalar_lea.sflag [#allocation3], 1
    %14 = vsyncpa %s13, 0
    %15 = vsyncpa [#allocation6], 0
    %16 = vsyncpa [#allocation9], 0
    %17 = vsyncpa [#allocation4], 0
    %s18 = scalar_lea.sflag [#allocation4], 1
    %19 = vsyncpa %s18, 0
    loop: start=0, step=1, limit=4
    $region2: #{tpu_custom_call.1} parent=1 // loop_pre_header
      _
    $region3: #{tpu_custom_call.1} parent=1 // loop_header
      %s21 = sphi 0, %s25
      %p22 = scmp.ge.s32.totalorder %s21, 4
      %s31 = sphi 0, %s33
      %s34 = sphi 0, %s31
      %s35 = sphi 0, %s34
      %s51 = sphi 0, %s35
      %s55 = sphi 0, %s55
      %s57 = sphi 0, %s55
      %s58 = sphi 0, %s57
      %s72 = sphi 0, %s58
      %s76 = sphi 0, %s76
      %s78 = sphi 0, %s76
      %s79 = sphi 0, %s78
      %s93 = sphi 0, %s79
      %s97 = sphi 0, %s97
      %s99 = sphi 0, %s97
      %s100 = sphi 0, %s99
      %s114 = sphi 0, %s100
      %s118 = sphi 0, %s118
      %s120 = sphi 0, %s118
      %s121 = sphi 0, %s120
      %s135 = sphi 0, %s121
      %s139 = sphi 0, %s139
      %s141 = sphi 0, %s139
      %s142 = sphi 0, %s141
      %s156 = sphi 0, %s142
      %s160 = sphi 0, %s160
      %s162 = sphi 0, %s160
      %s163 = sphi 0, %s162
      %s177 = sphi 0, %s163
      %s183 = sphi 0, %s185
      %s186 = sphi 0, %s183
      %s187 = sphi 0, %s186
      %s203 = sphi 0, %s187
    $region4: #{tpu_custom_call.1} parent=1 // loop_header_branch
      %24 = sbr.rel (%p22) target = $region8
    $region5: #{tpu_custom_call.1} parent=1 // loop_body
      %s26 = ssub.s32 %s21, 1
      %s27 = ssub.s32 %s21, 2
      %s28 = sadd.s32 %s21, 1
      %s29 = ssub.s32 %s21, %s28
      %p30 = scmp.eq.s32.totalorder %s29, 0
      %s32 = sadd.s32 %s31, 1
      %s33 = scalar_select %p30, %s31, %s32
      %p36 = pneg %p30
      %p37 = scmp.eq.s32.totalorder %s21, 1
      %p38 = por %p36, %p37
      %p39 = scmp.ne.s32.totalorder %s31, %s34
      %p40 = scmp.eq.s32.totalorder %s21, 0
      %p41 = por %p39, %p40
      %p42 = scmp.ne.s32.totalorder %s31, %s34
      %p43 = scmp.eq.s32.totalorder %s26, 1
      %p44 = por %p42, %p43
      %p45 = scmp.ne.s32.totalorder %s34, %s35
      %p46 = scmp.eq.s32.totalorder %s26, 0
      %p47 = por %p45, %p46
      %p48 = scmp.ne.s32.totalorder %s34, %s35
      %p49 = scmp.eq.s32.totalorder %s27, 1
      %p50 = por %p48, %p49
      %p52 = scmp.ne.s32.totalorder %s35, %s51
      %p53 = scmp.eq.s32.totalorder %s27, 0
      %p54 = por %p52, %p53
      %s56 = sadd.s32 %s55, 1
      %p59 = scmp.eq.s32.totalorder %s21, 1
      %p60 = scmp.ne.s32.totalorder %s55, %s57
      %p61 = scmp.eq.s32.totalorder %s21, 0
      %p62 = por %p60, %p61
      %p63 = scmp.ne.s32.totalorder %s55, %s57
      %p64 = scmp.eq.s32.totalorder %s26, 1
      %p65 = por %p63, %p64
      %p66 = scmp.ne.s32.totalorder %s57, %s58
      %p67 = scmp.eq.s32.totalorder %s26, 0
      %p68 = por %p66, %p67
      %p69 = scmp.ne.s32.totalorder %s57, %s58
      %p70 = scmp.eq.s32.totalorder %s27, 1
      %p71 = por %p69, %p70
      %p73 = scmp.ne.s32.totalorder %s58, %s72
      %p74 = scmp.eq.s32.totalorder %s27, 0
      %p75 = por %p73, %p74
      %s77 = sadd.s32 %s76, 1
      %p80 = scmp.eq.s32.totalorder %s21, 1
      %p81 = scmp.ne.s32.totalorder %s76, %s78
      %p82 = scmp.eq.s32.totalorder %s21, 0
      %p83 = por %p81, %p82
      %p84 = scmp.ne.s32.totalorder %s76, %s78
      %p85 = scmp.eq.s32.totalorder %s26, 1
      %p86 = por %p84, %p85
      %p87 = scmp.ne.s32.totalorder %s78, %s79
      %p88 = scmp.eq.s32.totalorder %s26, 0
      %p89 = por %p87, %p88
      %p90 = scmp.ne.s32.totalorder %s78, %s79
      %p91 = scmp.eq.s32.totalorder %s27, 1
      %p92 = por %p90, %p91
      %p94 = scmp.ne.s32.totalorder %s79, %s93
      %p95 = scmp.eq.s32.totalorder %s27, 0
      %p96 = por %p94, %p95
      %s98 = sadd.s32 %s97, 1
      %p101 = scmp.eq.s32.totalorder %s21, 1
      %p102 = scmp.ne.s32.totalorder %s97, %s99
      %p103 = scmp.eq.s32.totalorder %s21, 0
      %p104 = por %p102, %p103
      %p105 = scmp.ne.s32.totalorder %s97, %s99
      %p106 = scmp.eq.s32.totalorder %s26, 1
      %p107 = por %p105, %p106
      %p108 = scmp.ne.s32.totalorder %s99, %s100
      %p109 = scmp.eq.s32.totalorder %s26, 0
      %p110 = por %p108, %p109
      %p111 = scmp.ne.s32.totalorder %s99, %s100
      %p112 = scmp.eq.s32.totalorder %s27, 1
      %p113 = por %p111, %p112
      %p115 = scmp.ne.s32.totalorder %s100, %s114
      %p116 = scmp.eq.s32.totalorder %s27, 0
      %p117 = por %p115, %p116
      %s119 = sadd.s32 %s118, 1
      %p122 = scmp.eq.s32.totalorder %s21, 1
      %p123 = scmp.ne.s32.totalorder %s118, %s120
      %p124 = scmp.eq.s32.totalorder %s21, 0
      %p125 = por %p123, %p124
      %p126 = scmp.ne.s32.totalorder %s118, %s120
      %p127 = scmp.eq.s32.totalorder %s26, 1
      %p128 = por %p126, %p127
      %p129 = scmp.ne.s32.totalorder %s120, %s121
      %p130 = scmp.eq.s32.totalorder %s26, 0
      %p131 = por %p129, %p130
      %p132 = scmp.ne.s32.totalorder %s120, %s121
      %p133 = scmp.eq.s32.totalorder %s27, 1
      %p134 = por %p132, %p133
      %p136 = scmp.ne.s32.totalorder %s121, %s135
      %p137 = scmp.eq.s32.totalorder %s27, 0
      %p138 = por %p136, %p137
      %s140 = sadd.s32 %s139, 1
      %p143 = scmp.eq.s32.totalorder %s21, 1
      %p144 = scmp.ne.s32.totalorder %s139, %s141
      %p145 = scmp.eq.s32.totalorder %s21, 0
      %p146 = por %p144, %p145
      %p147 = scmp.ne.s32.totalorder %s139, %s141
      %p148 = scmp.eq.s32.totalorder %s26, 1
      %p149 = por %p147, %p148
      %p150 = scmp.ne.s32.totalorder %s141, %s142
      %p151 = scmp.eq.s32.totalorder %s26, 0
      %p152 = por %p150, %p151
      %p153 = scmp.ne.s32.totalorder %s141, %s142
      %p154 = scmp.eq.s32.totalorder %s27, 1
      %p155 = por %p153, %p154
      %p157 = scmp.ne.s32.totalorder %s142, %s156
      %p158 = scmp.eq.s32.totalorder %s27, 0
      %p159 = por %p157, %p158
      %s161 = sadd.s32 %s160, 1
      %p164 = scmp.eq.s32.totalorder %s21, 1
      %p165 = scmp.ne.s32.totalorder %s160, %s162
      %p166 = scmp.eq.s32.totalorder %s21, 0
      %p167 = por %p165, %p166
      %p168 = scmp.ne.s32.totalorder %s160, %s162
      %p169 = scmp.eq.s32.totalorder %s26, 1
      %p170 = por %p168, %p169
      %p171 = scmp.ne.s32.totalorder %s162, %s163
      %p172 = scmp.eq.s32.totalorder %s26, 0
      %p173 = por %p171, %p172
      %p174 = scmp.ne.s32.totalorder %s162, %s163
      %p175 = scmp.eq.s32.totalorder %s27, 1
      %p176 = por %p174, %p175
      %p178 = scmp.ne.s32.totalorder %s163, %s177
      %p179 = scmp.eq.s32.totalorder %s27, 0
      %p180 = por %p178, %p179
      %s181 = ssub.s32 %s21, %s28
      %p182 = scmp.eq.s32.totalorder %s181, 0
      %s184 = sadd.s32 %s183, 1
      %s185 = scalar_select %p182, %s183, %s184
      %p188 = pneg %p182
      %p189 = scmp.eq.s32.totalorder %s21, 1
      %p190 = por %p188, %p189
      %p191 = scmp.ne.s32.totalorder %s183, %s186
      %p192 = scmp.eq.s32.totalorder %s21, 0
      %p193 = por %p191, %p192
      %p194 = scmp.ne.s32.totalorder %s183, %s186
      %p195 = scmp.eq.s32.totalorder %s26, 1
      %p196 = por %p194, %p195
      %p197 = scmp.ne.s32.totalorder %s186, %s187
      %p198 = scmp.eq.s32.totalorder %s26, 0
      %p199 = por %p197, %p198
      %p200 = scmp.ne.s32.totalorder %s186, %s187
      %p201 = scmp.eq.s32.totalorder %s27, 1
      %p202 = por %p200, %p201
      %p204 = scmp.ne.s32.totalorder %s187, %s203
      %p205 = scmp.eq.s32.totalorder %s27, 0
      %p206 = por %p204, %p205
      %p207 = scmp.le.s32.totalorder 1, %s21
      %p208 = scmp.lt.s32.totalorder %s21, 3
      %p209 = pnand %p207, %p208
      %p210 = pneg %p209
      // Predicated region
      $region9: #{tpu_custom_call.1} parent=5 // pred_check
        _
      $region10: #{tpu_custom_call.1} parent=5 // pred_check_branch
        %212 = sbr.rel (%p209) target = $region12
      $region11: #{tpu_custom_call.1} parent=5 // pred_region
        %s213 = ssub.s32 %s21, 1
        // Predicated region
        $region13: #{tpu_custom_call.1} parent=11 // pred_check
          %p214 = pneg %p68
        $region14: #{tpu_custom_call.1} parent=11 // pred_check_branch
          %216 = sbr.rel (%p214) target = $region16
        $region15: #{tpu_custom_call.1} parent=11 // pred_region
          %s218 = ssub.s32 256, 256
          %219 = vsyncadd [#allocation6], %s218
          %s220 = sshll.u32 [#allocation5], 4
          %s221 = int_to_ptr.vmem [resolvable:$true] %s220
          %226 = dma.hbm_to_vmem [thread:$0]  %s1, 256, %s221, [#allocation6], 64, 64, 4
        $region16: #{tpu_custom_call.1} parent=11 // pred_fallthru
          _
        // Predicated region
        $region17: #{tpu_custom_call.1} parent=11 // pred_check
          %p227 = pneg %p89
        $region18: #{tpu_custom_call.1} parent=11 // pred_check_branch
          %229 = sbr.rel (%p227) target = $region20
        $region19: #{tpu_custom_call.1} parent=11 // pred_region
          %s231 = ssub.s32 256, 256
          %232 = vsyncadd [#allocation6], %s231
          %s233 = sshll.u32 [#allocation7], 4
          %s234 = int_to_ptr.vmem [resolvable:$true] %s233
          %239 = dma.hbm_to_vmem [thread:$0]  %s2, 256, %s234, [#allocation6], 64, 64, 4
        $region20: #{tpu_custom_call.1} parent=11 // pred_fallthru
          _
        // Predicated region
        $region21: #{tpu_custom_call.1} parent=11 // pred_check
          %p240 = pneg %p110
        $region22: #{tpu_custom_call.1} parent=11 // pred_check_branch
          %242 = sbr.rel (%p240) target = $region24
        $region23: #{tpu_custom_call.1} parent=11 // pred_region
          %s244 = ssub.s32 256, 256
          %245 = vsyncadd [#allocation9], %s244
          %s246 = sshll.u32 [#allocation8], 4
          %s247 = int_to_ptr.vmem [resolvable:$true] %s246
          %252 = dma.hbm_to_vmem [thread:$0]  %s3, 256, %s247, [#allocation9], 64, 64, 4
        $region24: #{tpu_custom_call.1} parent=11 // pred_fallthru
          _
        // Predicated region
        $region25: #{tpu_custom_call.1} parent=11 // pred_check
          %p253 = pneg %p131
        $region26: #{tpu_custom_call.1} parent=11 // pred_check_branch
          %255 = sbr.rel (%p253) target = $region28
        $region27: #{tpu_custom_call.1} parent=11 // pred_region
          %s257 = ssub.s32 256, 256
          %258 = vsyncadd [#allocation9], %s257
          %s259 = sshll.u32 [#allocation10], 4
          %s260 = int_to_ptr.vmem [resolvable:$true] %s259
          %265 = dma.hbm_to_vmem [thread:$0]  %s4, 256, %s260, [#allocation9], 64, 64, 4
        $region28: #{tpu_custom_call.1} parent=11 // pred_fallthru
          _
        // Predicated region
        $region29: #{tpu_custom_call.1} parent=11 // pred_check
          %p266 = pneg %p152
        $region30: #{tpu_custom_call.1} parent=11 // pred_check_branch
          %268 = sbr.rel (%p266) target = $region32
        $region31: #{tpu_custom_call.1} parent=11 // pred_region
          _
        $region32: #{tpu_custom_call.1} parent=11 // pred_fallthru
          _
        // Predicated region
        $region33: #{tpu_custom_call.1} parent=11 // pred_check
          %p269 = pneg %p173
        $region34: #{tpu_custom_call.1} parent=11 // pred_check_branch
          %271 = sbr.rel (%p269) target = $region36
        $region35: #{tpu_custom_call.1} parent=11 // pred_region
          _
        $region36: #{tpu_custom_call.1} parent=11 // pred_fallthru
          _
      $region12: #{tpu_custom_call.1} parent=5 // pred_fallthru
        _
      %p272 = scmp.lt.s32.totalorder %s21, 2
      // Predicated region
      $region37: #{tpu_custom_call.1} parent=5 // pred_check
        %p273 = pneg %p272
      $region38: #{tpu_custom_call.1} parent=5 // pred_check_branch
        %275 = sbr.rel (%p273) target = $region40
      $region39: #{tpu_custom_call.1} parent=5 // pred_region
        // Predicated region
        $region41: #{tpu_custom_call.1} parent=39 // pred_check
          %p276 = pneg %p41
        $region42: #{tpu_custom_call.1} parent=39 // pred_check_branch
          %278 = sbr.rel (%p276) target = $region44
        $region43: #{tpu_custom_call.1} parent=39 // pred_region
          %s279 = sand.u32 %s31, 1
          %s280 = scalar_lea.sflag [#allocation3], %s279
          %s281 = sand.u32 %s31, 1
          %s282 = smul.addr %s281, 8
          %s283 = scalar_lea.vmem [#allocation2], %s282
          %s285 = ssub.s32 128, 128
          %286 = vsyncadd %s280, %s285
          %s287 = smul.addr %s21, 128
          %s288 = scalar_lea.hbm %s0, %s287
          %s290 = sshll.u32 %s283, 4
          %s291 = int_to_ptr.vmem [resolvable:$true] %s290
          %293 = dma.hbm_to_vmem [thread:$0]  %s288, 128, %s291, %s280
        $region44: #{tpu_custom_call.1} parent=39 // pred_fallthru
          _
      $region40: #{tpu_custom_call.1} parent=5 // pred_fallthru
        _
      %p294 = scmp.le.s32.totalorder 1, %s21
      %p295 = scmp.lt.s32.totalorder %s21, 3
      %p296 = pnand %p294, %p295
      %p297 = pneg %p296
      // Predicated region
      $region45: #{tpu_custom_call.1} parent=5 // pred_check
        _
      $region46: #{tpu_custom_call.1} parent=5 // pred_check_branch
        %299 = sbr.rel (%p296) target = $region48
      $region47: #{tpu_custom_call.1} parent=5 // pred_region
        %s300 = ssub.s32 %s21, 1
        %s301 = sand.u32 %s34, 1
        %s302 = scalar_lea.sflag [#allocation3], %s301
        %s303 = sand.u32 %s34, 1
        %s304 = smul.addr %s303, 8
        %s305 = scalar_lea.vmem [#allocation2], %s304
        // Predicated region
        $region49: #{tpu_custom_call.1} parent=47 // pred_check
          %p306 = pneg %p47
        $region50: #{tpu_custom_call.1} parent=47 // pred_check_branch
          %308 = sbr.rel (%p306) target = $region52
        $region51: #{tpu_custom_call.1} parent=47 // pred_region
          %309 = dma.done %s302, 128
        $region52: #{tpu_custom_call.1} parent=47 // pred_fallthru
          _
        // Predicated region
        $region53: #{tpu_custom_call.1} parent=47 // pred_check
          %p310 = pneg %p68
        $region54: #{tpu_custom_call.1} parent=47 // pred_check_branch
          %312 = sbr.rel (%p310) target = $region56
        $region55: #{tpu_custom_call.1} parent=47 // pred_region
          %313 = dma.done [#allocation6], 256
        $region56: #{tpu_custom_call.1} parent=47 // pred_fallthru
          _
        // Predicated region
        $region57: #{tpu_custom_call.1} parent=47 // pred_check
          %p314 = pneg %p89
        $region58: #{tpu_custom_call.1} parent=47 // pred_check_branch
          %316 = sbr.rel (%p314) target = $region60
        $region59: #{tpu_custom_call.1} parent=47 // pred_region
          %317 = dma.done [#allocation6], 256
        $region60: #{tpu_custom_call.1} parent=47 // pred_fallthru
          _
        // Predicated region
        $region61: #{tpu_custom_call.1} parent=47 // pred_check
          %p318 = pneg %p110
        $region62: #{tpu_custom_call.1} parent=47 // pred_check_branch
          %320 = sbr.rel (%p318) target = $region64
        $region63: #{tpu_custom_call.1} parent=47 // pred_region
          %321 = dma.done [#allocation9], 256
        $region64: #{tpu_custom_call.1} parent=47 // pred_fallthru
          _
        // Predicated region
        $region65: #{tpu_custom_call.1} parent=47 // pred_check
          %p322 = pneg %p131
        $region66: #{tpu_custom_call.1} parent=47 // pred_check_branch
          %324 = sbr.rel (%p322) target = $region68
        $region67: #{tpu_custom_call.1} parent=47 // pred_region
          %325 = dma.done [#allocation9], 256
        $region68: #{tpu_custom_call.1} parent=47 // pred_fallthru
          _
        %s326 = sand.u32 %s34, 1
        %s327 = scalar_lea.sflag [#allocation3], %s326
        %s328 = sand.u32 %s34, 1
        %s329 = smul.addr %s328, 8
        %s330 = scalar_lea.vmem [#allocation2], %s329
        %p331 = pneg %p47
        %p332 = pneg %p44
        %p333 = pneg %p68
        %p334 = pneg %p65
        %p335 = pneg %p89
        %p336 = pneg %p86
        %p337 = pneg %p110
        %p338 = pneg %p107
        %p339 = pneg %p131
        %p340 = pneg %p128
        %p341 = pneg %p152
        %p342 = pneg %p149
        %p343 = pneg %p173
        %p344 = pneg %p170
        %p345 = pneg %p199
        %p346 = pneg %p196
        %s347 = sand.u32 %s186, 1
        %s348 = scalar_lea.sflag [#allocation4], %s347
        %s349 = sand.u32 %s186, 1
        %s350 = smul.addr %s349, 8
        %s351 = scalar_lea.vmem [#allocation11], %s350
        %v353 = vld [vmem:[%s305] sm:$0xff]
        %v354 = vpack.c.bf16 %v353, %v353
        %v355 = vld [vmem:[#allocation5] sm:$0xf]
        %v356 = vld [vmem:[#allocation5 + $0x4] sm:$0xf]
        %v357 = vld [vmem:[#allocation5 + $0x8] sm:$0xf]
        %v358 = vld [vmem:[#allocation5 + $0xc] sm:$0xf]
        %v363 = vunpack.c.l.b16 %v355
        %v364 = vunpack.c.l.b16 %v356
        %v365 = vunpack.c.l.b16 %v357
        %v366 = vunpack.c.l.b16 %v358
        %v367 = vpack.c.b16 %v364, %v363
        %v368 = vpack.c.b16 %v366, %v365
        %vm369 = vcmask 261120
        %v371 = vsel %vm369, %v354, 0
        %v374 = vsel %vm369, %v367, 0
        %v377 = vsel %vm369, %v368, 0
        %379 = vmatprep.subr.bf16.mxu0 0
        %380 = vmatpush1.bf16.xpose.msra.mxu0 %v374
        %381 = vmatprep.subr.bf16.mxu0 0
        %382 = vmatpush1.bf16.xpose.msra.mxu0 %v377
        %383 = vmatprep.subr.bf16.mxu0 0
        %384 = vmatpush1.bf16.xpose.msra.mxu0 0
        %385 = vmatprep.subr.bf16.mxu0 0
        %386 = vmatpush1.bf16.xpose.msra.mxu0 0
        %387 = vmatprep.subr.bf16.mxu0 0
        %388 = vmatpush1.bf16.xpose.msra.mxu0 0
        %389 = vmatprep.subr.bf16.mxu0 0
        %390 = vmatpush1.bf16.xpose.msra.mxu0 0
        %391 = vmatprep.subr.bf16.mxu0 0
        %392 = vmatpush1.bf16.xpose.msra.mxu0 0
        %393 = vmatprep.subr.bf16.mxu0 0
        %394 = vmatpush1.bf16.xpose.msra.mxu0 0
        %395 = vmatprep.subr.bf16.mxu0 0
        %396 = vmatpush1.bf16.xpose.msra.mxu0 0
        %397 = vmatprep.subr.bf16.mxu0 0
        %398 = vmatpush1.bf16.xpose.msra.mxu0 0
        %399 = vmatprep.subr.bf16.mxu0 0
        %400 = vmatpush1.bf16.xpose.msra.mxu0 0
        %401 = vmatprep.subr.bf16.mxu0 0
        %402 = vmatpush1.bf16.xpose.msra.mxu0 0
        %403 = vmatprep.subr.bf16.mxu0 0
        %404 = vmatpush1.bf16.xpose.msra.mxu0 0
        %405 = vmatprep.subr.bf16.mxu0 0
        %406 = vmatpush1.bf16.xpose.msra.mxu0 0
        %407 = vmatprep.subr.bf16.mxu0 0
        %408 = vmatpush1.bf16.xpose.msra.mxu0 0
        %409 = vmatprep.subr.bf16.mxu0 0
        %410 = vmatpush1.bf16.xpose.msra.mxu0 0
        %411 = vmatprep.mubr.bf16.mxu0 0
        %412 = vmatmul.mubr.bf16.gmra.mrb[0].mxu0 %v371
        %v413 = vpop.f32.mrb[0].mxu0
        %v414 = vadd.f32 0.0, %v413
        %v415 = vpop.f32.mrb[0].mxu0
        %v416 = vpop.f32.mrb[0].mxu0
        %v417 = vpop.f32.mrb[0].mxu0
        %418 = vdwg.mxu0
        %v419 = vld [vmem:[#allocation7] sm:$0xf]
        %v420 = vld [vmem:[#allocation7 + $0x4] sm:$0xf]
        %v421 = vld [vmem:[#allocation7 + $0x8] sm:$0xf]
        %v422 = vld [vmem:[#allocation7 + $0xc] sm:$0xf]
        %v427 = vunpack.c.l.b16 %v419
        %v428 = vunpack.c.l.b16 %v420
        %v429 = vunpack.c.l.b16 %v421
        %v430 = vunpack.c.l.b16 %v422
        %v431 = vpack.c.b16 %v428, %v427
        %v432 = vpack.c.b16 %v430, %v429
        %v434 = vsel %vm369, %v431, 0
        %v437 = vsel %vm369, %v432, 0
        %439 = vmatprep.subr.bf16.mxu0 0
        %440 = vmatpush1.bf16.xpose.msra.mxu0 %v434
        %441 = vmatprep.subr.bf16.mxu0 0
        %442 = vmatpush1.bf16.xpose.msra.mxu0 %v437
        %443 = vmatprep.subr.bf16.mxu0 0
        %444 = vmatpush1.bf16.xpose.msra.mxu0 0
        %445 = vmatprep.subr.bf16.mxu0 0
        %446 = vmatpush1.bf16.xpose.msra.mxu0 0
        %447 = vmatprep.subr.bf16.mxu0 0
        %448 = vmatpush1.bf16.xpose.msra.mxu0 0
        %449 = vmatprep.subr.bf16.mxu0 0
        %450 = vmatpush1.bf16.xpose.msra.mxu0 0
        %451 = vmatprep.subr.bf16.mxu0 0
        %452 = vmatpush1.bf16.xpose.msra.mxu0 0
        %453 = vmatprep.subr.bf16.mxu0 0
        %454 = vmatpush1.bf16.xpose.msra.mxu0 0
        %455 = vmatprep.subr.bf16.mxu0 0
        %456 = vmatpush1.bf16.xpose.msra.mxu0 0
        %457 = vmatprep.subr.bf16.mxu0 0
        %458 = vmatpush1.bf16.xpose.msra.mxu0 0
        %459 = vmatprep.subr.bf16.mxu0 0
        %460 = vmatpush1.bf16.xpose.msra.mxu0 0
        %461 = vmatprep.subr.bf16.mxu0 0
        %462 = vmatpush1.bf16.xpose.msra.mxu0 0
        %463 = vmatprep.subr.bf16.mxu0 0
        %464 = vmatpush1.bf16.xpose.msra.mxu0 0
        %465 = vmatprep.subr.bf16.mxu0 0
        %466 = vmatpush1.bf16.xpose.msra.mxu0 0
        %467 = vmatprep.subr.bf16.mxu0 0
        %468 = vmatpush1.bf16.xpose.msra.mxu0 0
        %469 = vmatprep.subr.bf16.mxu0 0
        %470 = vmatpush1.bf16.xpose.msra.mxu0 0
        %471 = vmatprep.mubr.bf16.mxu0 0
        %472 = vmatmul.mubr.bf16.gmra.mrb[0].mxu0 %v371
        %v473 = vpop.f32.mrb[0].mxu0
        %v474 = vadd.f32 0.0, %v473
        %v475 = vpop.f32.mrb[0].mxu0
        %v476 = vpop.f32.mrb[0].mxu0
        %v477 = vpop.f32.mrb[0].mxu0
        %478 = vdwg.mxu0
        %v479 = vld [vmem:[#allocation8] sm:$0xf]
        %v480 = vld [vmem:[#allocation8 + $0x4] sm:$0xf]
        %v481 = vld [vmem:[#allocation8 + $0x8] sm:$0xf]
        %v482 = vld [vmem:[#allocation8 + $0xc] sm:$0xf]
        %v487 = vunpack.c.l.b16 %v479
        %v488 = vunpack.c.l.b16 %v480
        %v489 = vunpack.c.l.b16 %v481
        %v490 = vunpack.c.l.b16 %v482
        %v491 = vpack.c.b16 %v488, %v487
        %v492 = vpack.c.b16 %v490, %v489
        %v494 = vsel %vm369, %v491, 0
        %v497 = vsel %vm369, %v492, 0
        %499 = vmatprep.subr.bf16.mxu0 0
        %500 = vmatpush1.bf16.xpose.msra.mxu0 %v494
        %501 = vmatprep.subr.bf16.mxu0 0
        %502 = vmatpush1.bf16.xpose.msra.mxu0 %v497
        %503 = vmatprep.subr.bf16.mxu0 0
        %504 = vmatpush1.bf16.xpose.msra.mxu0 0
        %505 = vmatprep.subr.bf16.mxu0 0
        %506 = vmatpush1.bf16.xpose.msra.mxu0 0
        %507 = vmatprep.subr.bf16.mxu0 0
        %508 = vmatpush1.bf16.xpose.msra.mxu0 0
        %509 = vmatprep.subr.bf16.mxu0 0
        %510 = vmatpush1.bf16.xpose.msra.mxu0 0
        %511 = vmatprep.subr.bf16.mxu0 0
        %512 = vmatpush1.bf16.xpose.msra.mxu0 0
        %513 = vmatprep.subr.bf16.mxu0 0
        %514 = vmatpush1.bf16.xpose.msra.mxu0 0
        %515 = vmatprep.subr.bf16.mxu0 0
        %516 = vmatpush1.bf16.xpose.msra.mxu0 0
        %517 = vmatprep.subr.bf16.mxu0 0
        %518 = vmatpush1.bf16.xpose.msra.mxu0 0
        %519 = vmatprep.subr.bf16.mxu0 0
        %520 = vmatpush1.bf16.xpose.msra.mxu0 0
        %521 = vmatprep.subr.bf16.mxu0 0
        %522 = vmatpush1.bf16.xpose.msra.mxu0 0
        %523 = vmatprep.subr.bf16.mxu0 0
        %524 = vmatpush1.bf16.xpose.msra.mxu0 0
        %525 = vmatprep.subr.bf16.mxu0 0
        %526 = vmatpush1.bf16.xpose.msra.mxu0 0
        %527 = vmatprep.subr.bf16.mxu0 0
        %528 = vmatpush1.bf16.xpose.msra.mxu0 0
        %529 = vmatprep.subr.bf16.mxu0 0
        %530 = vmatpush1.bf16.xpose.msra.mxu0 0
        %531 = vmatprep.mubr.bf16.mxu0 0
        %532 = vmatmul.mubr.bf16.gmra.mrb[0].mxu0 %v371
        %v533 = vpop.f32.mrb[0].mxu0
        %v534 = vadd.f32 0.0, %v533
        %v535 = vpop.f32.mrb[0].mxu0
        %v536 = vpop.f32.mrb[0].mxu0
        %v537 = vpop.f32.mrb[0].mxu0
        %538 = vdwg.mxu0
        %v539 = vmul.f32 %v414, 0.17677669
        %v540 = vpack.c.bf16 %v539, %v539
        %v541 = vpack.c.bf16 %v474, %v474
        %v542 = vpack.c.bf16 %v534, %v534
        %v543 = vld [vmem:[#allocation10] sm:$0xf]
        %v544 = vld [vmem:[#allocation10 + $0x4] sm:$0xf]
        %v545 = vld [vmem:[#allocation10 + $0x8] sm:$0xf]
        %v546 = vld [vmem:[#allocation10 + $0xc] sm:$0xf]
        %vm547 = vcmask 64512
        %v549 = vsel %vm547, %v540, 0
        %v552 = vsel %vm547, %v541, 0
        %554 = vmatprep.subr.bf16.mxu0 0
        %555 = vmatpush1.bf16.xpose.msra.mxu0 %v552
        %556 = vmatprep.subr.bf16.mxu0 0
        %557 = vmatpush1.bf16.xpose.msra.mxu0 0
        %558 = vmatprep.subr.bf16.mxu0 0
        %559 = vmatpush1.bf16.xpose.msra.mxu0 0
        %560 = vmatprep.subr.bf16.mxu0 0
        %561 = vmatpush1.bf16.xpose.msra.mxu0 0
        %562 = vmatprep.subr.bf16.mxu0 0
        %563 = vmatpush1.bf16.xpose.msra.mxu0 0
        %564 = vmatprep.subr.bf16.mxu0 0
        %565 = vmatpush1.bf16.xpose.msra.mxu0 0
        %566 = vmatprep.subr.bf16.mxu0 0
        %567 = vmatpush1.bf16.xpose.msra.mxu0 0
        %568 = vmatprep.subr.bf16.mxu0 0
        %569 = vmatpush1.bf16.xpose.msra.mxu0 0
        %570 = vmatprep.subr.bf16.mxu0 0
        %571 = vmatpush1.bf16.xpose.msra.mxu0 0
        %572 = vmatprep.subr.bf16.mxu0 0
        %573 = vmatpush1.bf16.xpose.msra.mxu0 0
        %574 = vmatprep.subr.bf16.mxu0 0
        %575 = vmatpush1.bf16.xpose.msra.mxu0 0
        %576 = vmatprep.subr.bf16.mxu0 0
        %577 = vmatpush1.bf16.xpose.msra.mxu0 0
        %578 = vmatprep.subr.bf16.mxu0 0
        %579 = vmatpush1.bf16.xpose.msra.mxu0 0
        %580 = vmatprep.subr.bf16.mxu0 0
        %581 = vmatpush1.bf16.xpose.msra.mxu0 0
        %582 = vmatprep.subr.bf16.mxu0 0
        %583 = vmatpush1.bf16.xpose.msra.mxu0 0
        %584 = vmatprep.subr.bf16.mxu0 0
        %585 = vmatpush1.bf16.xpose.msra.mxu0 0
        %586 = vmatprep.mubr.bf16.mxu0 0
        %587 = vmatmul.mubr.bf16.gmra.mrb[0].mxu0 %v549
        %v588 = vpop.f32.mrb[0].mxu0
        %v589 = vadd.f32 0.0, %v588
        %v590 = vpop.f32.mrb[0].mxu0
        %v591 = vpop.f32.mrb[0].mxu0
        %v592 = vpop.f32.mrb[0].mxu0
        %593 = vdwg.mxu0
        %v594 = vsel %vm547, %v589, -inf
        %595 = vmax.xlane.f32.xlu0 %v594
        %v596 = vpop.xlane.xlu0 %595
        %v597 = vsub.f32 %v589, %v596
        %v598 = vmul.f32 %v597, 1.442695
        %v599 = vpow.pop %v598
        %v600 = vsel %vm547, %v599, 0.0
        %601 = vadd.xlane.f32.xlu0 %v600
        %v602 = vpop.xlane.xlu0 %601
        %v603 = vrcp.pop %v602
        %v604 = vmul.f32 %v599, %v603
        %v605 = vpack.c.bf16 %v604, %v604
        %v607 = vsel %vm547, %v605, 0
        %vm609 = vcmask 1043456
        %v611 = vsel %vm609, %v542, 0
        %613 = vmatprep.subr.bf16.mxu0 0
        %614 = vmatpush1.bf16.msra.mxu0 %v611
        %615 = vmatprep.subr.bf16.mxu0 0
        %616 = vmatpush1.bf16.msra.mxu0 0
        %617 = vmatprep.subr.bf16.mxu0 0
        %618 = vmatpush1.bf16.msra.mxu0 0
        %619 = vmatprep.subr.bf16.mxu0 0
        %620 = vmatpush1.bf16.msra.mxu0 0
        %621 = vmatprep.subr.bf16.mxu0 0
        %622 = vmatpush1.bf16.msra.mxu0 0
        %623 = vmatprep.subr.bf16.mxu0 0
        %624 = vmatpush1.bf16.msra.mxu0 0
        %625 = vmatprep.subr.bf16.mxu0 0
        %626 = vmatpush1.bf16.msra.mxu0 0
        %627 = vmatprep.subr.bf16.mxu0 0
        %628 = vmatpush1.bf16.msra.mxu0 0
        %629 = vmatprep.subr.bf16.mxu0 0
        %630 = vmatpush1.bf16.msra.mxu0 0
        %631 = vmatprep.subr.bf16.mxu0 0
        %632 = vmatpush1.bf16.msra.mxu0 0
        %633 = vmatprep.subr.bf16.mxu0 0
        %634 = vmatpush1.bf16.msra.mxu0 0
        %635 = vmatprep.subr.bf16.mxu0 0
        %636 = vmatpush1.bf16.msra.mxu0 0
        %637 = vmatprep.subr.bf16.mxu0 0
        %638 = vmatpush1.bf16.msra.mxu0 0
        %639 = vmatprep.subr.bf16.mxu0 0
        %640 = vmatpush1.bf16.msra.mxu0 0
        %641 = vmatprep.subr.bf16.mxu0 0
        %642 = vmatpush1.bf16.msra.mxu0 0
        %643 = vmatprep.subr.bf16.mxu0 0
        %644 = vmatpush1.bf16.msra.mxu0 0
        %645 = vmatprep.mubr.bf16.mxu0 0
        %646 = vmatmul.mubr.bf16.gmra.mrb[0].mxu0 %v607
        %v647 = vpop.f32.mrb[0].mxu0
        %v648 = vadd.f32 0.0, %v647
        %v649 = vpop.f32.mrb[0].mxu0
        %v650 = vpop.f32.mrb[0].mxu0
        %v651 = vpop.f32.mrb[0].mxu0
        %652 = vdwg.mxu0
        %v653 = vpack.c.bf16 %v648, %v648
        %655 = vrot.lane.b32.xlu0 %v540, 120
        %v656 = vpop.permute.xlu0 %655
        %658 = vrot.lane.b32.xlu0 %v541, 120
        %v659 = vpop.permute.xlu0 %658
        %v661 = vsel %vm547, %v656, 0
        %v664 = vsel %vm547, %v659, 0
        %666 = vmatprep.subr.bf16.mxu0 0
        %667 = vmatpush1.bf16.xpose.msra.mxu0 %v664
        %668 = vmatprep.subr.bf16.mxu0 0
        %669 = vmatpush1.bf16.xpose.msra.mxu0 0
        %670 = vmatprep.subr.bf16.mxu0 0
        %671 = vmatpush1.bf16.xpose.msra.mxu0 0
        %672 = vmatprep.subr.bf16.mxu0 0
        %673 = vmatpush1.bf16.xpose.msra.mxu0 0
        %674 = vmatprep.subr.bf16.mxu0 0
        %675 = vmatpush1.bf16.xpose.msra.mxu0 0
        %676 = vmatprep.subr.bf16.mxu0 0
        %677 = vmatpush1.bf16.xpose.msra.mxu0 0
        %678 = vmatprep.subr.bf16.mxu0 0
        %679 = vmatpush1.bf16.xpose.msra.mxu0 0
        %680 = vmatprep.subr.bf16.mxu0 0
        %681 = vmatpush1.bf16.xpose.msra.mxu0 0
        %682 = vmatprep.subr.bf16.mxu0 0
        %683 = vmatpush1.bf16.xpose.msra.mxu0 0
        %684 = vmatprep.subr.bf16.mxu0 0
        %685 = vmatpush1.bf16.xpose.msra.mxu0 0
        %686 = vmatprep.subr.bf16.mxu0 0
        %687 = vmatpush1.bf16.xpose.msra.mxu0 0
        %688 = vmatprep.subr.bf16.mxu0 0
        %689 = vmatpush1.bf16.xpose.msra.mxu0 0
        %690 = vmatprep.subr.bf16.mxu0 0
        %691 = vmatpush1.bf16.xpose.msra.mxu0 0
        %692 = vmatprep.subr.bf16.mxu0 0
        %693 = vmatpush1.bf16.xpose.msra.mxu0 0
        %694 = vmatprep.subr.bf16.mxu0 0
        %695 = vmatpush1.bf16.xpose.msra.mxu0 0
        %696 = vmatprep.subr.bf16.mxu0 0
        %697 = vmatpush1.bf16.xpose.msra.mxu0 0
        %698 = vmatprep.mubr.bf16.mxu0 0
        %699 = vmatmul.mubr.bf16.gmra.mrb[0].mxu0 %v661
        %v700 = vpop.f32.mrb[0].mxu0
        %v701 = vadd.f32 0.0, %v700
        %v702 = vpop.f32.mrb[0].mxu0
        %v703 = vpop.f32.mrb[0].mxu0
        %v704 = vpop.f32.mrb[0].mxu0
        %705 = vdwg.mxu0
        %v706 = vsel %vm547, %v701, -inf
        %707 = vmax.xlane.f32.xlu0 %v706
        %v708 = vpop.xlane.xlu0 %707
        %v709 = vsub.f32 %v701, %v708
        %v710 = vmul.f32 %v709, 1.442695
        %v711 = vpow.pop %v710
        %v712 = vsel %vm547, %v711, 0.0
        %713 = vadd.xlane.f32.xlu0 %v712
        %v714 = vpop.xlane.xlu0 %713
        %v715 = vrcp.pop %v714
        %v716 = vmul.f32 %v711, %v715
        %v717 = vpack.c.bf16 %v716, %v716
        %719 = vrot.lane.b32.xlu0 %v542, 120
        %v720 = vpop.permute.xlu0 %719
        %v722 = vsel %vm547, %v717, 0
        %v725 = vsel %vm609, %v720, 0
        %727 = vmatprep.subr.bf16.mxu0 0
        %728 = vmatpush1.bf16.msra.mxu0 %v725
        %729 = vmatprep.subr.bf16.mxu0 0
        %730 = vmatpush1.bf16.msra.mxu0 0
        %731 = vmatprep.subr.bf16.mxu0 0
        %732 = vmatpush1.bf16.msra.mxu0 0
        %733 = vmatprep.subr.bf16.mxu0 0
        %734 = vmatpush1.bf16.msra.mxu0 0
        %735 = vmatprep.subr.bf16.mxu0 0
        %736 = vmatpush1.bf16.msra.mxu0 0
        %737 = vmatprep.subr.bf16.mxu0 0
        %738 = vmatpush1.bf16.msra.mxu0 0
        %739 = vmatprep.subr.bf16.mxu0 0
        %740 = vmatpush1.bf16.msra.mxu0 0
        %741 = vmatprep.subr.bf16.mxu0 0
        %742 = vmatpush1.bf16.msra.mxu0 0
        %743 = vmatprep.subr.bf16.mxu0 0
        %744 = vmatpush1.bf16.msra.mxu0 0
        %745 = vmatprep.subr.bf16.mxu0 0
        %746 = vmatpush1.bf16.msra.mxu0 0
        %747 = vmatprep.subr.bf16.mxu0 0
        %748 = vmatpush1.bf16.msra.mxu0 0
        %749 = vmatprep.subr.bf16.mxu0 0
        %750 = vmatpush1.bf16.msra.mxu0 0
        %751 = vmatprep.subr.bf16.mxu0 0
        %752 = vmatpush1.bf16.msra.mxu0 0
        %753 = vmatprep.subr.bf16.mxu0 0
        %754 = vmatpush1.bf16.msra.mxu0 0
        %755 = vmatprep.subr.bf16.mxu0 0
        %756 = vmatpush1.bf16.msra.mxu0 0
        %757 = vmatprep.subr.bf16.mxu0 0
        %758 = vmatpush1.bf16.msra.mxu0 0
        %759 = vmatprep.mubr.bf16.mxu0 0
        %760 = vmatmul.mubr.bf16.gmra.mrb[0].mxu0 %v722
        %v761 = vpop.f32.mrb[0].mxu0
        %v762 = vadd.f32 0.0, %v761
        %v763 = vpop.f32.mrb[0].mxu0
        %v764 = vpop.f32.mrb[0].mxu0
        %v765 = vpop.f32.mrb[0].mxu0
        %766 = vdwg.mxu0
        %v767 = vpack.c.bf16 %v762, %v762
        %v772 = vunpack.c.l.b16 %v543
        %v773 = vunpack.c.l.b16 %v544
        %v774 = vunpack.c.l.b16 %v545
        %v775 = vunpack.c.l.b16 %v546
        %v776 = vpack.c.b16 %v773, %v772
        %v777 = vpack.c.b16 %v775, %v774
        %778 = vrot.lane.b32.xlu0 %v776, 120
        %v779 = vpop.permute.xlu0 %778
        %780 = vrot.lane.b32.xlu0 %v777, 120
        %v781 = vpop.permute.xlu0 %780
        %v783 = vsel %vm547, %v767, 0
        %v786 = vsel %vm547, %v779, 0
        %v789 = vsel %vm547, %v781, 0
        %791 = vmatprep.subr.bf16.mxu0 0
        %792 = vmatpush1.bf16.xpose.msra.mxu0 %v786
        %793 = vmatprep.subr.bf16.mxu0 0
        %794 = vmatpush1.bf16.xpose.msra.mxu0 %v789
        %795 = vmatprep.subr.bf16.mxu0 0
        %796 = vmatpush1.bf16.xpose.msra.mxu0 0
        %797 = vmatprep.subr.bf16.mxu0 0
        %798 = vmatpush1.bf16.xpose.msra.mxu0 0
        %799 = vmatprep.subr.bf16.mxu0 0
        %800 = vmatpush1.bf16.xpose.msra.mxu0 0
        %801 = vmatprep.subr.bf16.mxu0 0
        %802 = vmatpush1.bf16.xpose.msra.mxu0 0
        %803 = vmatprep.subr.bf16.mxu0 0
        %804 = vmatpush1.bf16.xpose.msra.mxu0 0
        %805 = vmatprep.subr.bf16.mxu0 0
        %806 = vmatpush1.bf16.xpose.msra.mxu0 0
        %807 = vmatprep.subr.bf16.mxu0 0
        %808 = vmatpush1.bf16.xpose.msra.mxu0 0
        %809 = vmatprep.subr.bf16.mxu0 0
        %810 = vmatpush1.bf16.xpose.msra.mxu0 0
        %811 = vmatprep.subr.bf16.mxu0 0
        %812 = vmatpush1.bf16.xpose.msra.mxu0 0
        %813 = vmatprep.subr.bf16.mxu0 0
        %814 = vmatpush1.bf16.xpose.msra.mxu0 0
        %815 = vmatprep.subr.bf16.mxu0 0
        %816 = vmatpush1.bf16.xpose.msra.mxu0 0
        %817 = vmatprep.subr.bf16.mxu0 0
        %818 = vmatpush1.bf16.xpose.msra.mxu0 0
        %819 = vmatprep.subr.bf16.mxu0 0
        %820 = vmatpush1.bf16.xpose.msra.mxu0 0
        %821 = vmatprep.subr.bf16.mxu0 0
        %822 = vmatpush1.bf16.xpose.msra.mxu0 0
        %823 = vmatprep.mubr.bf16.mxu0 0
        %824 = vmatmul.mubr.bf16.gmra.mrb[0].mxu0 %v783
        %v825 = vpop.f32.mrb[0].mxu0
        %v826 = vadd.f32 0.0, %v825
        %v827 = vpop.f32.mrb[0].mxu0
        %v828 = vpop.f32.mrb[0].mxu0
        %v829 = vpop.f32.mrb[0].mxu0
        %830 = vdwg.mxu0
        %v832 = vsel %vm547, %v653, 0
        %v835 = vsel %vm547, %v776, 0
        %v838 = vsel %vm547, %v777, 0
        %840 = vmatprep.subr.bf16.mxu0 0
        %841 = vmatpush1.bf16.xpose.msra.mxu0 %v835
        %842 = vmatprep.subr.bf16.mxu0 0
        %843 = vmatpush1.bf16.xpose.msra.mxu0 %v838
        %844 = vmatprep.subr.bf16.mxu0 0
        %845 = vmatpush1.bf16.xpose.msra.mxu0 0
        %846 = vmatprep.subr.bf16.mxu0 0
        %847 = vmatpush1.bf16.xpose.msra.mxu0 0
        %848 = vmatprep.subr.bf16.mxu0 0
        %849 = vmatpush1.bf16.xpose.msra.mxu0 0
        %850 = vmatprep.subr.bf16.mxu0 0
        %851 = vmatpush1.bf16.xpose.msra.mxu0 0
        %852 = vmatprep.subr.bf16.mxu0 0
        %853 = vmatpush1.bf16.xpose.msra.mxu0 0
        %854 = vmatprep.subr.bf16.mxu0 0
        %855 = vmatpush1.bf16.xpose.msra.mxu0 0
        %856 = vmatprep.subr.bf16.mxu0 0
        %857 = vmatpush1.bf16.xpose.msra.mxu0 0
        %858 = vmatprep.subr.bf16.mxu0 0
        %859 = vmatpush1.bf16.xpose.msra.mxu0 0
        %860 = vmatprep.subr.bf16.mxu0 0
        %861 = vmatpush1.bf16.xpose.msra.mxu0 0
        %862 = vmatprep.subr.bf16.mxu0 0
        %863 = vmatpush1.bf16.xpose.msra.mxu0 0
        %864 = vmatprep.subr.bf16.mxu0 0
        %865 = vmatpush1.bf16.xpose.msra.mxu0 0
        %866 = vmatprep.subr.bf16.mxu0 0
        %867 = vmatpush1.bf16.xpose.msra.mxu0 0
        %868 = vmatprep.subr.bf16.mxu0 0
        %869 = vmatpush1.bf16.xpose.msra.mxu0 0
        %870 = vmatprep.subr.bf16.mxu0 0
        %871 = vmatpush1.bf16.xpose.msra.mxu0 0
        %872 = vmatprep.mubr.bf16.mxu0 0
        %873 = vmatmul.mubr.bf16.gmra.mrb[0].mxu0 %v832
        %v874 = vpop.f32.mrb[0].mxu0
        %v875 = vadd.f32 %v826, %v874
        %v876 = vpop.f32.mrb[0].mxu0
        %v877 = vpop.f32.mrb[0].mxu0
        %v878 = vpop.f32.mrb[0].mxu0
        %879 = vdwg.mxu0
        %880 = vrot.lane.b32.xlu0 %v540, 112
        %v881 = vpop.permute.xlu0 %880
        %882 = vrot.lane.b32.xlu0 %v541, 112
        %v883 = vpop.permute.xlu0 %882
        %v885 = vsel %vm547, %v881, 0
        %v888 = vsel %vm547, %v883, 0
        %890 = vmatprep.subr.bf16.mxu0 0
        %891 = vmatpush1.bf16.xpose.msra.mxu0 %v888
        %892 = vmatprep.subr.bf16.mxu0 0
        %893 = vmatpush1.bf16.xpose.msra.mxu0 0
        %894 = vmatprep.subr.bf16.mxu0 0
        %895 = vmatpush1.bf16.xpose.msra.mxu0 0
        %896 = vmatprep.subr.bf16.mxu0 0
        %897 = vmatpush1.bf16.xpose.msra.mxu0 0
        %898 = vmatprep.subr.bf16.mxu0 0
        %899 = vmatpush1.bf16.xpose.msra.mxu0 0
        %900 = vmatprep.subr.bf16.mxu0 0
        %901 = vmatpush1.bf16.xpose.msra.mxu0 0
        %902 = vmatprep.subr.bf16.mxu0 0
        %903 = vmatpush1.bf16.xpose.msra.mxu0 0
        %904 = vmatprep.subr.bf16.mxu0 0
        %905 = vmatpush1.bf16.xpose.msra.mxu0 0
        %906 = vmatprep.subr.bf16.mxu0 0
        %907 = vmatpush1.bf16.xpose.msra.mxu0 0
        %908 = vmatprep.subr.bf16.mxu0 0
        %909 = vmatpush1.bf16.xpose.msra.mxu0 0
        %910 = vmatprep.subr.bf16.mxu0 0
        %911 = vmatpush1.bf16.xpose.msra.mxu0 0
        %912 = vmatprep.subr.bf16.mxu0 0
        %913 = vmatpush1.bf16.xpose.msra.mxu0 0
        %914 = vmatprep.subr.bf16.mxu0 0
        %915 = vmatpush1.bf16.xpose.msra.mxu0 0
        %916 = vmatprep.subr.bf16.mxu0 0
        %917 = vmatpush1.bf16.xpose.msra.mxu0 0
        %918 = vmatprep.subr.bf16.mxu0 0
        %919 = vmatpush1.bf16.xpose.msra.mxu0 0
        %920 = vmatprep.subr.bf16.mxu0 0
        %921 = vmatpush1.bf16.xpose.msra.mxu0 0
        %922 = vmatprep.mubr.bf16.mxu0 0
        %923 = vmatmul.mubr.bf16.gmra.mrb[0].mxu0 %v885
        %v924 = vpop.f32.mrb[0].mxu0
        %v925 = vadd.f32 0.0, %v924
        %v926 = vpop.f32.mrb[0].mxu0
        %v927 = vpop.f32.mrb[0].mxu0
        %v928 = vpop.f32.mrb[0].mxu0
        %929 = vdwg.mxu0
        %v930 = vsel %vm547, %v925, -inf
        %931 = vmax.xlane.f32.xlu0 %v930
        %v932 = vpop.xlane.xlu0 %931
        %v933 = vsub.f32 %v925, %v932
        %v934 = vmul.f32 %v933, 1.442695
        %v935 = vpow.pop %v934
        %v936 = vsel %vm547, %v935, 0.0
        %937 = vadd.xlane.f32.xlu0 %v936
        %v938 = vpop.xlane.xlu0 %937
        %v939 = vrcp.pop %v938
        %v940 = vmul.f32 %v935, %v939
        %v941 = vpack.c.bf16 %v940, %v940
        %942 = vrot.lane.b32.xlu0 %v542, 112
        %v943 = vpop.permute.xlu0 %942
        %v945 = vsel %vm547, %v941, 0
        %v948 = vsel %vm609, %v943, 0
        %950 = vmatprep.subr.bf16.mxu0 0
        %951 = vmatpush1.bf16.msra.mxu0 %v948
        %952 = vmatprep.subr.bf16.mxu0 0
        %953 = vmatpush1.bf16.msra.mxu0 0
        %954 = vmatprep.subr.bf16.mxu0 0
        %955 = vmatpush1.bf16.msra.mxu0 0
        %956 = vmatprep.subr.bf16.mxu0 0
        %957 = vmatpush1.bf16.msra.mxu0 0
        %958 = vmatprep.subr.bf16.mxu0 0
        %959 = vmatpush1.bf16.msra.mxu0 0
        %960 = vmatprep.subr.bf16.mxu0 0
        %961 = vmatpush1.bf16.msra.mxu0 0
        %962 = vmatprep.subr.bf16.mxu0 0
        %963 = vmatpush1.bf16.msra.mxu0 0
        %964 = vmatprep.subr.bf16.mxu0 0
        %965 = vmatpush1.bf16.msra.mxu0 0
        %966 = vmatprep.subr.bf16.mxu0 0
        %967 = vmatpush1.bf16.msra.mxu0 0
        %968 = vmatprep.subr.bf16.mxu0 0
        %969 = vmatpush1.bf16.msra.mxu0 0
        %970 = vmatprep.subr.bf16.mxu0 0
        %971 = vmatpush1.bf16.msra.mxu0 0
        %972 = vmatprep.subr.bf16.mxu0 0
        %973 = vmatpush1.bf16.msra.mxu0 0
        %974 = vmatprep.subr.bf16.mxu0 0
        %975 = vmatpush1.bf16.msra.mxu0 0
        %976 = vmatprep.subr.bf16.mxu0 0
        %977 = vmatpush1.bf16.msra.mxu0 0
        %978 = vmatprep.subr.bf16.mxu0 0
        %979 = vmatpush1.bf16.msra.mxu0 0
        %980 = vmatprep.subr.bf16.mxu0 0
        %981 = vmatpush1.bf16.msra.mxu0 0
        %982 = vmatprep.mubr.bf16.mxu0 0
        %983 = vmatmul.mubr.bf16.gmra.mrb[0].mxu0 %v945
        %v984 = vpop.f32.mrb[0].mxu0
        %v985 = vadd.f32 0.0, %v984
        %v986 = vpop.f32.mrb[0].mxu0
        %v987 = vpop.f32.mrb[0].mxu0
        %v988 = vpop.f32.mrb[0].mxu0
        %989 = vdwg.mxu0
        %v990 = vpack.c.bf16 %v985, %v985
        %991 = vrot.lane.b32.xlu0 %v776, 112
        %v992 = vpop.permute.xlu0 %991
        %993 = vrot.lane.b32.xlu0 %v777, 112
        %v994 = vpop.permute.xlu0 %993
        %v996 = vsel %vm547, %v990, 0
        %v999 = vsel %vm547, %v992, 0
        %v1002 = vsel %vm547, %v994, 0
        %1004 = vmatprep.subr.bf16.mxu0 0
        %1005 = vmatpush1.bf16.xpose.msra.mxu0 %v999
        %1006 = vmatprep.subr.bf16.mxu0 0
        %1007 = vmatpush1.bf16.xpose.msra.mxu0 %v1002
        %1008 = vmatprep.subr.bf16.mxu0 0
        %1009 = vmatpush1.bf16.xpose.msra.mxu0 0
        %1010 = vmatprep.subr.bf16.mxu0 0
        %1011 = vmatpush1.bf16.xpose.msra.mxu0 0
        %1012 = vmatprep.subr.bf16.mxu0 0
        %1013 = vmatpush1.bf16.xpose.msra.mxu0 0
        %1014 = vmatprep.subr.bf16.mxu0 0
        %1015 = vmatpush1.bf16.xpose.msra.mxu0 0
        %1016 = vmatprep.subr.bf16.mxu0 0
        %1017 = vmatpush1.bf16.xpose.msra.mxu0 0
        %1018 = vmatprep.subr.bf16.mxu0 0
        %1019 = vmatpush1.bf16.xpose.msra.mxu0 0
        %1020 = vmatprep.subr.bf16.mxu0 0
        %1021 = vmatpush1.bf16.xpose.msra.mxu0 0
        %1022 = vmatprep.subr.bf16.mxu0 0
        %1023 = vmatpush1.bf16.xpose.msra.mxu0 0
        %1024 = vmatprep.subr.bf16.mxu0 0
        %1025 = vmatpush1.bf16.xpose.msra.mxu0 0
        %1026 = vmatprep.subr.bf16.mxu0 0
        %1027 = vmatpush1.bf16.xpose.msra.mxu0 0
        %1028 = vmatprep.subr.bf16.mxu0 0
        %1029 = vmatpush1.bf16.xpose.msra.mxu0 0
        %1030 = vmatprep.subr.bf16.mxu0 0
        %1031 = vmatpush1.bf16.xpose.msra.mxu0 0
        %1032 = vmatprep.subr.bf16.mxu0 0
        %1033 = vmatpush1.bf16.xpose.msra.mxu0 0
        %1034 = vmatprep.subr.bf16.mxu0 0
        %1035 = vmatpush1.bf16.xpose.msra.mxu0 0
        %1036 = vmatprep.mubr.bf16.mxu0 0
        %1037 = vmatmul.mubr.bf16.gmra.mrb[0].mxu0 %v996
        %v1038 = vpop.f32.mrb[0].mxu0
        %v1039 = vadd.f32 0.0, %v1038
        %v1040 = vpop.f32.mrb[0].mxu0
        %v1041 = vpop.f32.mrb[0].mxu0
        %v1042 = vpop.f32.mrb[0].mxu0
        %1043 = vdwg.mxu0
        %v1044 = vadd.f32 %v875, %v1039
        %1045 = vrot.lane.b32.xlu0 %v540, 104
        %v1046 = vpop.permute.xlu0 %1045
        %1047 = vrot.lane.b32.xlu0 %v541, 104
        %v1048 = vpop.permute.xlu0 %1047
        %v1050 = vsel %vm547, %v1046, 0
        %v1053 = vsel %vm547, %v1048, 0
        %1055 = vmatprep.subr.bf16.mxu0 0
        %1056 = vmatpush1.bf16.xpose.msra.mxu0 %v1053
        %1057 = vmatprep.subr.bf16.mxu0 0
        %1058 = vmatpush1.bf16.xpose.msra.mxu0 0
        %1059 = vmatprep.subr.bf16.mxu0 0
        %1060 = vmatpush1.bf16.xpose.msra.mxu0 0
        %1061 = vmatprep.subr.bf16.mxu0 0
        %1062 = vmatpush1.bf16.xpose.msra.mxu0 0
        %1063 = vmatprep.subr.bf16.mxu0 0
        %1064 = vmatpush1.bf16.xpose.msra.mxu0 0
        %1065 = vmatprep.subr.bf16.mxu0 0
        %1066 = vmatpush1.bf16.xpose.msra.mxu0 0
        %1067 = vmatprep.subr.bf16.mxu0 0
        %1068 = vmatpush1.bf16.xpose.msra.mxu0 0
        %1069 = vmatprep.subr.bf16.mxu0 0
        %1070 = vmatpush1.bf16.xpose.msra.mxu0 0
        %1071 = vmatprep.subr.bf16.mxu0 0
        %1072 = vmatpush1.bf16.xpose.msra.mxu0 0
        %1073 = vmatprep.subr.bf16.mxu0 0
        %1074 = vmatpush1.bf16.xpose.msra.mxu0 0
        %1075 = vmatprep.subr.bf16.mxu0 0
        %1076 = vmatpush1.bf16.xpose.msra.mxu0 0
        %1077 = vmatprep.subr.bf16.mxu0 0
        %1078 = vmatpush1.bf16.xpose.msra.mxu0 0
        %1079 = vmatprep.subr.bf16.mxu0 0
        %1080 = vmatpush1.bf16.xpose.msra.mxu0 0
        %1081 = vmatprep.subr.bf16.mxu0 0
        %1082 = vmatpush1.bf16.xpose.msra.mxu0 0
        %1083 = vmatprep.subr.bf16.mxu0 0
        %1084 = vmatpush1.bf16.xpose.msra.mxu0 0
        %1085 = vmatprep.subr.bf16.mxu0 0
        %1086 = vmatpush1.bf16.xpose.msra.mxu0 0
        %1087 = vmatprep.mubr.bf16.mxu0 0
        %1088 = vmatmul.mubr.bf16.gmra.mrb[0].mxu0 %v1050
        %v1089 = vpop.f32.mrb[0].mxu0
        %v1090 = vadd.f32 0.0, %v1089
        %v1091 = vpop.f32.mrb[0].mxu0
        %v1092 = vpop.f32.mrb[0].mxu0
        %v1093 = vpop.f32.mrb[0].mxu0
        %1094 = vdwg.mxu0
        %v1095 = vsel %vm547, %v1090, -inf
        %1096 = vmax.xlane.f32.xlu0 %v1095
        %v1097 = vpop.xlane.xlu0 %1096
        %v1098 = vsub.f32 %v1090, %v1097
        %v1099 = vmul.f32 %v1098, 1.442695
        %v1100 = vpow.pop %v1099
        %v1101 = vsel %vm547, %v1100, 0.0
        %1102 = vadd.xlane.f32.xlu0 %v1101
        %v1103 = vpop.xlane.xlu0 %1102
        %v1104 = vrcp.pop %v1103
        %v1105 = vmul.f32 %v1100, %v1104
        %v1106 = vpack.c.bf16 %v1105, %v1105
        %1107 = vrot.lane.b32.xlu0 %v542, 104
        %v1108 = vpop.permute.xlu0 %1107
        %v1110 = vsel %vm547, %v1106, 0
        %v1113 = vsel %vm609, %v1108, 0
        %1115 = vmatprep.subr.bf16.mxu0 0
        %1116 = vmatpush1.bf16.msra.mxu0 %v1113
        %1117 = vmatprep.subr.bf16.mxu0 0
        %1118 = vmatpush1.bf16.msra.mxu0 0
        %1119 = vmatprep.subr.bf16.mxu0 0
        %1120 = vmatpush1.bf16.msra.mxu0 0
        %1121 = vmatprep.subr.bf16.mxu0 0
        %1122 = vmatpush1.bf16.msra.mxu0 0
        %1123 = vmatprep.subr.bf16.mxu0 0
        %1124 = vmatpush1.bf16.msra.mxu0 0
        %1125 = vmatprep.subr.bf16.mxu0 0
        %1126 = vmatpush1.bf16.msra.mxu0 0
        %1127 = vmatprep.subr.bf16.mxu0 0
        %1128 = vmatpush1.bf16.msra.mxu0 0
        %1129 = vmatprep.subr.bf16.mxu0 0
        %1130 = vmatpush1.bf16.msra.mxu0 0
        %1131 = vmatprep.subr.bf16.mxu0 0
        %1132 = vmatpush1.bf16.msra.mxu0 0
        %1133 = vmatprep.subr.bf16.mxu0 0
        %1134 = vmatpush1.bf16.msra.mxu0 0
        %1135 = vmatprep.subr.bf16.mxu0 0
        %1136 = vmatpush1.bf16.msra.mxu0 0
        %1137 = vmatprep.subr.bf16.mxu0 0
        %1138 = vmatpush1.bf16.msra.mxu0 0
        %1139 = vmatprep.subr.bf16.mxu0 0
        %1140 = vmatpush1.bf16.msra.mxu0 0
        %1141 = vmatprep.subr.bf16.mxu0 0
        %1142 = vmatpush1.bf16.msra.mxu0 0
        %1143 = vmatprep.subr.bf16.mxu0 0
        %1144 = vmatpush1.bf16.msra.mxu0 0
        %1145 = vmatprep.subr.bf16.mxu0 0
        %1146 = vmatpush1.bf16.msra.mxu0 0
        %1147 = vmatprep.mubr.bf16.mxu0 0
        %1148 = vmatmul.mubr.bf16.gmra.mrb[0].mxu0 %v1110
        %v1149 = vpop.f32.mrb[0].mxu0
        %v1150 = vadd.f32 0.0, %v1149
        %v1151 = vpop.f32.mrb[0].mxu0
        %v1152 = vpop.f32.mrb[0].mxu0
        %v1153 = vpop.f32.mrb[0].mxu0
        %1154 = vdwg.mxu0
        %v1155 = vpack.c.bf16 %v1150, %v1150
        %1156 = vrot.lane.b32.xlu0 %v776, 104
        %v1157 = vpop.permute.xlu0 %1156
        %1158 = vrot.lane.b32.xlu0 %v777, 104
        %v1159 = vpop.permute.xlu0 %1158
        %v1161 = vsel %vm547, %v1155, 0
        %v1164 = vsel %vm547, %v1157, 0
        %v1167 = vsel %vm547, %v1159, 0
        %1169 = vmatprep.subr.bf16.mxu0 0
        %1170 = vmatpush1.bf16.xpose.msra.mxu0 %v1164
        %1171 = vmatprep.subr.bf16.mxu0 0
        %1172 = vmatpush1.bf16.xpose.msra.mxu0 %v1167
        %1173 = vmatprep.subr.bf16.mxu0 0
        %1174 = vmatpush1.bf16.xpose.msra.mxu0 0
        %1175 = vmatprep.subr.bf16.mxu0 0
        %1176 = vmatpush1.bf16.xpose.msra.mxu0 0
        %1177 = vmatprep.subr.bf16.mxu0 0
        %1178 = vmatpush1.bf16.xpose.msra.mxu0 0
        %1179 = vmatprep.subr.bf16.mxu0 0
        %1180 = vmatpush1.bf16.xpose.msra.mxu0 0
        %1181 = vmatprep.subr.bf16.mxu0 0
        %1182 = vmatpush1.bf16.xpose.msra.mxu0 0
        %1183 = vmatprep.subr.bf16.mxu0 0
        %1184 = vmatpush1.bf16.xpose.msra.mxu0 0
        %1185 = vmatprep.subr.bf16.mxu0 0
        %1186 = vmatpush1.bf16.xpose.msra.mxu0 0
        %1187 = vmatprep.subr.bf16.mxu0 0
        %1188 = vmatpush1.bf16.xpose.msra.mxu0 0
        %1189 = vmatprep.subr.bf16.mxu0 0
        %1190 = vmatpush1.bf16.xpose.msra.mxu0 0
        %1191 = vmatprep.subr.bf16.mxu0 0
        %1192 = vmatpush1.bf16.xpose.msra.mxu0 0
        %1193 = vmatprep.subr.bf16.mxu0 0
        %1194 = vmatpush1.bf16.xpose.msra.mxu0 0
        %1195 = vmatprep.subr.bf16.mxu0 0
        %1196 = vmatpush1.bf16.xpose.msra.mxu0 0
        %1197 = vmatprep.subr.bf16.mxu0 0
        %1198 = vmatpush1.bf16.xpose.msra.mxu0 0
        %1199 = vmatprep.subr.bf16.mxu0 0
        %1200 = vmatpush1.bf16.xpose.msra.mxu0 0
        %1201 = vmatprep.mubr.bf16.mxu0 0
        %1202 = vmatmul.mubr.bf16.gmra.mrb[0].mxu0 %v1161
        %v1203 = vpop.f32.mrb[0].mxu0
        %v1204 = vadd.f32 0.0, %v1203
        %v1205 = vpop.f32.mrb[0].mxu0
        %v1206 = vpop.f32.mrb[0].mxu0
        %v1207 = vpop.f32.mrb[0].mxu0
        %1208 = vdwg.mxu0
        %v1209 = vadd.f32 %v1044, %v1204
        %v1210 = vadd.f32 %v353, %v1209
        %v1211 = vsel %vm369, %v1210, 0.0
        %1212 = vadd.xlane.f32.xlu0 %v1211
        %v1213 = vpop.xlane.xlu0 %1212
        %v1214 = vrcp.pop 32.0
        %v1215 = vmul.f32 %v1213, %v1214
        %v1216 = vsub.f32 %v1210, %v1215
        %v1217 = vmul.f32 %v1216, %v1216
        %v1218 = vsel %vm369, %v1217, 0.0
        %1219 = vadd.xlane.f32.xlu0 %v1218
        %v1220 = vpop.xlane.xlu0 %1219
        %v1221 = vmul.f32 %v1220, 0.032258064
        %v1222 = vrsqrt.pop %v1221
        %v1223 = vmul.f32 %v1221, %v1222
        %vm1224 = vcmp.eq.f32.partialorder %v1221, inf
        %v1225 = vsel %vm1224, %v1221, %v1223
        %vm1226 = vcmp.eq.f32.partialorder %v1221, 0.0
        %v1227 = vand.u32 %v1221, 2147483648
        %v1228 = vsel %vm1226, %v1227, %v1225
        %v1229 = vadd.f32 %v1228, 1e-06
        %v1230 = vrcp.pop %v1229
        %v1231 = vld [vmem:[%s5] sm:$0x1]
        %v1232 = vmul.f32 %v1216, %v1230
        %v1234 = vlaneseq
        %v1235 = vshrl.u32 %v1234, 7
        %v1236 = vsub.s32 0, %v1235
        %v1237 = vrot.slane %v1231, %v1236
        %v1239 = vmul.f32 %v1237, %v1232
        %v1240 = vld [vmem:[%s6] sm:$0x1]
        %v1242 = vlaneseq
        %v1243 = vshrl.u32 %v1242, 7
        %v1244 = vsub.s32 0, %v1243
        %v1245 = vrot.slane %v1240, %v1244
        %v1247 = vadd.f32 %v1239, %v1245
        %1248 = vst.msk [vmem:[%s351] sm:$0xff] %vm369, %v1247
        %s1249 = sand.u32 %s186, 1
        %s1250 = scalar_lea.sflag [#allocation4], %s1249
        %s1251 = sand.u32 %s186, 1
        %s1252 = smul.addr %s1251, 8
        %s1253 = scalar_lea.vmem [#allocation11], %s1252
        // Predicated region
        $region69: #{tpu_custom_call.1} parent=47 // pred_check
          %p1254 = pneg %p196
        $region70: #{tpu_custom_call.1} parent=47 // pred_check_branch
          %1256 = sbr.rel (%p1254) target = $region72
        $region71: #{tpu_custom_call.1} parent=47 // pred_region
          %s1258 = ssub.s32 128, 128
          %1259 = vsyncadd %s1250, %s1258
          %s1260 = smul.addr %s26, 128
          %s1261 = scalar_lea.hbm %s7, %s1260
          %s1263 = sshll.u32 %s1253, 4
          %s1264 = int_to_ptr.vmem [resolvable:$true] %s1263
          %1266 = dma.vmem_to_hbm [thread:$0]  %s1264, 128, %s1261, %s1250
        $region72: #{tpu_custom_call.1} parent=47 // pred_fallthru
          _
      $region48: #{tpu_custom_call.1} parent=5 // pred_fallthru
        _
      %p1267 = scmp.le.s32.totalorder 2, %s21
      // Predicated region
      $region73: #{tpu_custom_call.1} parent=5 // pred_check
        %p1268 = pneg %p1267
      $region74: #{tpu_custom_call.1} parent=5 // pred_check_branch
        %1270 = sbr.rel (%p1268) target = $region76
      $region75: #{tpu_custom_call.1} parent=5 // pred_region
        %s1271 = ssub.s32 %s21, 2
        // Predicated region
        $region77: #{tpu_custom_call.1} parent=75 // pred_check
          %p1272 = pneg %p202
        $region78: #{tpu_custom_call.1} parent=75 // pred_check_branch
          %1274 = sbr.rel (%p1272) target = $region80
        $region79: #{tpu_custom_call.1} parent=75 // pred_region
          %s1275 = sand.u32 %s187, 1
          %s1276 = scalar_lea.sflag [#allocation4], %s1275
          %s1277 = sand.u32 %s187, 1
          %s1278 = smul.addr %s1277, 8
          %s1279 = scalar_lea.vmem [#allocation11], %s1278
          %1280 = dma.done %s1276, 128
        $region80: #{tpu_custom_call.1} parent=75 // pred_fallthru
          _
      $region76: #{tpu_custom_call.1} parent=5 // pred_fallthru
        _
    $region6: #{tpu_custom_call.1} parent=1 // loop_footer
      %s25 = sadd.s32 1, %s21
    $region7: #{tpu_custom_call.1} parent=1 // loop_footer_branch
      %20 = sbr.rel target = $region3
    $region8: #{tpu_custom_call.1} parent=1 // loop_exit
      _
    %1281 = vsyncpa [#allocation3], 1
    %s1282 = scalar_lea.sflag [#allocation3], 1
    %1283 = vsyncpa %s1282, 1
    %1284 = vsyncpa [#allocation6], 1
    %1285 = vsyncpa [#allocation9], 1
    %1286 = vsyncpa [#allocation4], 1
    %s1287 = scalar_lea.sflag [#allocation4], 1
    %1288 = vsyncpa %s1287, 1

</llo_original>
